<compile_context>
chip_gen: v5e
topology: v5e:2x2
jax: 0.10.0
libtpu: 0.0.40
codegen_flags: <defaults>
</compile_context>

<pallas_src>
import jax
import jax.numpy as jnp
from jax.experimental import pallas as pl
from jax.experimental.pallas import tpu as pltpu

EPS = 1e-6


def ln_linear_kernel(x_ref, gamma_ref, beta_ref, wt_ref, b_ref, o_ref):
    # x_ref:     (R, C)   rows x channels, resident across the F grid
    # gamma_ref: (1, C)
    # beta_ref:  (1, C)
    # wt_ref:    (C, tn)  weight tile, pre-transposed to (in, out) layout at init
    # b_ref:     (1, tn)  bias tile
    # o_ref:     (R, tn)  output tile

    # LayerNorm recomputed per step (cheap VPU/EUP work, keeps the F axis
    # embarrassingly parallel so it can shard across TensorCores).
    x = x_ref[...].astype(jnp.float32)
    mean = jnp.mean(x, axis=-1, keepdims=True)
    centered = x - mean
    var = jnp.mean(centered * centered, axis=-1, keepdims=True)
    inv = jax.lax.rsqrt(var + EPS)
    xn = (centered * inv) * gamma_ref[...].astype(jnp.float32) \
        + beta_ref[...].astype(jnp.float32)

    # (R, C) x (C, tn) -> (R, tn)  standard MXU matmul, f32 accumulation.
    out = jax.lax.dot_general(
        xn, wt_ref[...].astype(jnp.float32),
        dimension_numbers=(((1,), (0,)), ((), ())),
        preferred_element_type=jnp.float32)
    o_ref[...] = (out + b_ref[...].astype(jnp.float32)).astype(o_ref.dtype)


def layernorm_linear(x, gamma, beta, weight_t, bias, *, tn=512):
    """x: (N, H, W, C); weight_t: (C, F) pre-transposed Linear weight; bias: (F,)."""
    n, h, w_sp, c = x.shape
    f = weight_t.shape[1]
    rows = n * h * w_sp

    # Pad rows to the f32 sublane multiple (8); padded rows are sliced off after.
    rows_pad = ((rows + 7) // 8) * 8

    if f % tn != 0:
        tn = f  # fall back to a single F tile for odd sizes

    x2d = x.reshape(rows, c)
    if rows_pad != rows:
        x2d = jnp.pad(x2d, ((0, rows_pad - rows), (0, 0)))
    gamma2d = gamma.reshape(1, c)
    beta2d = beta.reshape(1, c)
    bias2d = bias.reshape(1, f)

    out2d = pl.pallas_call(
        ln_linear_kernel,
        out_shape=jax.ShapeDtypeStruct((rows_pad, f), x.dtype),
        grid_spec=pltpu.PrefetchScalarGridSpec(
            num_scalar_prefetch=0,
            grid=(f // tn,),
            in_specs=[
                pl.BlockSpec((rows_pad, c), lambda j: (0, 0)),  # x (resident)
                pl.BlockSpec((1, c), lambda j: (0, 0)),         # gamma
                pl.BlockSpec((1, c), lambda j: (0, 0)),         # beta
                pl.BlockSpec((c, tn), lambda j: (0, j)),        # weight tile (C, tn)
                pl.BlockSpec((1, tn), lambda j: (0, j)),        # bias tile
            ],
            out_specs=pl.BlockSpec((rows_pad, tn), lambda j: (0, j)),
        ),
        compiler_params=pltpu.CompilerParams(
            # LN is recomputed every step, so the F axis is safe to shard
            # across TensorCores (v7x megacore).
            dimension_semantics=("parallel",)),
    )(x2d, gamma2d, beta2d, weight_t, bias2d)

    return out2d[:rows].reshape(n, h, w_sp, f)


def reference(x, gamma, beta, weight, bias):
    mean = jnp.mean(x, axis=-1, keepdims=True)
    var = jnp.mean((x - mean) ** 2, axis=-1, keepdims=True)
    xn = (x - mean) * jax.lax.rsqrt(var + EPS)
    y = xn * gamma + beta
    return y @ weight.T + bias


if __name__ == "__main__":
    key = jax.random.PRNGKey(0)
    k_x, k_g, k_b, k_w, k_bias = jax.random.split(key, 5)

    # Shapes implied by the module: x (1,14,14,512), LayerNorm(512), Linear(512->2048)
    C_IN, C_OUT = 512, 2048
    x = jax.random.normal(k_x, (1, 14, 14, C_IN), dtype=jnp.float32)

    # Deterministic parameter init (synthetic, not a checkpoint load).
    gamma = jnp.ones((C_IN,), dtype=jnp.float32) \
        + 0.01 * jax.random.normal(k_g, (C_IN,), dtype=jnp.float32)
    beta = 0.01 * jax.random.normal(k_b, (C_IN,), dtype=jnp.float32)
    weight = jax.random.normal(k_w, (C_OUT, C_IN), dtype=jnp.float32) * (C_IN ** -0.5)
    bias = 0.01 * jax.random.normal(k_bias, (C_OUT,), dtype=jnp.float32)

    # One-time parameter-setup transpose to (C, F); amortized across all calls,
    # so the kernel never pays a per-step weight-tile relayout.
    weight_t = jax.block_until_ready(jnp.transpose(weight))

    out = layernorm_linear(x, gamma, beta, weight_t, bias)
    out = jax.block_until_ready(out)

    ref = reference(x, gamma, beta, weight, bias)
    assert out.shape == (1, 14, 14, C_OUT), out.shape
    assert jnp.allclose(out, ref, atol=1e-3, rtol=1e-3), \
        float(jnp.max(jnp.abs(out - ref)))

    print("KERNEL_OK")
</pallas_src>

<mosaic_0001>
module attributes {stable_mosaic.version = 11 : i64} {
  func.func @ln_linear_kernel(%arg0: i32, %arg1: memref<200x512xf32, #tpu.memory_space<vmem>>, %arg2: memref<1x512xf32, #tpu.memory_space<vmem>>, %arg3: memref<1x512xf32, #tpu.memory_space<vmem>>, %arg4: memref<512x512xf32, #tpu.memory_space<vmem>>, %arg5: memref<1x512xf32, #tpu.memory_space<vmem>>, %arg6: memref<200x512xf32, #tpu.memory_space<vmem>>) attributes {dimension_semantics = [#tpu.dimension_semantics<parallel>], iteration_bounds = array<i64: 4>, scalar_prefetch = 0 : i64, scratch_operands = 0 : i64, tpu.core_type = #tpu.core_type<tc>, window_params = [{pipeline_mode = #tpu.pipeline_mode<synchronous>, transform_indices = @transform_0, window_bounds = array<i64: 200, 512>}, {pipeline_mode = #tpu.pipeline_mode<synchronous>, transform_indices = @transform_1, window_bounds = array<i64: 1, 512>}, {pipeline_mode = #tpu.pipeline_mode<synchronous>, transform_indices = @transform_2, window_bounds = array<i64: 1, 512>}, {transform_indices = @transform_3, window_bounds = array<i64: 512, 512>}, {transform_indices = @transform_4, window_bounds = array<i64: 1, 512>}, {transform_indices = @transform_5, window_bounds = array<i64: 200, 512>}]} {
    %c0 = arith.constant 0 : index
    %c0_0 = arith.constant 0 : index
    %0 = vector.load %arg1[%c0, %c0_0] : memref<200x512xf32, #tpu.memory_space<vmem>>, vector<200x512xf32>
    %cst = arith.constant dense<0.000000e+00> : vector<200xf32>
    %1 = vector.multi_reduction <add>, %0, %cst [1] : vector<200x512xf32> to vector<200xf32>
    %2 = vector.shape_cast %1 : vector<200xf32> to vector<200x1xf32>
    %cst_1 = arith.constant 5.120000e+02 : f32
    %3 = vector.broadcast %cst_1 : f32 to vector<200x1xf32>
    %4 = arith.divf %2, %3 : vector<200x1xf32>
    %5 = vector.broadcast %4 : vector<200x1xf32> to vector<200x512xf32>
    %6 = arith.subf %0, %5 : vector<200x512xf32>
    %7 = arith.mulf %6, %6 : vector<200x512xf32>
    %cst_2 = arith.constant dense<0.000000e+00> : vector<200xf32>
    %8 = vector.multi_reduction <add>, %7, %cst_2 [1] : vector<200x512xf32> to vector<200xf32>
    %9 = vector.shape_cast %8 : vector<200xf32> to vector<200x1xf32>
    %cst_3 = arith.constant 5.120000e+02 : f32
    %10 = vector.broadcast %cst_3 : f32 to vector<200x1xf32>
    %11 = arith.divf %9, %10 : vector<200x1xf32>
    %cst_4 = arith.constant 9.99999997E-7 : f32
    %12 = vector.broadcast %cst_4 : f32 to vector<200x1xf32>
    %13 = arith.addf %11, %12 : vector<200x1xf32>
    %14 = math.rsqrt %13 : vector<200x1xf32>
    %15 = vector.broadcast %14 : vector<200x1xf32> to vector<200x512xf32>
    %16 = arith.mulf %6, %15 : vector<200x512xf32>
    %c0_5 = arith.constant 0 : index
    %c0_6 = arith.constant 0 : index
    %17 = vector.load %arg2[%c0_5, %c0_6] : memref<1x512xf32, #tpu.memory_space<vmem>>, vector<1x512xf32>
    %18 = vector.broadcast %17 : vector<1x512xf32> to vector<200x512xf32>
    %19 = arith.mulf %16, %18 : vector<200x512xf32>
    %c0_7 = arith.constant 0 : index
    %c0_8 = arith.constant 0 : index
    %20 = vector.load %arg3[%c0_7, %c0_8] : memref<1x512xf32, #tpu.memory_space<vmem>>, vector<1x512xf32>
    %21 = vector.broadcast %20 : vector<1x512xf32> to vector<200x512xf32>
    %22 = arith.addf %19, %21 : vector<200x512xf32>
    %c0_9 = arith.constant 0 : index
    %c0_10 = arith.constant 0 : index
    %23 = vector.load %arg4[%c0_9, %c0_10] : memref<512x512xf32, #tpu.memory_space<vmem>>, vector<512x512xf32>
    %cst_11 = arith.constant dense<0.000000e+00> : vector<200x512xf32>
    %24 = tpu.matmul %22, %23, %cst_11 {dimension_numbers = #tpu.dot_dimension_numbers<[1], [0], [0], [1], [0, 0, 1, 1], [], []>} : vector<200x512xf32>, vector<512x512xf32>, vector<200x512xf32> -> vector<200x512xf32>
    %c0_12 = arith.constant 0 : index
    %c0_13 = arith.constant 0 : index
    %25 = vector.load %arg5[%c0_12, %c0_13] : memref<1x512xf32, #tpu.memory_space<vmem>>, vector<1x512xf32>
    %26 = vector.broadcast %25 : vector<1x512xf32> to vector<200x512xf32>
    %27 = arith.addf %24, %26 : vector<200x512xf32>
    %c0_14 = arith.constant 0 : index
    %c0_15 = arith.constant 0 : index
    %28 = vector.load %arg6[%c0_14, %c0_15] : memref<200x512xf32, #tpu.memory_space<vmem>>, vector<200x512xf32>
    tpu.vector_store %arg6[%c0_14, %c0_15], %27 {strides = array<i32>} : memref<200x512xf32, #tpu.memory_space<vmem>>, vector<200x512xf32>,
    return
  }
  func.func @transform_0(%arg0: i32) -> (i32, i32) {
    %c0_i32 = arith.constant 0 : i32
    %c0_i32_0 = arith.constant 0 : i32
    %c0_i32_1 = arith.constant 0 : i32
    return %c0_i32, %c0_i32_0 : i32, i32
  }
  func.func @transform_1(%arg0: i32) -> (i32, i32) {
    %c0_i32 = arith.constant 0 : i32
    %c0_i32_0 = arith.constant 0 : i32
    %c0_i32_1 = arith.constant 0 : i32
    return %c0_i32, %c0_i32_0 : i32, i32
  }
  func.func @transform_2(%arg0: i32) -> (i32, i32) {
    %c0_i32 = arith.constant 0 : i32
    %c0_i32_0 = arith.constant 0 : i32
    %c0_i32_1 = arith.constant 0 : i32
    return %c0_i32, %c0_i32_0 : i32, i32
  }
  func.func @transform_3(%arg0: i32) -> (i32, i32) {
    %c0_i32 = arith.constant 0 : i32
    %c0_i32_0 = arith.constant 0 : i32
    return %c0_i32, %arg0 : i32, i32
  }
  func.func @transform_4(%arg0: i32) -> (i32, i32) {
    %c0_i32 = arith.constant 0 : i32
    %c0_i32_0 = arith.constant 0 : i32
    return %c0_i32, %arg0 : i32, i32
  }
  func.func @transform_5(%arg0: i32) -> (i32, i32) {
    %c0_i32 = arith.constant 0 : i32
    %c0_i32_0 = arith.constant 0 : i32
    return %c0_i32, %arg0 : i32, i32
  }
}

</mosaic_0001>

<llo_original>
// kernel: tpu_custom_call.1
$region0: #{tpu_custom_call.1}
  #allocation0 [shape = 'u32[]', space=smem, size = 0x4, offset = 0x4, fixed_abs, tag = 'smem constant byte address 0x4 - core index']
  #allocation1 [shape = 'u32[72,128]{1,0:T(1,128)}', space=vmem, size = 0x9000, scoped, tag = 'internal scratch']
  %s0 = inlined_call_operand.hbm [shape: f32[200,512], index: 0, kind: input, shape index: {}]
  %s1 = inlined_call_operand.hbm [shape: f32[1,512], index: 1, kind: input, shape index: {}]
  %s2 = inlined_call_operand.hbm [shape: f32[1,512], index: 2, kind: input, shape index: {}]
  %s3 = inlined_call_operand.hbm [shape: f32[512,2048], index: 3, kind: input, shape index: {}]
  %s4 = inlined_call_operand.hbm [shape: f32[1,2048], index: 4, kind: input, shape index: {}]
  %s5 = inlined_call_operand.hbm [shape: f32[200,2048], index: 5, kind: output, shape index: {}]
  %s6 = sld [smem:[#allocation0]]
  $region73: #{tpu_custom_call.1} parent=0
    _
  %s8 = ssub.s32 1, %s6
  %s9 = scalar_select 0, %s8, %s6
  $region1: #{tpu_custom_call.1} parent=0
    #allocation2 [shape = 'u8[409600]{0}', space=vmem, size = 0x64000, scoped, tag = 'input window, operand 0, single buffered']
    #allocation3 [shape = 's32[2]{0}', space=sflag, size = 0x8, scoped, tag = 'scoped memory for tpu_custom_call.1']
    #allocation4 [shape = 's32[2]{0}', space=sflag, size = 0x8, scoped, tag = 'scoped memory for tpu_custom_call.1']
    #allocation5 [shape = 'u8[2048]{0}', space=vmem, size = 0x800, scoped, tag = 'input window, operand 1, single buffered']
    #allocation6 [shape = 's32[1]{0}', space=sflag, size = 0x4, scoped, tag = 'scoped memory for tpu_custom_call.1']
    #allocation7 [shape = 'u8[2048]{0}', space=vmem, size = 0x800, scoped, tag = 'input window, operand 2, single buffered']
    #allocation8 [shape = 'u8[2097152]{0}', space=vmem, size = 0x200000, scoped, tag = 'input window, operand 3']
    #allocation9 [shape = 's32[2]{0}', space=sflag, size = 0x8, scoped, tag = 'scoped memory for tpu_custom_call.1']
    #allocation10 [shape = 'u8[4096]{0}', space=vmem, size = 0x1000, scoped, tag = 'input window, operand 4']
    #allocation11 [shape = 'u8[819200]{0}', space=vmem, size = 0xc8000, scoped, tag = 'output window, operand 0']
    %10 = vsyncpa [#allocation3], 0
    %11 = vsyncpa [#allocation6], 0
    %12 = vsyncpa [#allocation9], 0
    %s13 = scalar_lea.sflag [#allocation9], 1
    %14 = vsyncpa %s13, 0
    %15 = vsyncpa [#allocation4], 0
    %s16 = scalar_lea.sflag [#allocation4], 1
    %17 = vsyncpa %s16, 0
    loop: start=0, step=1, limit=6
    $region2: #{tpu_custom_call.1} parent=1 // loop_pre_header
      _
    $region3: #{tpu_custom_call.1} parent=1 // loop_header
      %s19 = sphi 0, %s23
      %p20 = scmp.ge.s32.totalorder %s19, 6
      %s27 = sphi 0, %s27
      %s29 = sphi 0, %s27
      %s30 = sphi 0, %s29
      %s44 = sphi 0, %s30
      %s48 = sphi 0, %s48
      %s50 = sphi 0, %s48
      %s51 = sphi 0, %s50
      %s65 = sphi 0, %s51
      %s69 = sphi 0, %s69
      %s71 = sphi 0, %s69
      %s72 = sphi 0, %s71
      %s86 = sphi 0, %s72
      %s92 = sphi 0, %s94
      %s95 = sphi 0, %s92
      %s96 = sphi 0, %s95
      %s112 = sphi 0, %s96
      %s118 = sphi 0, %s120
      %s121 = sphi 0, %s118
      %s122 = sphi 0, %s121
      %s138 = sphi 0, %s122
      %s144 = sphi 0, %s146
      %s147 = sphi 0, %s144
      %s148 = sphi 0, %s147
      %s164 = sphi 0, %s148
    $region4: #{tpu_custom_call.1} parent=1 // loop_header_branch
      %22 = sbr.rel (%p20) target = $region8
    $region5: #{tpu_custom_call.1} parent=1 // loop_body
      %s24 = ssub.s32 %s19, 1
      %s25 = ssub.s32 %s19, 2
      %s26 = sadd.s32 %s19, 1
      %s28 = sadd.s32 %s27, 1
      %p31 = scmp.eq.s32.totalorder %s19, 3
      %p32 = scmp.ne.s32.totalorder %s27, %s29
      %p33 = scmp.eq.s32.totalorder %s19, 0
      %p34 = por %p32, %p33
      %p35 = scmp.ne.s32.totalorder %s27, %s29
      %p36 = scmp.eq.s32.totalorder %s24, 3
      %p37 = por %p35, %p36
      %p38 = scmp.ne.s32.totalorder %s29, %s30
      %p39 = scmp.eq.s32.totalorder %s24, 0
      %p40 = por %p38, %p39
      %p41 = scmp.ne.s32.totalorder %s29, %s30
      %p42 = scmp.eq.s32.totalorder %s25, 3
      %p43 = por %p41, %p42
      %p45 = scmp.ne.s32.totalorder %s30, %s44
      %p46 = scmp.eq.s32.totalorder %s25, 0
      %p47 = por %p45, %p46
      %s49 = sadd.s32 %s48, 1
      %p52 = scmp.eq.s32.totalorder %s19, 3
      %p53 = scmp.ne.s32.totalorder %s48, %s50
      %p54 = scmp.eq.s32.totalorder %s19, 0
      %p55 = por %p53, %p54
      %p56 = scmp.ne.s32.totalorder %s48, %s50
      %p57 = scmp.eq.s32.totalorder %s24, 3
      %p58 = por %p56, %p57
      %p59 = scmp.ne.s32.totalorder %s50, %s51
      %p60 = scmp.eq.s32.totalorder %s24, 0
      %p61 = por %p59, %p60
      %p62 = scmp.ne.s32.totalorder %s50, %s51
      %p63 = scmp.eq.s32.totalorder %s25, 3
      %p64 = por %p62, %p63
      %p66 = scmp.ne.s32.totalorder %s51, %s65
      %p67 = scmp.eq.s32.totalorder %s25, 0
      %p68 = por %p66, %p67
      %s70 = sadd.s32 %s69, 1
      %p73 = scmp.eq.s32.totalorder %s19, 3
      %p74 = scmp.ne.s32.totalorder %s69, %s71
      %p75 = scmp.eq.s32.totalorder %s19, 0
      %p76 = por %p74, %p75
      %p77 = scmp.ne.s32.totalorder %s69, %s71
      %p78 = scmp.eq.s32.totalorder %s24, 3
      %p79 = por %p77, %p78
      %p80 = scmp.ne.s32.totalorder %s71, %s72
      %p81 = scmp.eq.s32.totalorder %s24, 0
      %p82 = por %p80, %p81
      %p83 = scmp.ne.s32.totalorder %s71, %s72
      %p84 = scmp.eq.s32.totalorder %s25, 3
      %p85 = por %p83, %p84
      %p87 = scmp.ne.s32.totalorder %s72, %s86
      %p88 = scmp.eq.s32.totalorder %s25, 0
      %p89 = por %p87, %p88
      %s90 = ssub.s32 %s19, %s26
      %p91 = scmp.eq.s32.totalorder %s90, 0
      %s93 = sadd.s32 %s92, 1
      %s94 = scalar_select %p91, %s92, %s93
      %p97 = pneg %p91
      %p98 = scmp.eq.s32.totalorder %s19, 3
      %p99 = por %p97, %p98
      %p100 = scmp.ne.s32.totalorder %s92, %s95
      %p101 = scmp.eq.s32.totalorder %s19, 0
      %p102 = por %p100, %p101
      %p103 = scmp.ne.s32.totalorder %s92, %s95
      %p104 = scmp.eq.s32.totalorder %s24, 3
      %p105 = por %p103, %p104
      %p106 = scmp.ne.s32.totalorder %s95, %s96
      %p107 = scmp.eq.s32.totalorder %s24, 0
      %p108 = por %p106, %p107
      %p109 = scmp.ne.s32.totalorder %s95, %s96
      %p110 = scmp.eq.s32.totalorder %s25, 3
      %p111 = por %p109, %p110
      %p113 = scmp.ne.s32.totalorder %s96, %s112
      %p114 = scmp.eq.s32.totalorder %s25, 0
      %p115 = por %p113, %p114
      %s116 = ssub.s32 %s19, %s26
      %p117 = scmp.eq.s32.totalorder %s116, 0
      %s119 = sadd.s32 %s118, 1
      %s120 = scalar_select %p117, %s118, %s119
      %p123 = pneg %p117
      %p124 = scmp.eq.s32.totalorder %s19, 3
      %p125 = por %p123, %p124
      %p126 = scmp.ne.s32.totalorder %s118, %s121
      %p127 = scmp.eq.s32.totalorder %s19, 0
      %p128 = por %p126, %p127
      %p129 = scmp.ne.s32.totalorder %s118, %s121
      %p130 = scmp.eq.s32.totalorder %s24, 3
      %p131 = por %p129, %p130
      %p132 = scmp.ne.s32.totalorder %s121, %s122
      %p133 = scmp.eq.s32.totalorder %s24, 0
      %p134 = por %p132, %p133
      %p135 = scmp.ne.s32.totalorder %s121, %s122
      %p136 = scmp.eq.s32.totalorder %s25, 3
      %p137 = por %p135, %p136
      %p139 = scmp.ne.s32.totalorder %s122, %s138
      %p140 = scmp.eq.s32.totalorder %s25, 0
      %p141 = por %p139, %p140
      %s142 = ssub.s32 %s19, %s26
      %p143 = scmp.eq.s32.totalorder %s142, 0
      %s145 = sadd.s32 %s144, 1
      %s146 = scalar_select %p143, %s144, %s145
      %p149 = pneg %p143
      %p150 = scmp.eq.s32.totalorder %s19, 3
      %p151 = por %p149, %p150
      %p152 = scmp.ne.s32.totalorder %s144, %s147
      %p153 = scmp.eq.s32.totalorder %s19, 0
      %p154 = por %p152, %p153
      %p155 = scmp.ne.s32.totalorder %s144, %s147
      %p156 = scmp.eq.s32.totalorder %s24, 3
      %p157 = por %p155, %p156
      %p158 = scmp.ne.s32.totalorder %s147, %s148
      %p159 = scmp.eq.s32.totalorder %s24, 0
      %p160 = por %p158, %p159
      %p161 = scmp.ne.s32.totalorder %s147, %s148
      %p162 = scmp.eq.s32.totalorder %s25, 3
      %p163 = por %p161, %p162
      %p165 = scmp.ne.s32.totalorder %s148, %s164
      %p166 = scmp.eq.s32.totalorder %s25, 0
      %p167 = por %p165, %p166
      %p168 = scmp.le.s32.totalorder 1, %s19
      %p169 = scmp.lt.s32.totalorder %s19, 5
      %p170 = pnand %p168, %p169
      %p171 = pneg %p170
      // Predicated region
      $region9: #{tpu_custom_call.1} parent=5 // pred_check
        _
      $region10: #{tpu_custom_call.1} parent=5 // pred_check_branch
        %173 = sbr.rel (%p170) target = $region12
      $region11: #{tpu_custom_call.1} parent=5 // pred_region
        %s174 = ssub.s32 %s19, 1
        // Predicated region
        $region13: #{tpu_custom_call.1} parent=11 // pred_check
          %p175 = pneg %p40
        $region14: #{tpu_custom_call.1} parent=11 // pred_check_branch
          %177 = sbr.rel (%p175) target = $region16
        $region15: #{tpu_custom_call.1} parent=11 // pred_region
          %179 = vsyncadd [#allocation3], 0
          %s180 = sshll.u32 %s0, 4
          %s181 = int_to_ptr.hbm [resolvable:$true] %s180
          %s182 = sshll.u32 [#allocation2], 4
          %s183 = int_to_ptr.vmem [resolvable:$true] %s182
          %188 = dma.hbm_to_vmem [thread:$0]  %s181, 12800, %s183, [#allocation3], 512, 512, 32
        $region16: #{tpu_custom_call.1} parent=11 // pred_fallthru
          _
        // Predicated region
        $region17: #{tpu_custom_call.1} parent=11 // pred_check
          %p189 = pneg %p61
        $region18: #{tpu_custom_call.1} parent=11 // pred_check_branch
          %191 = sbr.rel (%p189) target = $region20
        $region19: #{tpu_custom_call.1} parent=11 // pred_region
          %193 = vsyncadd [#allocation6], 0
          %s195 = sshll.u32 %s1, 4
          %s196 = int_to_ptr.hbm [resolvable:$true] %s195
          %s197 = sshll.u32 [#allocation5], 4
          %s198 = int_to_ptr.vmem [resolvable:$true] %s197
          %200 = dma.hbm_to_vmem [thread:$0]  %s196, 64, %s198, [#allocation6]
        $region20: #{tpu_custom_call.1} parent=11 // pred_fallthru
          _
        // Predicated region
        $region21: #{tpu_custom_call.1} parent=11 // pred_check
          %p201 = pneg %p82
        $region22: #{tpu_custom_call.1} parent=11 // pred_check_branch
          %203 = sbr.rel (%p201) target = $region24
        $region23: #{tpu_custom_call.1} parent=11 // pred_region
          %205 = vsyncadd [#allocation6], 0
          %s207 = sshll.u32 %s2, 4
          %s208 = int_to_ptr.hbm [resolvable:$true] %s207
          %s209 = sshll.u32 [#allocation7], 4
          %s210 = int_to_ptr.vmem [resolvable:$true] %s209
          %212 = dma.hbm_to_vmem [thread:$0]  %s208, 64, %s210, [#allocation6]
        $region24: #{tpu_custom_call.1} parent=11 // pred_fallthru
          _
      $region12: #{tpu_custom_call.1} parent=5 // pred_fallthru
        _
      %p213 = scmp.lt.s32.totalorder %s19, 4
      // Predicated region
      $region25: #{tpu_custom_call.1} parent=5 // pred_check
        %p214 = pneg %p213
      $region26: #{tpu_custom_call.1} parent=5 // pred_check_branch
        %216 = sbr.rel (%p214) target = $region28
      $region27: #{tpu_custom_call.1} parent=5 // pred_region
        // Predicated region
        $region29: #{tpu_custom_call.1} parent=27 // pred_check
          %p217 = pneg %p102
        $region30: #{tpu_custom_call.1} parent=27 // pred_check_branch
          %219 = sbr.rel (%p217) target = $region32
        $region31: #{tpu_custom_call.1} parent=27 // pred_region
          %s220 = sand.u32 %s19, 1
          %s221 = scalar_lea.sflag [#allocation9], %s220
          %s222 = sand.u32 %s92, 1
          %s223 = smul.addr %s222, 2048
          %s224 = scalar_lea.vmem [#allocation8], %s223
          %s225 = smul.u32 4, %s19
          %227 = vsyncadd %s221, 0
          %s228 = smul.addr %s225, 8
          %s229 = scalar_lea.hbm %s3, %s228
          %s230 = sshll.u32 %s229, 4
          %s231 = int_to_ptr.hbm [resolvable:$true] %s230
          %s232 = sshll.u32 %s224, 4
          %s233 = int_to_ptr.vmem [resolvable:$true] %s232
          %238 = dma.hbm_to_vmem [thread:$0]  %s231, 32768, %s233, %s221, 2048, 512, 32
        $region32: #{tpu_custom_call.1} parent=27 // pred_fallthru
          _
        // Predicated region
        $region33: #{tpu_custom_call.1} parent=27 // pred_check
          %p239 = pneg %p128
        $region34: #{tpu_custom_call.1} parent=27 // pred_check_branch
          %241 = sbr.rel (%p239) target = $region36
        $region35: #{tpu_custom_call.1} parent=27 // pred_region
          %s242 = sand.u32 %s19, 1
          %s243 = scalar_lea.sflag [#allocation9], %s242
          %s244 = sand.u32 %s118, 1
          %s245 = smul.addr %s244, 4
          %s246 = scalar_lea.vmem [#allocation10], %s245
          %s247 = smul.u32 4, %s19
          %249 = vsyncadd %s243, 0
          %s250 = scalar_lea.hbm %s4, %s247
          %s252 = sshll.u32 %s250, 4
          %s253 = int_to_ptr.hbm [resolvable:$true] %s252
          %s254 = sshll.u32 %s246, 4
          %s255 = int_to_ptr.vmem [resolvable:$true] %s254
          %257 = dma.hbm_to_vmem [thread:$0]  %s253, 64, %s255, %s243
        $region36: #{tpu_custom_call.1} parent=27 // pred_fallthru
          _
      $region28: #{tpu_custom_call.1} parent=5 // pred_fallthru
        _
      %p258 = scmp.le.s32.totalorder 1, %s19
      %p259 = scmp.lt.s32.totalorder %s19, 5
      %p260 = pnand %p258, %p259
      %p261 = pneg %p260
      // Predicated region
      $region37: #{tpu_custom_call.1} parent=5 // pred_check
        _
      $region38: #{tpu_custom_call.1} parent=5 // pred_check_branch
        %263 = sbr.rel (%p260) target = $region40
      $region39: #{tpu_custom_call.1} parent=5 // pred_region
        %s264 = ssub.s32 %s19, 1
        // Predicated region
        $region41: #{tpu_custom_call.1} parent=39 // pred_check
          %p265 = pneg %p40
        $region42: #{tpu_custom_call.1} parent=39 // pred_check_branch
          %267 = sbr.rel (%p265) target = $region44
        $region43: #{tpu_custom_call.1} parent=39 // pred_region
          %269 = dma.done [#allocation3], 12800
        $region44: #{tpu_custom_call.1} parent=39 // pred_fallthru
          _
        // Predicated region
        $region45: #{tpu_custom_call.1} parent=39 // pred_check
          %p270 = pneg %p61
        $region46: #{tpu_custom_call.1} parent=39 // pred_check_branch
          %272 = sbr.rel (%p270) target = $region48
        $region47: #{tpu_custom_call.1} parent=39 // pred_region
          %274 = dma.done [#allocation6], 64
        $region48: #{tpu_custom_call.1} parent=39 // pred_fallthru
          _
        // Predicated region
        $region49: #{tpu_custom_call.1} parent=39 // pred_check
          %p275 = pneg %p82
        $region50: #{tpu_custom_call.1} parent=39 // pred_check_branch
          %277 = sbr.rel (%p275) target = $region52
        $region51: #{tpu_custom_call.1} parent=39 // pred_region
          %279 = dma.done [#allocation6], 64
        $region52: #{tpu_custom_call.1} parent=39 // pred_fallthru
          _
        %s280 = sand.u32 %s24, 1
        %s281 = scalar_lea.sflag [#allocation9], %s280
        %s282 = sand.u32 %s95, 1
        %s283 = smul.addr %s282, 2048
        %s284 = scalar_lea.vmem [#allocation8], %s283
        // Predicated region
        $region53: #{tpu_custom_call.1} parent=39 // pred_check
          %p285 = pneg %p108
        $region54: #{tpu_custom_call.1} parent=39 // pred_check_branch
          %287 = sbr.rel (%p285) target = $region56
        $region55: #{tpu_custom_call.1} parent=39 // pred_region
          %289 = dma.done %s281, 32768
        $region56: #{tpu_custom_call.1} parent=39 // pred_fallthru
          _
        %s290 = sand.u32 %s24, 1
        %s291 = scalar_lea.sflag [#allocation9], %s290
        %s292 = sand.u32 %s121, 1
        %s293 = smul.addr %s292, 4
        %s294 = scalar_lea.vmem [#allocation10], %s293
        // Predicated region
        $region57: #{tpu_custom_call.1} parent=39 // pred_check
          %p295 = pneg %p134
        $region58: #{tpu_custom_call.1} parent=39 // pred_check_branch
          %297 = sbr.rel (%p295) target = $region60
        $region59: #{tpu_custom_call.1} parent=39 // pred_region
          %299 = dma.done %s291, 64
        $region60: #{tpu_custom_call.1} parent=39 // pred_fallthru
          _
        %p300 = pneg %p40
        %p301 = pneg %p37
        %p302 = pneg %p61
        %p303 = pneg %p58
        %p304 = pneg %p82
        %p305 = pneg %p79
        %s306 = sand.u32 %s24, 1
        %s307 = scalar_lea.sflag [#allocation9], %s306
        %s308 = sand.u32 %s95, 1
        %s309 = smul.addr %s308, 2048
        %s310 = scalar_lea.vmem [#allocation8], %s309
        %p311 = pneg %p108
        %p312 = pneg %p105
        %s313 = sand.u32 %s24, 1
        %s314 = scalar_lea.sflag [#allocation9], %s313
        %s315 = sand.u32 %s121, 1
        %s316 = smul.addr %s315, 4
        %s317 = scalar_lea.vmem [#allocation10], %s316
        %p318 = pneg %p134
        %p319 = pneg %p131
        %p320 = pneg %p160
        %p321 = pneg %p157
        %s322 = sand.u32 %s147, 1
        %s323 = scalar_lea.sflag [#allocation4], %s322
        %s324 = sand.u32 %s147, 1
        %s325 = smul.addr %s324, 800
        %s326 = scalar_lea.vmem [#allocation11], %s325
        %s327 = smul.u32 4, %s24
        %s328 = smul.u32 4, %s24
        %s329 = smul.u32 4, %s24
        %v330 = vld [vmem:[#allocation2] sm:$0xff]
        %v331 = vld [vmem:[#allocation2 + $0x8] sm:$0xff]
        %v332 = vld [vmem:[#allocation2 + $0x10] sm:$0xff]
        %v333 = vld [vmem:[#allocation2 + $0x18] sm:$0xff]
        %v334 = vld [vmem:[#allocation2 + $0x20] sm:$0xff]
        %v335 = vld [vmem:[#allocation2 + $0x28] sm:$0xff]
        %v336 = vld [vmem:[#allocation2 + $0x30] sm:$0xff]
        %v337 = vld [vmem:[#allocation2 + $0x38] sm:$0xff]
        %v338 = vld [vmem:[#allocation2 + $0x40] sm:$0xff]
        %v339 = vld [vmem:[#allocation2 + $0x48] sm:$0xff]
        %v340 = vld [vmem:[#allocation2 + $0x50] sm:$0xff]
        %v341 = vld [vmem:[#allocation2 + $0x58] sm:$0xff]
        %v342 = vld [vmem:[#allocation2 + $0x60] sm:$0xff]
        %v343 = vld [vmem:[#allocation2 + $0x68] sm:$0xff]
        %v344 = vld [vmem:[#allocation2 + $0x70] sm:$0xff]
        %v345 = vld [vmem:[#allocation2 + $0x78] sm:$0xff]
        %v346 = vld [vmem:[#allocation2 + $0x80] sm:$0xff]
        %v347 = vld [vmem:[#allocation2 + $0x88] sm:$0xff]
        %v348 = vld [vmem:[#allocation2 + $0x90] sm:$0xff]
        %v349 = vld [vmem:[#allocation2 + $0x98] sm:$0xff]
        %v350 = vld [vmem:[#allocation2 + $0xa0] sm:$0xff]
        %v351 = vld [vmem:[#allocation2 + $0xa8] sm:$0xff]
        %v352 = vld [vmem:[#allocation2 + $0xb0] sm:$0xff]
        %v353 = vld [vmem:[#allocation2 + $0xb8] sm:$0xff]
        %v354 = vld [vmem:[#allocation2 + $0xc0] sm:$0xff]
        %v355 = vld [vmem:[#allocation2 + $0xc8] sm:$0xff]
        %v356 = vld [vmem:[#allocation2 + $0xd0] sm:$0xff]
        %v357 = vld [vmem:[#allocation2 + $0xd8] sm:$0xff]
        %v358 = vld [vmem:[#allocation2 + $0xe0] sm:$0xff]
        %v359 = vld [vmem:[#allocation2 + $0xe8] sm:$0xff]
        %v360 = vld [vmem:[#allocation2 + $0xf0] sm:$0xff]
        %v361 = vld [vmem:[#allocation2 + $0xf8] sm:$0xff]
        %v362 = vld [vmem:[#allocation2 + $0x100] sm:$0xff]
        %v363 = vld [vmem:[#allocation2 + $0x108] sm:$0xff]
        %v364 = vld [vmem:[#allocation2 + $0x110] sm:$0xff]
        %v365 = vld [vmem:[#allocation2 + $0x118] sm:$0xff]
        %v366 = vld [vmem:[#allocation2 + $0x120] sm:$0xff]
        %v367 = vld [vmem:[#allocation2 + $0x128] sm:$0xff]
        %v368 = vld [vmem:[#allocation2 + $0x130] sm:$0xff]
        %v369 = vld [vmem:[#allocation2 + $0x138] sm:$0xff]
        %v370 = vld [vmem:[#allocation2 + $0x140] sm:$0xff]
        %v371 = vld [vmem:[#allocation2 + $0x148] sm:$0xff]
        %v372 = vld [vmem:[#allocation2 + $0x150] sm:$0xff]
        %v373 = vld [vmem:[#allocation2 + $0x158] sm:$0xff]
        %v374 = vld [vmem:[#allocation2 + $0x160] sm:$0xff]
        %v375 = vld [vmem:[#allocation2 + $0x168] sm:$0xff]
        %v376 = vld [vmem:[#allocation2 + $0x170] sm:$0xff]
        %v377 = vld [vmem:[#allocation2 + $0x178] sm:$0xff]
        %v378 = vld [vmem:[#allocation2 + $0x180] sm:$0xff]
        %v379 = vld [vmem:[#allocation2 + $0x188] sm:$0xff]
        %v380 = vld [vmem:[#allocation2 + $0x190] sm:$0xff]
        %v381 = vld [vmem:[#allocation2 + $0x198] sm:$0xff]
        %v382 = vld [vmem:[#allocation2 + $0x1a0] sm:$0xff]
        %v383 = vld [vmem:[#allocation2 + $0x1a8] sm:$0xff]
        %v384 = vld [vmem:[#allocation2 + $0x1b0] sm:$0xff]
        %v385 = vld [vmem:[#allocation2 + $0x1b8] sm:$0xff]
        %v386 = vld [vmem:[#allocation2 + $0x1c0] sm:$0xff]
        %v387 = vld [vmem:[#allocation2 + $0x1c8] sm:$0xff]
        %v388 = vld [vmem:[#allocation2 + $0x1d0] sm:$0xff]
        %v389 = vld [vmem:[#allocation2 + $0x1d8] sm:$0xff]
        %v390 = vld [vmem:[#allocation2 + $0x1e0] sm:$0xff]
        %v391 = vld [vmem:[#allocation2 + $0x1e8] sm:$0xff]
        %v392 = vld [vmem:[#allocation2 + $0x1f0] sm:$0xff]
        %v393 = vld [vmem:[#allocation2 + $0x1f8] sm:$0xff]
        %v394 = vld [vmem:[#allocation2 + $0x200] sm:$0xff]
        %v395 = vld [vmem:[#allocation2 + $0x208] sm:$0xff]
        %v396 = vld [vmem:[#allocation2 + $0x210] sm:$0xff]
        %v397 = vld [vmem:[#allocation2 + $0x218] sm:$0xff]
        %v398 = vld [vmem:[#allocation2 + $0x220] sm:$0xff]
        %v399 = vld [vmem:[#allocation2 + $0x228] sm:$0xff]
        %v400 = vld [vmem:[#allocation2 + $0x230] sm:$0xff]
        %v401 = vld [vmem:[#allocation2 + $0x238] sm:$0xff]
        %v402 = vld [vmem:[#allocation2 + $0x240] sm:$0xff]
        %v403 = vld [vmem:[#allocation2 + $0x248] sm:$0xff]
        %v404 = vld [vmem:[#allocation2 + $0x250] sm:$0xff]
        %v405 = vld [vmem:[#allocation2 + $0x258] sm:$0xff]
        %v406 = vld [vmem:[#allocation2 + $0x260] sm:$0xff]
        %v407 = vld [vmem:[#allocation2 + $0x268] sm:$0xff]
        %v408 = vld [vmem:[#allocation2 + $0x270] sm:$0xff]
        %v409 = vld [vmem:[#allocation2 + $0x278] sm:$0xff]
        %v410 = vld [vmem:[#allocation2 + $0x280] sm:$0xff]
        %v411 = vld [vmem:[#allocation2 + $0x288] sm:$0xff]
        %v412 = vld [vmem:[#allocation2 + $0x290] sm:$0xff]
        %v413 = vld [vmem:[#allocation2 + $0x298] sm:$0xff]
        %v414 = vld [vmem:[#allocation2 + $0x2a0] sm:$0xff]
        %v415 = vld [vmem:[#allocation2 + $0x2a8] sm:$0xff]
        %v416 = vld [vmem:[#allocation2 + $0x2b0] sm:$0xff]
        %v417 = vld [vmem:[#allocation2 + $0x2b8] sm:$0xff]
        %v418 = vld [vmem:[#allocation2 + $0x2c0] sm:$0xff]
        %v419 = vld [vmem:[#allocation2 + $0x2c8] sm:$0xff]
        %v420 = vld [vmem:[#allocation2 + $0x2d0] sm:$0xff]
        %v421 = vld [vmem:[#allocation2 + $0x2d8] sm:$0xff]
        %v422 = vld [vmem:[#allocation2 + $0x2e0] sm:$0xff]
        %v423 = vld [vmem:[#allocation2 + $0x2e8] sm:$0xff]
        %v424 = vld [vmem:[#allocation2 + $0x2f0] sm:$0xff]
        %v425 = vld [vmem:[#allocation2 + $0x2f8] sm:$0xff]
        %v426 = vld [vmem:[#allocation2 + $0x300] sm:$0xff]
        %v427 = vld [vmem:[#allocation2 + $0x308] sm:$0xff]
        %v428 = vld [vmem:[#allocation2 + $0x310] sm:$0xff]
        %v429 = vld [vmem:[#allocation2 + $0x318] sm:$0xff]
        %v430 = vadd.f32 %v330, %v331
        %v431 = vadd.f32 %v430, %v332
        %v432 = vadd.f32 %v431, %v333
        %433 = vadd.xlane.f32.xlu0 %v432
        %v434 = vpop.xlane.xlu0 %433
        %v435 = vadd.f32 %v334, %v335
        %v436 = vadd.f32 %v435, %v336
        %v437 = vadd.f32 %v436, %v337
        %438 = vadd.xlane.f32.xlu0 %v437
        %v439 = vpop.xlane.xlu0 %438
        %v440 = vadd.f32 %v338, %v339
        %v441 = vadd.f32 %v440, %v340
        %v442 = vadd.f32 %v441, %v341
        %443 = vadd.xlane.f32.xlu0 %v442
        %v444 = vpop.xlane.xlu0 %443
        %v445 = vadd.f32 %v342, %v343
        %v446 = vadd.f32 %v445, %v344
        %v447 = vadd.f32 %v446, %v345
        %448 = vadd.xlane.f32.xlu0 %v447
        %v449 = vpop.xlane.xlu0 %448
        %v450 = vadd.f32 %v346, %v347
        %v451 = vadd.f32 %v450, %v348
        %v452 = vadd.f32 %v451, %v349
        %453 = vadd.xlane.f32.xlu0 %v452
        %v454 = vpop.xlane.xlu0 %453
        %v455 = vadd.f32 %v350, %v351
        %v456 = vadd.f32 %v455, %v352
        %v457 = vadd.f32 %v456, %v353
        %458 = vadd.xlane.f32.xlu0 %v457
        %v459 = vpop.xlane.xlu0 %458
        %v460 = vadd.f32 %v354, %v355
        %v461 = vadd.f32 %v460, %v356
        %v462 = vadd.f32 %v461, %v357
        %463 = vadd.xlane.f32.xlu0 %v462
        %v464 = vpop.xlane.xlu0 %463
        %v465 = vadd.f32 %v358, %v359
        %v466 = vadd.f32 %v465, %v360
        %v467 = vadd.f32 %v466, %v361
        %468 = vadd.xlane.f32.xlu0 %v467
        %v469 = vpop.xlane.xlu0 %468
        %v470 = vadd.f32 %v362, %v363
        %v471 = vadd.f32 %v470, %v364
        %v472 = vadd.f32 %v471, %v365
        %473 = vadd.xlane.f32.xlu0 %v472
        %v474 = vpop.xlane.xlu0 %473
        %v475 = vadd.f32 %v366, %v367
        %v476 = vadd.f32 %v475, %v368
        %v477 = vadd.f32 %v476, %v369
        %478 = vadd.xlane.f32.xlu0 %v477
        %v479 = vpop.xlane.xlu0 %478
        %v480 = vadd.f32 %v370, %v371
        %v481 = vadd.f32 %v480, %v372
        %v482 = vadd.f32 %v481, %v373
        %483 = vadd.xlane.f32.xlu0 %v482
        %v484 = vpop.xlane.xlu0 %483
        %v485 = vadd.f32 %v374, %v375
        %v486 = vadd.f32 %v485, %v376
        %v487 = vadd.f32 %v486, %v377
        %488 = vadd.xlane.f32.xlu0 %v487
        %v489 = vpop.xlane.xlu0 %488
        %v490 = vadd.f32 %v378, %v379
        %v491 = vadd.f32 %v490, %v380
        %v492 = vadd.f32 %v491, %v381
        %493 = vadd.xlane.f32.xlu0 %v492
        %v494 = vpop.xlane.xlu0 %493
        %v495 = vadd.f32 %v382, %v383
        %v496 = vadd.f32 %v495, %v384
        %v497 = vadd.f32 %v496, %v385
        %498 = vadd.xlane.f32.xlu0 %v497
        %v499 = vpop.xlane.xlu0 %498
        %v500 = vadd.f32 %v386, %v387
        %v501 = vadd.f32 %v500, %v388
        %v502 = vadd.f32 %v501, %v389
        %503 = vadd.xlane.f32.xlu0 %v502
        %v504 = vpop.xlane.xlu0 %503
        %v505 = vadd.f32 %v390, %v391
        %v506 = vadd.f32 %v505, %v392
        %v507 = vadd.f32 %v506, %v393
        %508 = vadd.xlane.f32.xlu0 %v507
        %v509 = vpop.xlane.xlu0 %508
        %v510 = vadd.f32 %v394, %v395
        %v511 = vadd.f32 %v510, %v396
        %v512 = vadd.f32 %v511, %v397
        %513 = vadd.xlane.f32.xlu0 %v512
        %v514 = vpop.xlane.xlu0 %513
        %v515 = vadd.f32 %v398, %v399
        %v516 = vadd.f32 %v515, %v400
        %v517 = vadd.f32 %v516, %v401
        %518 = vadd.xlane.f32.xlu0 %v517
        %v519 = vpop.xlane.xlu0 %518
        %v520 = vadd.f32 %v402, %v403
        %v521 = vadd.f32 %v520, %v404
        %v522 = vadd.f32 %v521, %v405
        %523 = vadd.xlane.f32.xlu0 %v522
        %v524 = vpop.xlane.xlu0 %523
        %v525 = vadd.f32 %v406, %v407
        %v526 = vadd.f32 %v525, %v408
        %v527 = vadd.f32 %v526, %v409
        %528 = vadd.xlane.f32.xlu0 %v527
        %v529 = vpop.xlane.xlu0 %528
        %v530 = vadd.f32 %v410, %v411
        %v531 = vadd.f32 %v530, %v412
        %v532 = vadd.f32 %v531, %v413
        %533 = vadd.xlane.f32.xlu0 %v532
        %v534 = vpop.xlane.xlu0 %533
        %v535 = vadd.f32 %v414, %v415
        %v536 = vadd.f32 %v535, %v416
        %v537 = vadd.f32 %v536, %v417
        %538 = vadd.xlane.f32.xlu0 %v537
        %v539 = vpop.xlane.xlu0 %538
        %v540 = vadd.f32 %v418, %v419
        %v541 = vadd.f32 %v540, %v420
        %v542 = vadd.f32 %v541, %v421
        %543 = vadd.xlane.f32.xlu0 %v542
        %v544 = vpop.xlane.xlu0 %543
        %v545 = vadd.f32 %v422, %v423
        %v546 = vadd.f32 %v545, %v424
        %v547 = vadd.f32 %v546, %v425
        %548 = vadd.xlane.f32.xlu0 %v547
        %v549 = vpop.xlane.xlu0 %548
        %v550 = vadd.f32 %v426, %v427
        %v551 = vadd.f32 %v550, %v428
        %v552 = vadd.f32 %v551, %v429
        %553 = vadd.xlane.f32.xlu0 %v552
        %v554 = vpop.xlane.xlu0 %553
        %v555 = vrcp.pop 512.0
        %v556 = vmul.f32 512.0, %v555
        %v557 = vsub.f32 1.0, %v556
        %v558 = vmul.f32 %v555, %v557
        %v559 = vadd.f32 %v555, %v558
        %vm560 = vweird.f32 %v555
        %v561 = vsel %vm560, %v555, %v559
        %v562 = vmul.f32 %v434, %v561
        %v563 = vmul.f32 %v439, %v561
        %v564 = vmul.f32 %v444, %v561
        %v565 = vmul.f32 %v449, %v561
        %v566 = vmul.f32 %v454, %v561
        %v567 = vmul.f32 %v459, %v561
        %v568 = vmul.f32 %v464, %v561
        %v569 = vmul.f32 %v469, %v561
        %v570 = vmul.f32 %v474, %v561
        %v571 = vmul.f32 %v479, %v561
        %v572 = vmul.f32 %v484, %v561
        %v573 = vmul.f32 %v489, %v561
        %v574 = vmul.f32 %v494, %v561
        %v575 = vmul.f32 %v499, %v561
        %v576 = vmul.f32 %v504, %v561
        %v577 = vmul.f32 %v509, %v561
        %v578 = vmul.f32 %v514, %v561
        %v579 = vmul.f32 %v519, %v561
        %v580 = vmul.f32 %v524, %v561
        %v581 = vmul.f32 %v529, %v561
        %v582 = vmul.f32 %v534, %v561
        %v583 = vmul.f32 %v539, %v561
        %v584 = vmul.f32 %v544, %v561
        %v585 = vmul.f32 %v549, %v561
        %v586 = vmul.f32 %v554, %v561
        %v587 = vsub.f32 %v330, %v562
        %v588 = vsub.f32 %v331, %v562
        %v589 = vsub.f32 %v332, %v562
        %v590 = vsub.f32 %v333, %v562
        %v591 = vsub.f32 %v334, %v563
        %v592 = vsub.f32 %v335, %v563
        %v593 = vsub.f32 %v336, %v563
        %v594 = vsub.f32 %v337, %v563
        %v595 = vsub.f32 %v338, %v564
        %v596 = vsub.f32 %v339, %v564
        %v597 = vsub.f32 %v340, %v564
        %v598 = vsub.f32 %v341, %v564
        %v599 = vsub.f32 %v342, %v565
        %v600 = vsub.f32 %v343, %v565
        %v601 = vsub.f32 %v344, %v565
        %v602 = vsub.f32 %v345, %v565
        %v603 = vsub.f32 %v346, %v566
        %v604 = vsub.f32 %v347, %v566
        %v605 = vsub.f32 %v348, %v566
        %v606 = vsub.f32 %v349, %v566
        %v607 = vsub.f32 %v350, %v567
        %v608 = vsub.f32 %v351, %v567
        %v609 = vsub.f32 %v352, %v567
        %v610 = vsub.f32 %v353, %v567
        %v611 = vsub.f32 %v354, %v568
        %v612 = vsub.f32 %v355, %v568
        %v613 = vsub.f32 %v356, %v568
        %v614 = vsub.f32 %v357, %v568
        %v615 = vsub.f32 %v358, %v569
        %v616 = vsub.f32 %v359, %v569
        %v617 = vsub.f32 %v360, %v569
        %v618 = vsub.f32 %v361, %v569
        %v619 = vsub.f32 %v362, %v570
        %v620 = vsub.f32 %v363, %v570
        %v621 = vsub.f32 %v364, %v570
        %v622 = vsub.f32 %v365, %v570
        %v623 = vsub.f32 %v366, %v571
        %v624 = vsub.f32 %v367, %v571
        %v625 = vsub.f32 %v368, %v571
        %v626 = vsub.f32 %v369, %v571
        %v627 = vsub.f32 %v370, %v572
        %v628 = vsub.f32 %v371, %v572
        %v629 = vsub.f32 %v372, %v572
        %v630 = vsub.f32 %v373, %v572
        %v631 = vsub.f32 %v374, %v573
        %v632 = vsub.f32 %v375, %v573
        %v633 = vsub.f32 %v376, %v573
        %v634 = vsub.f32 %v377, %v573
        %v635 = vsub.f32 %v378, %v574
        %v636 = vsub.f32 %v379, %v574
        %v637 = vsub.f32 %v380, %v574
        %v638 = vsub.f32 %v381, %v574
        %v639 = vsub.f32 %v382, %v575
        %v640 = vsub.f32 %v383, %v575
        %v641 = vsub.f32 %v384, %v575
        %v642 = vsub.f32 %v385, %v575
        %v643 = vsub.f32 %v386, %v576
        %v644 = vsub.f32 %v387, %v576
        %v645 = vsub.f32 %v388, %v576
        %v646 = vsub.f32 %v389, %v576
        %v647 = vsub.f32 %v390, %v577
        %v648 = vsub.f32 %v391, %v577
        %v649 = vsub.f32 %v392, %v577
        %v650 = vsub.f32 %v393, %v577
        %v651 = vsub.f32 %v394, %v578
        %v652 = vsub.f32 %v395, %v578
        %v653 = vsub.f32 %v396, %v578
        %v654 = vsub.f32 %v397, %v578
        %v655 = vsub.f32 %v398, %v579
        %v656 = vsub.f32 %v399, %v579
        %v657 = vsub.f32 %v400, %v579
        %v658 = vsub.f32 %v401, %v579
        %v659 = vsub.f32 %v402, %v580
        %v660 = vsub.f32 %v403, %v580
        %v661 = vsub.f32 %v404, %v580
        %v662 = vsub.f32 %v405, %v580
        %v663 = vsub.f32 %v406, %v581
        %v664 = vsub.f32 %v407, %v581
        %v665 = vsub.f32 %v408, %v581
        %v666 = vsub.f32 %v409, %v581
        %v667 = vsub.f32 %v410, %v582
        %v668 = vsub.f32 %v411, %v582
        %v669 = vsub.f32 %v412, %v582
        %v670 = vsub.f32 %v413, %v582
        %v671 = vsub.f32 %v414, %v583
        %v672 = vsub.f32 %v415, %v583
        %v673 = vsub.f32 %v416, %v583
        %v674 = vsub.f32 %v417, %v583
        %v675 = vsub.f32 %v418, %v584
        %v676 = vsub.f32 %v419, %v584
        %v677 = vsub.f32 %v420, %v584
        %v678 = vsub.f32 %v421, %v584
        %v679 = vsub.f32 %v422, %v585
        %v680 = vsub.f32 %v423, %v585
        %v681 = vsub.f32 %v424, %v585
        %v682 = vsub.f32 %v425, %v585
        %v683 = vsub.f32 %v426, %v586
        %v684 = vsub.f32 %v427, %v586
        %v685 = vsub.f32 %v428, %v586
        %v686 = vsub.f32 %v429, %v586
        %v687 = vmul.f32 %v587, %v587
        %v688 = vmul.f32 %v588, %v588
        %v689 = vmul.f32 %v589, %v589
        %v690 = vmul.f32 %v590, %v590
        %v691 = vmul.f32 %v591, %v591
        %v692 = vmul.f32 %v592, %v592
        %v693 = vmul.f32 %v593, %v593
        %v694 = vmul.f32 %v594, %v594
        %v695 = vmul.f32 %v595, %v595
        %v696 = vmul.f32 %v596, %v596
        %v697 = vmul.f32 %v597, %v597
        %v698 = vmul.f32 %v598, %v598
        %v699 = vmul.f32 %v599, %v599
        %v700 = vmul.f32 %v600, %v600
        %v701 = vmul.f32 %v601, %v601
        %v702 = vmul.f32 %v602, %v602
        %v703 = vmul.f32 %v603, %v603
        %v704 = vmul.f32 %v604, %v604
        %v705 = vmul.f32 %v605, %v605
        %v706 = vmul.f32 %v606, %v606
        %v707 = vmul.f32 %v607, %v607
        %v708 = vmul.f32 %v608, %v608
        %v709 = vmul.f32 %v609, %v609
        %v710 = vmul.f32 %v610, %v610
        %v711 = vmul.f32 %v611, %v611
        %v712 = vmul.f32 %v612, %v612
        %v713 = vmul.f32 %v613, %v613
        %v714 = vmul.f32 %v614, %v614
        %v715 = vmul.f32 %v615, %v615
        %v716 = vmul.f32 %v616, %v616
        %v717 = vmul.f32 %v617, %v617
        %v718 = vmul.f32 %v618, %v618
        %v719 = vmul.f32 %v619, %v619
        %v720 = vmul.f32 %v620, %v620
        %v721 = vmul.f32 %v621, %v621
        %v722 = vmul.f32 %v622, %v622
        %v723 = vmul.f32 %v623, %v623
        %v724 = vmul.f32 %v624, %v624
        %v725 = vmul.f32 %v625, %v625
        %v726 = vmul.f32 %v626, %v626
        %v727 = vmul.f32 %v627, %v627
        %v728 = vmul.f32 %v628, %v628
        %v729 = vmul.f32 %v629, %v629
        %v730 = vmul.f32 %v630, %v630
        %v731 = vmul.f32 %v631, %v631
        %v732 = vmul.f32 %v632, %v632
        %v733 = vmul.f32 %v633, %v633
        %v734 = vmul.f32 %v634, %v634
        %v735 = vmul.f32 %v635, %v635
        %v736 = vmul.f32 %v636, %v636
        %v737 = vmul.f32 %v637, %v637
        %v738 = vmul.f32 %v638, %v638
        %v739 = vmul.f32 %v639, %v639
        %v740 = vmul.f32 %v640, %v640
        %v741 = vmul.f32 %v641, %v641
        %v742 = vmul.f32 %v642, %v642
        %v743 = vmul.f32 %v643, %v643
        %v744 = vmul.f32 %v644, %v644
        %v745 = vmul.f32 %v645, %v645
        %v746 = vmul.f32 %v646, %v646
        %v747 = vmul.f32 %v647, %v647
        %v748 = vmul.f32 %v648, %v648
        %v749 = vmul.f32 %v649, %v649
        %v750 = vmul.f32 %v650, %v650
        %v751 = vmul.f32 %v651, %v651
        %v752 = vmul.f32 %v652, %v652
        %v753 = vmul.f32 %v653, %v653
        %v754 = vmul.f32 %v654, %v654
        %v755 = vmul.f32 %v655, %v655
        %v756 = vmul.f32 %v656, %v656
        %v757 = vmul.f32 %v657, %v657
        %v758 = vmul.f32 %v658, %v658
        %v759 = vmul.f32 %v659, %v659
        %v760 = vmul.f32 %v660, %v660
        %v761 = vmul.f32 %v661, %v661
        %v762 = vmul.f32 %v662, %v662
        %v763 = vmul.f32 %v663, %v663
        %v764 = vmul.f32 %v664, %v664
        %v765 = vmul.f32 %v665, %v665
        %v766 = vmul.f32 %v666, %v666
        %v767 = vmul.f32 %v667, %v667
        %v768 = vmul.f32 %v668, %v668
        %v769 = vmul.f32 %v669, %v669
        %v770 = vmul.f32 %v670, %v670
        %v771 = vmul.f32 %v671, %v671
        %v772 = vmul.f32 %v672, %v672
        %v773 = vmul.f32 %v673, %v673
        %v774 = vmul.f32 %v674, %v674
        %v775 = vmul.f32 %v675, %v675
        %v776 = vmul.f32 %v676, %v676
        %v777 = vmul.f32 %v677, %v677
        %v778 = vmul.f32 %v678, %v678
        %v779 = vmul.f32 %v679, %v679
        %v780 = vmul.f32 %v680, %v680
        %v781 = vmul.f32 %v681, %v681
        %v782 = vmul.f32 %v682, %v682
        %v783 = vmul.f32 %v683, %v683
        %v784 = vmul.f32 %v684, %v684
        %v785 = vmul.f32 %v685, %v685
        %v786 = vmul.f32 %v686, %v686
        %v787 = vadd.f32 %v687, %v688
        %v788 = vadd.f32 %v787, %v689
        %v789 = vadd.f32 %v788, %v690
        %790 = vadd.xlane.f32.xlu0 %v789
        %v791 = vpop.xlane.xlu0 %790
        %v792 = vadd.f32 %v691, %v692
        %v793 = vadd.f32 %v792, %v693
        %v794 = vadd.f32 %v793, %v694
        %795 = vadd.xlane.f32.xlu0 %v794
        %v796 = vpop.xlane.xlu0 %795
        %v797 = vadd.f32 %v695, %v696
        %v798 = vadd.f32 %v797, %v697
        %v799 = vadd.f32 %v798, %v698
        %800 = vadd.xlane.f32.xlu0 %v799
        %v801 = vpop.xlane.xlu0 %800
        %v802 = vadd.f32 %v699, %v700
        %v803 = vadd.f32 %v802, %v701
        %v804 = vadd.f32 %v803, %v702
        %805 = vadd.xlane.f32.xlu0 %v804
        %v806 = vpop.xlane.xlu0 %805
        %v807 = vadd.f32 %v703, %v704
        %v808 = vadd.f32 %v807, %v705
        %v809 = vadd.f32 %v808, %v706
        %810 = vadd.xlane.f32.xlu0 %v809
        %v811 = vpop.xlane.xlu0 %810
        %v812 = vadd.f32 %v707, %v708
        %v813 = vadd.f32 %v812, %v709
        %v814 = vadd.f32 %v813, %v710
        %815 = vadd.xlane.f32.xlu0 %v814
        %v816 = vpop.xlane.xlu0 %815
        %v817 = vadd.f32 %v711, %v712
        %v818 = vadd.f32 %v817, %v713
        %v819 = vadd.f32 %v818, %v714
        %820 = vadd.xlane.f32.xlu0 %v819
        %v821 = vpop.xlane.xlu0 %820
        %v822 = vadd.f32 %v715, %v716
        %v823 = vadd.f32 %v822, %v717
        %v824 = vadd.f32 %v823, %v718
        %825 = vadd.xlane.f32.xlu0 %v824
        %v826 = vpop.xlane.xlu0 %825
        %v827 = vadd.f32 %v719, %v720
        %v828 = vadd.f32 %v827, %v721
        %v829 = vadd.f32 %v828, %v722
        %830 = vadd.xlane.f32.xlu0 %v829
        %v831 = vpop.xlane.xlu0 %830
        %v832 = vadd.f32 %v723, %v724
        %v833 = vadd.f32 %v832, %v725
        %v834 = vadd.f32 %v833, %v726
        %835 = vadd.xlane.f32.xlu0 %v834
        %v836 = vpop.xlane.xlu0 %835
        %v837 = vadd.f32 %v727, %v728
        %v838 = vadd.f32 %v837, %v729
        %v839 = vadd.f32 %v838, %v730
        %840 = vadd.xlane.f32.xlu0 %v839
        %v841 = vpop.xlane.xlu0 %840
        %v842 = vadd.f32 %v731, %v732
        %v843 = vadd.f32 %v842, %v733
        %v844 = vadd.f32 %v843, %v734
        %845 = vadd.xlane.f32.xlu0 %v844
        %v846 = vpop.xlane.xlu0 %845
        %v847 = vadd.f32 %v735, %v736
        %v848 = vadd.f32 %v847, %v737
        %v849 = vadd.f32 %v848, %v738
        %850 = vadd.xlane.f32.xlu0 %v849
        %v851 = vpop.xlane.xlu0 %850
        %v852 = vadd.f32 %v739, %v740
        %v853 = vadd.f32 %v852, %v741
        %v854 = vadd.f32 %v853, %v742
        %855 = vadd.xlane.f32.xlu0 %v854
        %v856 = vpop.xlane.xlu0 %855
        %v857 = vadd.f32 %v743, %v744
        %v858 = vadd.f32 %v857, %v745
        %v859 = vadd.f32 %v858, %v746
        %860 = vadd.xlane.f32.xlu0 %v859
        %v861 = vpop.xlane.xlu0 %860
        %v862 = vadd.f32 %v747, %v748
        %v863 = vadd.f32 %v862, %v749
        %v864 = vadd.f32 %v863, %v750
        %865 = vadd.xlane.f32.xlu0 %v864
        %v866 = vpop.xlane.xlu0 %865
        %v867 = vadd.f32 %v751, %v752
        %v868 = vadd.f32 %v867, %v753
        %v869 = vadd.f32 %v868, %v754
        %870 = vadd.xlane.f32.xlu0 %v869
        %v871 = vpop.xlane.xlu0 %870
        %v872 = vadd.f32 %v755, %v756
        %v873 = vadd.f32 %v872, %v757
        %v874 = vadd.f32 %v873, %v758
        %875 = vadd.xlane.f32.xlu0 %v874
        %v876 = vpop.xlane.xlu0 %875
        %v877 = vadd.f32 %v759, %v760
        %v878 = vadd.f32 %v877, %v761
        %v879 = vadd.f32 %v878, %v762
        %880 = vadd.xlane.f32.xlu0 %v879
        %v881 = vpop.xlane.xlu0 %880
        %v882 = vadd.f32 %v763, %v764
        %v883 = vadd.f32 %v882, %v765
        %v884 = vadd.f32 %v883, %v766
        %885 = vadd.xlane.f32.xlu0 %v884
        %v886 = vpop.xlane.xlu0 %885
        %v887 = vadd.f32 %v767, %v768
        %v888 = vadd.f32 %v887, %v769
        %v889 = vadd.f32 %v888, %v770
        %890 = vadd.xlane.f32.xlu0 %v889
        %v891 = vpop.xlane.xlu0 %890
        %v892 = vadd.f32 %v771, %v772
        %v893 = vadd.f32 %v892, %v773
        %v894 = vadd.f32 %v893, %v774
        %895 = vadd.xlane.f32.xlu0 %v894
        %v896 = vpop.xlane.xlu0 %895
        %v897 = vadd.f32 %v775, %v776
        %v898 = vadd.f32 %v897, %v777
        %v899 = vadd.f32 %v898, %v778
        %900 = vadd.xlane.f32.xlu0 %v899
        %v901 = vpop.xlane.xlu0 %900
        %v902 = vadd.f32 %v779, %v780
        %v903 = vadd.f32 %v902, %v781
        %v904 = vadd.f32 %v903, %v782
        %905 = vadd.xlane.f32.xlu0 %v904
        %v906 = vpop.xlane.xlu0 %905
        %v907 = vadd.f32 %v783, %v784
        %v908 = vadd.f32 %v907, %v785
        %v909 = vadd.f32 %v908, %v786
        %910 = vadd.xlane.f32.xlu0 %v909
        %v911 = vpop.xlane.xlu0 %910
        %v912 = vmul.f32 %v791, %v561
        %v913 = vmul.f32 %v796, %v561
        %v914 = vmul.f32 %v801, %v561
        %v915 = vmul.f32 %v806, %v561
        %v916 = vmul.f32 %v811, %v561
        %v917 = vmul.f32 %v816, %v561
        %v918 = vmul.f32 %v821, %v561
        %v919 = vmul.f32 %v826, %v561
        %v920 = vmul.f32 %v831, %v561
        %v921 = vmul.f32 %v836, %v561
        %v922 = vmul.f32 %v841, %v561
        %v923 = vmul.f32 %v846, %v561
        %v924 = vmul.f32 %v851, %v561
        %v925 = vmul.f32 %v856, %v561
        %v926 = vmul.f32 %v861, %v561
        %v927 = vmul.f32 %v866, %v561
        %v928 = vmul.f32 %v871, %v561
        %v929 = vmul.f32 %v876, %v561
        %v930 = vmul.f32 %v881, %v561
        %v931 = vmul.f32 %v886, %v561
        %v932 = vmul.f32 %v891, %v561
        %v933 = vmul.f32 %v896, %v561
        %v934 = vmul.f32 %v901, %v561
        %v935 = vmul.f32 %v906, %v561
        %v936 = vmul.f32 %v911, %v561
        %v937 = vadd.f32 %v912, 1e-06
        %v938 = vadd.f32 %v913, 1e-06
        %v939 = vadd.f32 %v914, 1e-06
        %v940 = vadd.f32 %v915, 1e-06
        %v941 = vadd.f32 %v916, 1e-06
        %v942 = vadd.f32 %v917, 1e-06
        %v943 = vadd.f32 %v918, 1e-06
        %v944 = vadd.f32 %v919, 1e-06
        %v945 = vadd.f32 %v920, 1e-06
        %v946 = vadd.f32 %v921, 1e-06
        %v947 = vadd.f32 %v922, 1e-06
        %v948 = vadd.f32 %v923, 1e-06
        %v949 = vadd.f32 %v924, 1e-06
        %v950 = vadd.f32 %v925, 1e-06
        %v951 = vadd.f32 %v926, 1e-06
        %v952 = vadd.f32 %v927, 1e-06
        %v953 = vadd.f32 %v928, 1e-06
        %v954 = vadd.f32 %v929, 1e-06
        %v955 = vadd.f32 %v930, 1e-06
        %v956 = vadd.f32 %v931, 1e-06
        %v957 = vadd.f32 %v932, 1e-06
        %v958 = vadd.f32 %v933, 1e-06
        %v959 = vadd.f32 %v934, 1e-06
        %v960 = vadd.f32 %v935, 1e-06
        %v961 = vadd.f32 %v936, 1e-06
        %v962 = vrsqrt.pop %v937
        %v963 = vmul.f32 %v962, %v937
        %v964 = vmul.f32 %v963, %v962
        %v965 = vmul.f32 0.5, %v964
        %v966 = vsub.f32 1.5, %v965
        %v967 = vmul.f32 %v962, %v966
        %vm968 = vweird.f32 %v937
        %vm969 = vweird.f32 %v962
        %vm970 = vmor %vm968, %vm969
        %v971 = vsel %vm970, %v962, %v967
        %v972 = vrsqrt.pop %v938
        %v973 = vmul.f32 %v972, %v938
        %v974 = vmul.f32 %v973, %v972
        %v975 = vmul.f32 0.5, %v974
        %v976 = vsub.f32 1.5, %v975
        %v977 = vmul.f32 %v972, %v976
        %vm978 = vweird.f32 %v938
        %vm979 = vweird.f32 %v972
        %vm980 = vmor %vm978, %vm979
        %v981 = vsel %vm980, %v972, %v977
        %v982 = vrsqrt.pop %v939
        %v983 = vmul.f32 %v982, %v939
        %v984 = vmul.f32 %v983, %v982
        %v985 = vmul.f32 0.5, %v984
        %v986 = vsub.f32 1.5, %v985
        %v987 = vmul.f32 %v982, %v986
        %vm988 = vweird.f32 %v939
        %vm989 = vweird.f32 %v982
        %vm990 = vmor %vm988, %vm989
        %v991 = vsel %vm990, %v982, %v987
        %v992 = vrsqrt.pop %v940
        %v993 = vmul.f32 %v992, %v940
        %v994 = vmul.f32 %v993, %v992
        %v995 = vmul.f32 0.5, %v994
        %v996 = vsub.f32 1.5, %v995
        %v997 = vmul.f32 %v992, %v996
        %vm998 = vweird.f32 %v940
        %vm999 = vweird.f32 %v992
        %vm1000 = vmor %vm998, %vm999
        %v1001 = vsel %vm1000, %v992, %v997
        %v1002 = vrsqrt.pop %v941
        %v1003 = vmul.f32 %v1002, %v941
        %v1004 = vmul.f32 %v1003, %v1002
        %v1005 = vmul.f32 0.5, %v1004
        %v1006 = vsub.f32 1.5, %v1005
        %v1007 = vmul.f32 %v1002, %v1006
        %vm1008 = vweird.f32 %v941
        %vm1009 = vweird.f32 %v1002
        %vm1010 = vmor %vm1008, %vm1009
        %v1011 = vsel %vm1010, %v1002, %v1007
        %v1012 = vrsqrt.pop %v942
        %v1013 = vmul.f32 %v1012, %v942
        %v1014 = vmul.f32 %v1013, %v1012
        %v1015 = vmul.f32 0.5, %v1014
        %v1016 = vsub.f32 1.5, %v1015
        %v1017 = vmul.f32 %v1012, %v1016
        %vm1018 = vweird.f32 %v942
        %vm1019 = vweird.f32 %v1012
        %vm1020 = vmor %vm1018, %vm1019
        %v1021 = vsel %vm1020, %v1012, %v1017
        %v1022 = vrsqrt.pop %v943
        %v1023 = vmul.f32 %v1022, %v943
        %v1024 = vmul.f32 %v1023, %v1022
        %v1025 = vmul.f32 0.5, %v1024
        %v1026 = vsub.f32 1.5, %v1025
        %v1027 = vmul.f32 %v1022, %v1026
        %vm1028 = vweird.f32 %v943
        %vm1029 = vweird.f32 %v1022
        %vm1030 = vmor %vm1028, %vm1029
        %v1031 = vsel %vm1030, %v1022, %v1027
        %v1032 = vrsqrt.pop %v944
        %v1033 = vmul.f32 %v1032, %v944
        %v1034 = vmul.f32 %v1033, %v1032
        %v1035 = vmul.f32 0.5, %v1034
        %v1036 = vsub.f32 1.5, %v1035
        %v1037 = vmul.f32 %v1032, %v1036
        %vm1038 = vweird.f32 %v944
        %vm1039 = vweird.f32 %v1032
        %vm1040 = vmor %vm1038, %vm1039
        %v1041 = vsel %vm1040, %v1032, %v1037
        %v1042 = vrsqrt.pop %v945
        %v1043 = vmul.f32 %v1042, %v945
        %v1044 = vmul.f32 %v1043, %v1042
        %v1045 = vmul.f32 0.5, %v1044
        %v1046 = vsub.f32 1.5, %v1045
        %v1047 = vmul.f32 %v1042, %v1046
        %vm1048 = vweird.f32 %v945
        %vm1049 = vweird.f32 %v1042
        %vm1050 = vmor %vm1048, %vm1049
        %v1051 = vsel %vm1050, %v1042, %v1047
        %v1052 = vrsqrt.pop %v946
        %v1053 = vmul.f32 %v1052, %v946
        %v1054 = vmul.f32 %v1053, %v1052
        %v1055 = vmul.f32 0.5, %v1054
        %v1056 = vsub.f32 1.5, %v1055
        %v1057 = vmul.f32 %v1052, %v1056
        %vm1058 = vweird.f32 %v946
        %vm1059 = vweird.f32 %v1052
        %vm1060 = vmor %vm1058, %vm1059
        %v1061 = vsel %vm1060, %v1052, %v1057
        %v1062 = vrsqrt.pop %v947
        %v1063 = vmul.f32 %v1062, %v947
        %v1064 = vmul.f32 %v1063, %v1062
        %v1065 = vmul.f32 0.5, %v1064
        %v1066 = vsub.f32 1.5, %v1065
        %v1067 = vmul.f32 %v1062, %v1066
        %vm1068 = vweird.f32 %v947
        %vm1069 = vweird.f32 %v1062
        %vm1070 = vmor %vm1068, %vm1069
        %v1071 = vsel %vm1070, %v1062, %v1067
        %v1072 = vrsqrt.pop %v948
        %v1073 = vmul.f32 %v1072, %v948
        %v1074 = vmul.f32 %v1073, %v1072
        %v1075 = vmul.f32 0.5, %v1074
        %v1076 = vsub.f32 1.5, %v1075
        %v1077 = vmul.f32 %v1072, %v1076
        %vm1078 = vweird.f32 %v948
        %vm1079 = vweird.f32 %v1072
        %vm1080 = vmor %vm1078, %vm1079
        %v1081 = vsel %vm1080, %v1072, %v1077
        %v1082 = vrsqrt.pop %v949
        %v1083 = vmul.f32 %v1082, %v949
        %v1084 = vmul.f32 %v1083, %v1082
        %v1085 = vmul.f32 0.5, %v1084
        %v1086 = vsub.f32 1.5, %v1085
        %v1087 = vmul.f32 %v1082, %v1086
        %vm1088 = vweird.f32 %v949
        %vm1089 = vweird.f32 %v1082
        %vm1090 = vmor %vm1088, %vm1089
        %v1091 = vsel %vm1090, %v1082, %v1087
        %v1092 = vrsqrt.pop %v950
        %v1093 = vmul.f32 %v1092, %v950
        %v1094 = vmul.f32 %v1093, %v1092
        %v1095 = vmul.f32 0.5, %v1094
        %v1096 = vsub.f32 1.5, %v1095
        %v1097 = vmul.f32 %v1092, %v1096
        %vm1098 = vweird.f32 %v950
        %vm1099 = vweird.f32 %v1092
        %vm1100 = vmor %vm1098, %vm1099
        %v1101 = vsel %vm1100, %v1092, %v1097
        %v1102 = vrsqrt.pop %v951
        %v1103 = vmul.f32 %v1102, %v951
        %v1104 = vmul.f32 %v1103, %v1102
        %v1105 = vmul.f32 0.5, %v1104
        %v1106 = vsub.f32 1.5, %v1105
        %v1107 = vmul.f32 %v1102, %v1106
        %vm1108 = vweird.f32 %v951
        %vm1109 = vweird.f32 %v1102
        %vm1110 = vmor %vm1108, %vm1109
        %v1111 = vsel %vm1110, %v1102, %v1107
        %v1112 = vrsqrt.pop %v952
        %v1113 = vmul.f32 %v1112, %v952
        %v1114 = vmul.f32 %v1113, %v1112
        %v1115 = vmul.f32 0.5, %v1114
        %v1116 = vsub.f32 1.5, %v1115
        %v1117 = vmul.f32 %v1112, %v1116
        %vm1118 = vweird.f32 %v952
        %vm1119 = vweird.f32 %v1112
        %vm1120 = vmor %vm1118, %vm1119
        %v1121 = vsel %vm1120, %v1112, %v1117
        %v1122 = vrsqrt.pop %v953
        %v1123 = vmul.f32 %v1122, %v953
        %v1124 = vmul.f32 %v1123, %v1122
        %v1125 = vmul.f32 0.5, %v1124
        %v1126 = vsub.f32 1.5, %v1125
        %v1127 = vmul.f32 %v1122, %v1126
        %vm1128 = vweird.f32 %v953
        %vm1129 = vweird.f32 %v1122
        %vm1130 = vmor %vm1128, %vm1129
        %v1131 = vsel %vm1130, %v1122, %v1127
        %v1132 = vrsqrt.pop %v954
        %v1133 = vmul.f32 %v1132, %v954
        %v1134 = vmul.f32 %v1133, %v1132
        %v1135 = vmul.f32 0.5, %v1134
        %v1136 = vsub.f32 1.5, %v1135
        %v1137 = vmul.f32 %v1132, %v1136
        %vm1138 = vweird.f32 %v954
        %vm1139 = vweird.f32 %v1132
        %vm1140 = vmor %vm1138, %vm1139
        %v1141 = vsel %vm1140, %v1132, %v1137
        %v1142 = vrsqrt.pop %v955
        %v1143 = vmul.f32 %v1142, %v955
        %v1144 = vmul.f32 %v1143, %v1142
        %v1145 = vmul.f32 0.5, %v1144
        %v1146 = vsub.f32 1.5, %v1145
        %v1147 = vmul.f32 %v1142, %v1146
        %vm1148 = vweird.f32 %v955
        %vm1149 = vweird.f32 %v1142
        %vm1150 = vmor %vm1148, %vm1149
        %v1151 = vsel %vm1150, %v1142, %v1147
        %v1152 = vrsqrt.pop %v956
        %v1153 = vmul.f32 %v1152, %v956
        %v1154 = vmul.f32 %v1153, %v1152
        %v1155 = vmul.f32 0.5, %v1154
        %v1156 = vsub.f32 1.5, %v1155
        %v1157 = vmul.f32 %v1152, %v1156
        %vm1158 = vweird.f32 %v956
        %vm1159 = vweird.f32 %v1152
        %vm1160 = vmor %vm1158, %vm1159
        %v1161 = vsel %vm1160, %v1152, %v1157
        %v1162 = vrsqrt.pop %v957
        %v1163 = vmul.f32 %v1162, %v957
        %v1164 = vmul.f32 %v1163, %v1162
        %v1165 = vmul.f32 0.5, %v1164
        %v1166 = vsub.f32 1.5, %v1165
        %v1167 = vmul.f32 %v1162, %v1166
        %vm1168 = vweird.f32 %v957
        %vm1169 = vweird.f32 %v1162
        %vm1170 = vmor %vm1168, %vm1169
        %v1171 = vsel %vm1170, %v1162, %v1167
        %v1172 = vrsqrt.pop %v958
        %v1173 = vmul.f32 %v1172, %v958
        %v1174 = vmul.f32 %v1173, %v1172
        %v1175 = vmul.f32 0.5, %v1174
        %v1176 = vsub.f32 1.5, %v1175
        %v1177 = vmul.f32 %v1172, %v1176
        %vm1178 = vweird.f32 %v958
        %vm1179 = vweird.f32 %v1172
        %vm1180 = vmor %vm1178, %vm1179
        %v1181 = vsel %vm1180, %v1172, %v1177
        %v1182 = vrsqrt.pop %v959
        %v1183 = vmul.f32 %v1182, %v959
        %v1184 = vmul.f32 %v1183, %v1182
        %v1185 = vmul.f32 0.5, %v1184
        %v1186 = vsub.f32 1.5, %v1185
        %v1187 = vmul.f32 %v1182, %v1186
        %vm1188 = vweird.f32 %v959
        %vm1189 = vweird.f32 %v1182
        %vm1190 = vmor %vm1188, %vm1189
        %v1191 = vsel %vm1190, %v1182, %v1187
        %v1192 = vrsqrt.pop %v960
        %v1193 = vmul.f32 %v1192, %v960
        %v1194 = vmul.f32 %v1193, %v1192
        %v1195 = vmul.f32 0.5, %v1194
        %v1196 = vsub.f32 1.5, %v1195
        %v1197 = vmul.f32 %v1192, %v1196
        %vm1198 = vweird.f32 %v960
        %vm1199 = vweird.f32 %v1192
        %vm1200 = vmor %vm1198, %vm1199
        %v1201 = vsel %vm1200, %v1192, %v1197
        %v1202 = vrsqrt.pop %v961
        %v1203 = vmul.f32 %v1202, %v961
        %v1204 = vmul.f32 %v1203, %v1202
        %v1205 = vmul.f32 0.5, %v1204
        %v1206 = vsub.f32 1.5, %v1205
        %v1207 = vmul.f32 %v1202, %v1206
        %vm1208 = vweird.f32 %v961
        %vm1209 = vweird.f32 %v1202
        %vm1210 = vmor %vm1208, %vm1209
        %v1211 = vsel %vm1210, %v1202, %v1207
        %v1212 = vmul.f32 %v587, %v971
        %v1213 = vmul.f32 %v588, %v971
        %v1214 = vmul.f32 %v589, %v971
        %v1215 = vmul.f32 %v590, %v971
        %v1216 = vmul.f32 %v591, %v981
        %v1217 = vmul.f32 %v592, %v981
        %v1218 = vmul.f32 %v593, %v981
        %v1219 = vmul.f32 %v594, %v981
        %v1220 = vmul.f32 %v595, %v991
        %v1221 = vmul.f32 %v596, %v991
        %v1222 = vmul.f32 %v597, %v991
        %v1223 = vmul.f32 %v598, %v991
        %v1224 = vmul.f32 %v599, %v1001
        %v1225 = vmul.f32 %v600, %v1001
        %v1226 = vmul.f32 %v601, %v1001
        %v1227 = vmul.f32 %v602, %v1001
        %v1228 = vmul.f32 %v603, %v1011
        %v1229 = vmul.f32 %v604, %v1011
        %v1230 = vmul.f32 %v605, %v1011
        %v1231 = vmul.f32 %v606, %v1011
        %v1232 = vmul.f32 %v607, %v1021
        %v1233 = vmul.f32 %v608, %v1021
        %v1234 = vmul.f32 %v609, %v1021
        %v1235 = vmul.f32 %v610, %v1021
        %v1236 = vmul.f32 %v611, %v1031
        %v1237 = vmul.f32 %v612, %v1031
        %v1238 = vmul.f32 %v613, %v1031
        %v1239 = vmul.f32 %v614, %v1031
        %v1240 = vmul.f32 %v615, %v1041
        %v1241 = vmul.f32 %v616, %v1041
        %v1242 = vmul.f32 %v617, %v1041
        %v1243 = vmul.f32 %v618, %v1041
        %v1244 = vmul.f32 %v619, %v1051
        %v1245 = vmul.f32 %v620, %v1051
        %v1246 = vmul.f32 %v621, %v1051
        %v1247 = vmul.f32 %v622, %v1051
        %v1248 = vmul.f32 %v623, %v1061
        %v1249 = vmul.f32 %v624, %v1061
        %v1250 = vmul.f32 %v625, %v1061
        %v1251 = vmul.f32 %v626, %v1061
        %v1252 = vmul.f32 %v627, %v1071
        %v1253 = vmul.f32 %v628, %v1071
        %v1254 = vmul.f32 %v629, %v1071
        %v1255 = vmul.f32 %v630, %v1071
        %v1256 = vmul.f32 %v631, %v1081
        %v1257 = vmul.f32 %v632, %v1081
        %v1258 = vmul.f32 %v633, %v1081
        %v1259 = vmul.f32 %v634, %v1081
        %v1260 = vmul.f32 %v635, %v1091
        %v1261 = vmul.f32 %v636, %v1091
        %v1262 = vmul.f32 %v637, %v1091
        %v1263 = vmul.f32 %v638, %v1091
        %v1264 = vmul.f32 %v639, %v1101
        %v1265 = vmul.f32 %v640, %v1101
        %v1266 = vmul.f32 %v641, %v1101
        %v1267 = vmul.f32 %v642, %v1101
        %v1268 = vmul.f32 %v643, %v1111
        %v1269 = vmul.f32 %v644, %v1111
        %v1270 = vmul.f32 %v645, %v1111
        %v1271 = vmul.f32 %v646, %v1111
        %v1272 = vmul.f32 %v647, %v1121
        %v1273 = vmul.f32 %v648, %v1121
        %v1274 = vmul.f32 %v649, %v1121
        %v1275 = vmul.f32 %v650, %v1121
        %v1276 = vmul.f32 %v651, %v1131
        %v1277 = vmul.f32 %v652, %v1131
        %v1278 = vmul.f32 %v653, %v1131
        %v1279 = vmul.f32 %v654, %v1131
        %v1280 = vmul.f32 %v655, %v1141
        %v1281 = vmul.f32 %v656, %v1141
        %v1282 = vmul.f32 %v657, %v1141
        %v1283 = vmul.f32 %v658, %v1141
        %v1284 = vmul.f32 %v659, %v1151
        %v1285 = vmul.f32 %v660, %v1151
        %v1286 = vmul.f32 %v661, %v1151
        %v1287 = vmul.f32 %v662, %v1151
        %v1288 = vmul.f32 %v663, %v1161
        %v1289 = vmul.f32 %v664, %v1161
        %v1290 = vmul.f32 %v665, %v1161
        %v1291 = vmul.f32 %v666, %v1161
        %v1292 = vmul.f32 %v667, %v1171
        %v1293 = vmul.f32 %v668, %v1171
        %v1294 = vmul.f32 %v669, %v1171
        %v1295 = vmul.f32 %v670, %v1171
        %v1296 = vmul.f32 %v671, %v1181
        %v1297 = vmul.f32 %v672, %v1181
        %v1298 = vmul.f32 %v673, %v1181
        %v1299 = vmul.f32 %v674, %v1181
        %v1300 = vmul.f32 %v675, %v1191
        %v1301 = vmul.f32 %v676, %v1191
        %v1302 = vmul.f32 %v677, %v1191
        %v1303 = vmul.f32 %v678, %v1191
        %v1304 = vmul.f32 %v679, %v1201
        %v1305 = vmul.f32 %v680, %v1201
        %v1306 = vmul.f32 %v681, %v1201
        %v1307 = vmul.f32 %v682, %v1201
        %v1308 = vmul.f32 %v683, %v1211
        %v1309 = vmul.f32 %v684, %v1211
        %v1310 = vmul.f32 %v685, %v1211
        %v1311 = vmul.f32 %v686, %v1211
        %v1312 = vld [vmem:[#allocation5] sm:$0xf]
        %v1314 = vperm.slane %v1312, 0
        %v1315 = vperm.slane %v1312, 1
        %v1316 = vperm.slane %v1312, 2
        %v1317 = vperm.slane %v1312, 3
        %v1322 = vmul.f32 %v1212, %v1314
        %v1323 = vmul.f32 %v1213, %v1315
        %v1324 = vmul.f32 %v1214, %v1316
        %v1325 = vmul.f32 %v1215, %v1317
        %v1326 = vmul.f32 %v1216, %v1314
        %v1327 = vmul.f32 %v1217, %v1315
        %v1328 = vmul.f32 %v1218, %v1316
        %v1329 = vmul.f32 %v1219, %v1317
        %v1330 = vmul.f32 %v1220, %v1314
        %v1331 = vmul.f32 %v1221, %v1315
        %v1332 = vmul.f32 %v1222, %v1316
        %v1333 = vmul.f32 %v1223, %v1317
        %v1334 = vmul.f32 %v1224, %v1314
        %v1335 = vmul.f32 %v1225, %v1315
        %v1336 = vmul.f32 %v1226, %v1316
        %v1337 = vmul.f32 %v1227, %v1317
        %v1338 = vmul.f32 %v1228, %v1314
        %v1339 = vmul.f32 %v1229, %v1315
        %v1340 = vmul.f32 %v1230, %v1316
        %v1341 = vmul.f32 %v1231, %v1317
        %v1342 = vmul.f32 %v1232, %v1314
        %v1343 = vmul.f32 %v1233, %v1315
        %v1344 = vmul.f32 %v1234, %v1316
        %v1345 = vmul.f32 %v1235, %v1317
        %v1346 = vmul.f32 %v1236, %v1314
        %v1347 = vmul.f32 %v1237, %v1315
        %v1348 = vmul.f32 %v1238, %v1316
        %v1349 = vmul.f32 %v1239, %v1317
        %v1350 = vmul.f32 %v1240, %v1314
        %v1351 = vmul.f32 %v1241, %v1315
        %v1352 = vmul.f32 %v1242, %v1316
        %v1353 = vmul.f32 %v1243, %v1317
        %v1354 = vmul.f32 %v1244, %v1314
        %v1355 = vmul.f32 %v1245, %v1315
        %v1356 = vmul.f32 %v1246, %v1316
        %v1357 = vmul.f32 %v1247, %v1317
        %v1358 = vmul.f32 %v1248, %v1314
        %v1359 = vmul.f32 %v1249, %v1315
        %v1360 = vmul.f32 %v1250, %v1316
        %v1361 = vmul.f32 %v1251, %v1317
        %v1362 = vmul.f32 %v1252, %v1314
        %v1363 = vmul.f32 %v1253, %v1315
        %v1364 = vmul.f32 %v1254, %v1316
        %v1365 = vmul.f32 %v1255, %v1317
        %v1366 = vmul.f32 %v1256, %v1314
        %v1367 = vmul.f32 %v1257, %v1315
        %v1368 = vmul.f32 %v1258, %v1316
        %v1369 = vmul.f32 %v1259, %v1317
        %v1370 = vmul.f32 %v1260, %v1314
        %v1371 = vmul.f32 %v1261, %v1315
        %v1372 = vmul.f32 %v1262, %v1316
        %v1373 = vmul.f32 %v1263, %v1317
        %v1374 = vmul.f32 %v1264, %v1314
        %v1375 = vmul.f32 %v1265, %v1315
        %v1376 = vmul.f32 %v1266, %v1316
        %v1377 = vmul.f32 %v1267, %v1317
        %v1378 = vmul.f32 %v1268, %v1314
        %v1379 = vmul.f32 %v1269, %v1315
        %v1380 = vmul.f32 %v1270, %v1316
        %v1381 = vmul.f32 %v1271, %v1317
        %v1382 = vmul.f32 %v1272, %v1314
        %v1383 = vmul.f32 %v1273, %v1315
        %v1384 = vmul.f32 %v1274, %v1316
        %v1385 = vmul.f32 %v1275, %v1317
        %v1386 = vmul.f32 %v1276, %v1314
        %v1387 = vmul.f32 %v1277, %v1315
        %v1388 = vmul.f32 %v1278, %v1316
        %v1389 = vmul.f32 %v1279, %v1317
        %v1390 = vmul.f32 %v1280, %v1314
        %v1391 = vmul.f32 %v1281, %v1315
        %v1392 = vmul.f32 %v1282, %v1316
        %v1393 = vmul.f32 %v1283, %v1317
        %v1394 = vmul.f32 %v1284, %v1314
        %v1395 = vmul.f32 %v1285, %v1315
        %v1396 = vmul.f32 %v1286, %v1316
        %v1397 = vmul.f32 %v1287, %v1317
        %v1398 = vmul.f32 %v1288, %v1314
        %v1399 = vmul.f32 %v1289, %v1315
        %v1400 = vmul.f32 %v1290, %v1316
        %v1401 = vmul.f32 %v1291, %v1317
        %v1402 = vmul.f32 %v1292, %v1314
        %v1403 = vmul.f32 %v1293, %v1315
        %v1404 = vmul.f32 %v1294, %v1316
        %v1405 = vmul.f32 %v1295, %v1317
        %v1406 = vmul.f32 %v1296, %v1314
        %v1407 = vmul.f32 %v1297, %v1315
        %v1408 = vmul.f32 %v1298, %v1316
        %v1409 = vmul.f32 %v1299, %v1317
        %v1410 = vmul.f32 %v1300, %v1314
        %v1411 = vmul.f32 %v1301, %v1315
        %v1412 = vmul.f32 %v1302, %v1316
        %v1413 = vmul.f32 %v1303, %v1317
        %v1414 = vmul.f32 %v1304, %v1314
        %v1415 = vmul.f32 %v1305, %v1315
        %v1416 = vmul.f32 %v1306, %v1316
        %v1417 = vmul.f32 %v1307, %v1317
        %v1418 = vmul.f32 %v1308, %v1314
        %v1419 = vmul.f32 %v1309, %v1315
        %v1420 = vmul.f32 %v1310, %v1316
        %v1421 = vmul.f32 %v1311, %v1317
        %v1422 = vld [vmem:[#allocation7] sm:$0xf]
        %v1424 = vperm.slane %v1422, 0
        %v1425 = vperm.slane %v1422, 1
        %v1426 = vperm.slane %v1422, 2
        %v1427 = vperm.slane %v1422, 3
        %v1432 = vadd.f32 %v1322, %v1424
        %v1433 = vadd.f32 %v1323, %v1425
        %v1434 = vadd.f32 %v1324, %v1426
        %v1435 = vadd.f32 %v1325, %v1427
        %v1436 = vadd.f32 %v1326, %v1424
        %v1437 = vadd.f32 %v1327, %v1425
        %v1438 = vadd.f32 %v1328, %v1426
        %v1439 = vadd.f32 %v1329, %v1427
        %v1440 = vadd.f32 %v1330, %v1424
        %v1441 = vadd.f32 %v1331, %v1425
        %v1442 = vadd.f32 %v1332, %v1426
        %v1443 = vadd.f32 %v1333, %v1427
        %v1444 = vadd.f32 %v1334, %v1424
        %v1445 = vadd.f32 %v1335, %v1425
        %v1446 = vadd.f32 %v1336, %v1426
        %v1447 = vadd.f32 %v1337, %v1427
        %v1448 = vadd.f32 %v1338, %v1424
        %v1449 = vadd.f32 %v1339, %v1425
        %v1450 = vadd.f32 %v1340, %v1426
        %v1451 = vadd.f32 %v1341, %v1427
        %v1452 = vadd.f32 %v1342, %v1424
        %v1453 = vadd.f32 %v1343, %v1425
        %v1454 = vadd.f32 %v1344, %v1426
        %v1455 = vadd.f32 %v1345, %v1427
        %v1456 = vadd.f32 %v1346, %v1424
        %v1457 = vadd.f32 %v1347, %v1425
        %v1458 = vadd.f32 %v1348, %v1426
        %v1459 = vadd.f32 %v1349, %v1427
        %v1460 = vadd.f32 %v1350, %v1424
        %v1461 = vadd.f32 %v1351, %v1425
        %v1462 = vadd.f32 %v1352, %v1426
        %v1463 = vadd.f32 %v1353, %v1427
        %v1464 = vadd.f32 %v1354, %v1424
        %v1465 = vadd.f32 %v1355, %v1425
        %v1466 = vadd.f32 %v1356, %v1426
        %v1467 = vadd.f32 %v1357, %v1427
        %v1468 = vadd.f32 %v1358, %v1424
        %v1469 = vadd.f32 %v1359, %v1425
        %v1470 = vadd.f32 %v1360, %v1426
        %v1471 = vadd.f32 %v1361, %v1427
        %v1472 = vadd.f32 %v1362, %v1424
        %v1473 = vadd.f32 %v1363, %v1425
        %v1474 = vadd.f32 %v1364, %v1426
        %v1475 = vadd.f32 %v1365, %v1427
        %v1476 = vadd.f32 %v1366, %v1424
        %v1477 = vadd.f32 %v1367, %v1425
        %v1478 = vadd.f32 %v1368, %v1426
        %v1479 = vadd.f32 %v1369, %v1427
        %v1480 = vadd.f32 %v1370, %v1424
        %v1481 = vadd.f32 %v1371, %v1425
        %v1482 = vadd.f32 %v1372, %v1426
        %v1483 = vadd.f32 %v1373, %v1427
        %v1484 = vadd.f32 %v1374, %v1424
        %v1485 = vadd.f32 %v1375, %v1425
        %v1486 = vadd.f32 %v1376, %v1426
        %v1487 = vadd.f32 %v1377, %v1427
        %v1488 = vadd.f32 %v1378, %v1424
        %v1489 = vadd.f32 %v1379, %v1425
        %v1490 = vadd.f32 %v1380, %v1426
        %v1491 = vadd.f32 %v1381, %v1427
        %v1492 = vadd.f32 %v1382, %v1424
        %v1493 = vadd.f32 %v1383, %v1425
        %v1494 = vadd.f32 %v1384, %v1426
        %v1495 = vadd.f32 %v1385, %v1427
        %v1496 = vadd.f32 %v1386, %v1424
        %v1497 = vadd.f32 %v1387, %v1425
        %v1498 = vadd.f32 %v1388, %v1426
        %v1499 = vadd.f32 %v1389, %v1427
        %v1500 = vadd.f32 %v1390, %v1424
        %v1501 = vadd.f32 %v1391, %v1425
        %v1502 = vadd.f32 %v1392, %v1426
        %v1503 = vadd.f32 %v1393, %v1427
        %v1504 = vadd.f32 %v1394, %v1424
        %v1505 = vadd.f32 %v1395, %v1425
        %v1506 = vadd.f32 %v1396, %v1426
        %v1507 = vadd.f32 %v1397, %v1427
        %v1508 = vadd.f32 %v1398, %v1424
        %v1509 = vadd.f32 %v1399, %v1425
        %v1510 = vadd.f32 %v1400, %v1426
        %v1511 = vadd.f32 %v1401, %v1427
        %v1512 = vadd.f32 %v1402, %v1424
        %v1513 = vadd.f32 %v1403, %v1425
        %v1514 = vadd.f32 %v1404, %v1426
        %v1515 = vadd.f32 %v1405, %v1427
        %v1516 = vadd.f32 %v1406, %v1424
        %v1517 = vadd.f32 %v1407, %v1425
        %v1518 = vadd.f32 %v1408, %v1426
        %v1519 = vadd.f32 %v1409, %v1427
        %v1520 = vadd.f32 %v1410, %v1424
        %v1521 = vadd.f32 %v1411, %v1425
        %v1522 = vadd.f32 %v1412, %v1426
        %v1523 = vadd.f32 %v1413, %v1427
        %v1524 = vadd.f32 %v1414, %v1424
        %v1525 = vadd.f32 %v1415, %v1425
        %v1526 = vadd.f32 %v1416, %v1426
        %v1527 = vadd.f32 %v1417, %v1427
        %v1528 = vadd.f32 %v1418, %v1424
        %v1529 = vadd.f32 %v1419, %v1425
        %v1530 = vadd.f32 %v1420, %v1426
        %v1531 = vadd.f32 %v1421, %v1427
        %v1532 = vld [vmem:[%s284] sm:$0xff]
        %v1533 = vld [vmem:[%s284 + $0x8] sm:$0xff]
        %v1534 = vld [vmem:[%s284 + $0x10] sm:$0xff]
        %v1535 = vld [vmem:[%s284 + $0x18] sm:$0xff]
        %v1536 = vld [vmem:[%s284 + $0x20] sm:$0xff]
        %v1537 = vld [vmem:[%s284 + $0x28] sm:$0xff]
        %v1538 = vld [vmem:[%s284 + $0x30] sm:$0xff]
        %v1539 = vld [vmem:[%s284 + $0x38] sm:$0xff]
        %v1540 = vld [vmem:[%s284 + $0x40] sm:$0xff]
        %v1541 = vld [vmem:[%s284 + $0x48] sm:$0xff]
        %v1542 = vld [vmem:[%s284 + $0x50] sm:$0xff]
        %v1543 = vld [vmem:[%s284 + $0x58] sm:$0xff]
        %v1544 = vld [vmem:[%s284 + $0x60] sm:$0xff]
        %v1545 = vld [vmem:[%s284 + $0x68] sm:$0xff]
        %v1546 = vld [vmem:[%s284 + $0x70] sm:$0xff]
        %v1547 = vld [vmem:[%s284 + $0x78] sm:$0xff]
        %v1548 = vld [vmem:[%s284 + $0x80] sm:$0xff]
        %v1549 = vld [vmem:[%s284 + $0x88] sm:$0xff]
        %v1550 = vld [vmem:[%s284 + $0x90] sm:$0xff]
        %v1551 = vld [vmem:[%s284 + $0x98] sm:$0xff]
        %v1552 = vld [vmem:[%s284 + $0xa0] sm:$0xff]
        %v1553 = vld [vmem:[%s284 + $0xa8] sm:$0xff]
        %v1554 = vld [vmem:[%s284 + $0xb0] sm:$0xff]
        %v1555 = vld [vmem:[%s284 + $0xb8] sm:$0xff]
        %v1556 = vld [vmem:[%s284 + $0xc0] sm:$0xff]
        %v1557 = vld [vmem:[%s284 + $0xc8] sm:$0xff]
        %v1558 = vld [vmem:[%s284 + $0xd0] sm:$0xff]
        %v1559 = vld [vmem:[%s284 + $0xd8] sm:$0xff]
        %v1560 = vld [vmem:[%s284 + $0xe0] sm:$0xff]
        %v1561 = vld [vmem:[%s284 + $0xe8] sm:$0xff]
        %v1562 = vld [vmem:[%s284 + $0xf0] sm:$0xff]
        %v1563 = vld [vmem:[%s284 + $0xf8] sm:$0xff]
        %v1564 = vld [vmem:[%s284 + $0x100] sm:$0xff]
        %v1565 = vld [vmem:[%s284 + $0x108] sm:$0xff]
        %v1566 = vld [vmem:[%s284 + $0x110] sm:$0xff]
        %v1567 = vld [vmem:[%s284 + $0x118] sm:$0xff]
        %v1568 = vld [vmem:[%s284 + $0x120] sm:$0xff]
        %v1569 = vld [vmem:[%s284 + $0x128] sm:$0xff]
        %v1570 = vld [vmem:[%s284 + $0x130] sm:$0xff]
        %v1571 = vld [vmem:[%s284 + $0x138] sm:$0xff]
        %v1572 = vld [vmem:[%s284 + $0x140] sm:$0xff]
        %v1573 = vld [vmem:[%s284 + $0x148] sm:$0xff]
        %v1574 = vld [vmem:[%s284 + $0x150] sm:$0xff]
        %v1575 = vld [vmem:[%s284 + $0x158] sm:$0xff]
        %v1576 = vld [vmem:[%s284 + $0x160] sm:$0xff]
        %v1577 = vld [vmem:[%s284 + $0x168] sm:$0xff]
        %v1578 = vld [vmem:[%s284 + $0x170] sm:$0xff]
        %v1579 = vld [vmem:[%s284 + $0x178] sm:$0xff]
        %v1580 = vld [vmem:[%s284 + $0x180] sm:$0xff]
        %v1581 = vld [vmem:[%s284 + $0x188] sm:$0xff]
        %v1582 = vld [vmem:[%s284 + $0x190] sm:$0xff]
        %v1583 = vld [vmem:[%s284 + $0x198] sm:$0xff]
        %v1584 = vld [vmem:[%s284 + $0x1a0] sm:$0xff]
        %v1585 = vld [vmem:[%s284 + $0x1a8] sm:$0xff]
        %v1586 = vld [vmem:[%s284 + $0x1b0] sm:$0xff]
        %v1587 = vld [vmem:[%s284 + $0x1b8] sm:$0xff]
        %v1588 = vld [vmem:[%s284 + $0x1c0] sm:$0xff]
        %v1589 = vld [vmem:[%s284 + $0x1c8] sm:$0xff]
        %v1590 = vld [vmem:[%s284 + $0x1d0] sm:$0xff]
        %v1591 = vld [vmem:[%s284 + $0x1d8] sm:$0xff]
        %v1592 = vld [vmem:[%s284 + $0x1e0] sm:$0xff]
        %v1593 = vld [vmem:[%s284 + $0x1e8] sm:$0xff]
        %v1594 = vld [vmem:[%s284 + $0x1f0] sm:$0xff]
        %v1595 = vld [vmem:[%s284 + $0x1f8] sm:$0xff]
        %v1596 = vld [vmem:[%s284 + $0x200] sm:$0xff]
        %v1597 = vld [vmem:[%s284 + $0x208] sm:$0xff]
        %v1598 = vld [vmem:[%s284 + $0x210] sm:$0xff]
        %v1599 = vld [vmem:[%s284 + $0x218] sm:$0xff]
        %v1600 = vld [vmem:[%s284 + $0x220] sm:$0xff]
        %v1601 = vld [vmem:[%s284 + $0x228] sm:$0xff]
        %v1602 = vld [vmem:[%s284 + $0x230] sm:$0xff]
        %v1603 = vld [vmem:[%s284 + $0x238] sm:$0xff]
        %v1604 = vld [vmem:[%s284 + $0x240] sm:$0xff]
        %v1605 = vld [vmem:[%s284 + $0x248] sm:$0xff]
        %v1606 = vld [vmem:[%s284 + $0x250] sm:$0xff]
        %v1607 = vld [vmem:[%s284 + $0x258] sm:$0xff]
        %v1608 = vld [vmem:[%s284 + $0x260] sm:$0xff]
        %v1609 = vld [vmem:[%s284 + $0x268] sm:$0xff]
        %v1610 = vld [vmem:[%s284 + $0x270] sm:$0xff]
        %v1611 = vld [vmem:[%s284 + $0x278] sm:$0xff]
        %v1612 = vld [vmem:[%s284 + $0x280] sm:$0xff]
        %v1613 = vld [vmem:[%s284 + $0x288] sm:$0xff]
        %v1614 = vld [vmem:[%s284 + $0x290] sm:$0xff]
        %v1615 = vld [vmem:[%s284 + $0x298] sm:$0xff]
        %v1616 = vld [vmem:[%s284 + $0x2a0] sm:$0xff]
        %v1617 = vld [vmem:[%s284 + $0x2a8] sm:$0xff]
        %v1618 = vld [vmem:[%s284 + $0x2b0] sm:$0xff]
        %v1619 = vld [vmem:[%s284 + $0x2b8] sm:$0xff]
        %v1620 = vld [vmem:[%s284 + $0x2c0] sm:$0xff]
        %v1621 = vld [vmem:[%s284 + $0x2c8] sm:$0xff]
        %v1622 = vld [vmem:[%s284 + $0x2d0] sm:$0xff]
        %v1623 = vld [vmem:[%s284 + $0x2d8] sm:$0xff]
        %v1624 = vld [vmem:[%s284 + $0x2e0] sm:$0xff]
        %v1625 = vld [vmem:[%s284 + $0x2e8] sm:$0xff]
        %v1626 = vld [vmem:[%s284 + $0x2f0] sm:$0xff]
        %v1627 = vld [vmem:[%s284 + $0x2f8] sm:$0xff]
        %v1628 = vld [vmem:[%s284 + $0x300] sm:$0xff]
        %v1629 = vld [vmem:[%s284 + $0x308] sm:$0xff]
        %v1630 = vld [vmem:[%s284 + $0x310] sm:$0xff]
        %v1631 = vld [vmem:[%s284 + $0x318] sm:$0xff]
        %v1632 = vld [vmem:[%s284 + $0x320] sm:$0xff]
        %v1633 = vld [vmem:[%s284 + $0x328] sm:$0xff]
        %v1634 = vld [vmem:[%s284 + $0x330] sm:$0xff]
        %v1635 = vld [vmem:[%s284 + $0x338] sm:$0xff]
        %v1636 = vld [vmem:[%s284 + $0x340] sm:$0xff]
        %v1637 = vld [vmem:[%s284 + $0x348] sm:$0xff]
        %v1638 = vld [vmem:[%s284 + $0x350] sm:$0xff]
        %v1639 = vld [vmem:[%s284 + $0x358] sm:$0xff]
        %v1640 = vld [vmem:[%s284 + $0x360] sm:$0xff]
        %v1641 = vld [vmem:[%s284 + $0x368] sm:$0xff]
        %v1642 = vld [vmem:[%s284 + $0x370] sm:$0xff]
        %v1643 = vld [vmem:[%s284 + $0x378] sm:$0xff]
        %v1644 = vld [vmem:[%s284 + $0x380] sm:$0xff]
        %v1645 = vld [vmem:[%s284 + $0x388] sm:$0xff]
        %v1646 = vld [vmem:[%s284 + $0x390] sm:$0xff]
        %v1647 = vld [vmem:[%s284 + $0x398] sm:$0xff]
        %v1648 = vld [vmem:[%s284 + $0x3a0] sm:$0xff]
        %v1649 = vld [vmem:[%s284 + $0x3a8] sm:$0xff]
        %v1650 = vld [vmem:[%s284 + $0x3b0] sm:$0xff]
        %v1651 = vld [vmem:[%s284 + $0x3b8] sm:$0xff]
        %v1652 = vld [vmem:[%s284 + $0x3c0] sm:$0xff]
        %v1653 = vld [vmem:[%s284 + $0x3c8] sm:$0xff]
        %v1654 = vld [vmem:[%s284 + $0x3d0] sm:$0xff]
        %v1655 = vld [vmem:[%s284 + $0x3d8] sm:$0xff]
        %v1656 = vld [vmem:[%s284 + $0x3e0] sm:$0xff]
        %v1657 = vld [vmem:[%s284 + $0x3e8] sm:$0xff]
        %v1658 = vld [vmem:[%s284 + $0x3f0] sm:$0xff]
        %v1659 = vld [vmem:[%s284 + $0x3f8] sm:$0xff]
        %v1660 = vld [vmem:[%s284 + $0x400] sm:$0xff]
        %v1661 = vld [vmem:[%s284 + $0x408] sm:$0xff]
        %v1662 = vld [vmem:[%s284 + $0x410] sm:$0xff]
        %v1663 = vld [vmem:[%s284 + $0x418] sm:$0xff]
        %v1664 = vld [vmem:[%s284 + $0x420] sm:$0xff]
        %v1665 = vld [vmem:[%s284 + $0x428] sm:$0xff]
        %v1666 = vld [vmem:[%s284 + $0x430] sm:$0xff]
        %v1667 = vld [vmem:[%s284 + $0x438] sm:$0xff]
        %v1668 = vld [vmem:[%s284 + $0x440] sm:$0xff]
        %v1669 = vld [vmem:[%s284 + $0x448] sm:$0xff]
        %v1670 = vld [vmem:[%s284 + $0x450] sm:$0xff]
        %v1671 = vld [vmem:[%s284 + $0x458] sm:$0xff]
        %v1672 = vld [vmem:[%s284 + $0x460] sm:$0xff]
        %v1673 = vld [vmem:[%s284 + $0x468] sm:$0xff]
        %v1674 = vld [vmem:[%s284 + $0x470] sm:$0xff]
        %v1675 = vld [vmem:[%s284 + $0x478] sm:$0xff]
        %v1676 = vld [vmem:[%s284 + $0x480] sm:$0xff]
        %v1677 = vld [vmem:[%s284 + $0x488] sm:$0xff]
        %v1678 = vld [vmem:[%s284 + $0x490] sm:$0xff]
        %v1679 = vld [vmem:[%s284 + $0x498] sm:$0xff]
        %v1680 = vld [vmem:[%s284 + $0x4a0] sm:$0xff]
        %v1681 = vld [vmem:[%s284 + $0x4a8] sm:$0xff]
        %v1682 = vld [vmem:[%s284 + $0x4b0] sm:$0xff]
        %v1683 = vld [vmem:[%s284 + $0x4b8] sm:$0xff]
        %v1684 = vld [vmem:[%s284 + $0x4c0] sm:$0xff]
        %v1685 = vld [vmem:[%s284 + $0x4c8] sm:$0xff]
        %v1686 = vld [vmem:[%s284 + $0x4d0] sm:$0xff]
        %v1687 = vld [vmem:[%s284 + $0x4d8] sm:$0xff]
        %v1688 = vld [vmem:[%s284 + $0x4e0] sm:$0xff]
        %v1689 = vld [vmem:[%s284 + $0x4e8] sm:$0xff]
        %v1690 = vld [vmem:[%s284 + $0x4f0] sm:$0xff]
        %v1691 = vld [vmem:[%s284 + $0x4f8] sm:$0xff]
        %v1692 = vld [vmem:[%s284 + $0x500] sm:$0xff]
        %v1693 = vld [vmem:[%s284 + $0x508] sm:$0xff]
        %v1694 = vld [vmem:[%s284 + $0x510] sm:$0xff]
        %v1695 = vld [vmem:[%s284 + $0x518] sm:$0xff]
        %v1696 = vld [vmem:[%s284 + $0x520] sm:$0xff]
        %v1697 = vld [vmem:[%s284 + $0x528] sm:$0xff]
        %v1698 = vld [vmem:[%s284 + $0x530] sm:$0xff]
        %v1699 = vld [vmem:[%s284 + $0x538] sm:$0xff]
        %v1700 = vld [vmem:[%s284 + $0x540] sm:$0xff]
        %v1701 = vld [vmem:[%s284 + $0x548] sm:$0xff]
        %v1702 = vld [vmem:[%s284 + $0x550] sm:$0xff]
        %v1703 = vld [vmem:[%s284 + $0x558] sm:$0xff]
        %v1704 = vld [vmem:[%s284 + $0x560] sm:$0xff]
        %v1705 = vld [vmem:[%s284 + $0x568] sm:$0xff]
        %v1706 = vld [vmem:[%s284 + $0x570] sm:$0xff]
        %v1707 = vld [vmem:[%s284 + $0x578] sm:$0xff]
        %v1708 = vld [vmem:[%s284 + $0x580] sm:$0xff]
        %v1709 = vld [vmem:[%s284 + $0x588] sm:$0xff]
        %v1710 = vld [vmem:[%s284 + $0x590] sm:$0xff]
        %v1711 = vld [vmem:[%s284 + $0x598] sm:$0xff]
        %v1712 = vld [vmem:[%s284 + $0x5a0] sm:$0xff]
        %v1713 = vld [vmem:[%s284 + $0x5a8] sm:$0xff]
        %v1714 = vld [vmem:[%s284 + $0x5b0] sm:$0xff]
        %v1715 = vld [vmem:[%s284 + $0x5b8] sm:$0xff]
        %v1716 = vld [vmem:[%s284 + $0x5c0] sm:$0xff]
        %v1717 = vld [vmem:[%s284 + $0x5c8] sm:$0xff]
        %v1718 = vld [vmem:[%s284 + $0x5d0] sm:$0xff]
        %v1719 = vld [vmem:[%s284 + $0x5d8] sm:$0xff]
        %v1720 = vld [vmem:[%s284 + $0x5e0] sm:$0xff]
        %v1721 = vld [vmem:[%s284 + $0x5e8] sm:$0xff]
        %v1722 = vld [vmem:[%s284 + $0x5f0] sm:$0xff]
        %v1723 = vld [vmem:[%s284 + $0x5f8] sm:$0xff]
        %v1724 = vld [vmem:[%s284 + $0x600] sm:$0xff]
        %v1725 = vld [vmem:[%s284 + $0x608] sm:$0xff]
        %v1726 = vld [vmem:[%s284 + $0x610] sm:$0xff]
        %v1727 = vld [vmem:[%s284 + $0x618] sm:$0xff]
        %v1728 = vld [vmem:[%s284 + $0x620] sm:$0xff]
        %v1729 = vld [vmem:[%s284 + $0x628] sm:$0xff]
        %v1730 = vld [vmem:[%s284 + $0x630] sm:$0xff]
        %v1731 = vld [vmem:[%s284 + $0x638] sm:$0xff]
        %v1732 = vld [vmem:[%s284 + $0x640] sm:$0xff]
        %v1733 = vld [vmem:[%s284 + $0x648] sm:$0xff]
        %v1734 = vld [vmem:[%s284 + $0x650] sm:$0xff]
        %v1735 = vld [vmem:[%s284 + $0x658] sm:$0xff]
        %v1736 = vld [vmem:[%s284 + $0x660] sm:$0xff]
        %v1737 = vld [vmem:[%s284 + $0x668] sm:$0xff]
        %v1738 = vld [vmem:[%s284 + $0x670] sm:$0xff]
        %v1739 = vld [vmem:[%s284 + $0x678] sm:$0xff]
        %v1740 = vld [vmem:[%s284 + $0x680] sm:$0xff]
        %v1741 = vld [vmem:[%s284 + $0x688] sm:$0xff]
        %v1742 = vld [vmem:[%s284 + $0x690] sm:$0xff]
        %v1743 = vld [vmem:[%s284 + $0x698] sm:$0xff]
        %v1744 = vld [vmem:[%s284 + $0x6a0] sm:$0xff]
        %v1745 = vld [vmem:[%s284 + $0x6a8] sm:$0xff]
        %v1746 = vld [vmem:[%s284 + $0x6b0] sm:$0xff]
        %v1747 = vld [vmem:[%s284 + $0x6b8] sm:$0xff]
        %v1748 = vld [vmem:[%s284 + $0x6c0] sm:$0xff]
        %v1749 = vld [vmem:[%s284 + $0x6c8] sm:$0xff]
        %v1750 = vld [vmem:[%s284 + $0x6d0] sm:$0xff]
        %v1751 = vld [vmem:[%s284 + $0x6d8] sm:$0xff]
        %v1752 = vld [vmem:[%s284 + $0x6e0] sm:$0xff]
        %v1753 = vld [vmem:[%s284 + $0x6e8] sm:$0xff]
        %v1754 = vld [vmem:[%s284 + $0x6f0] sm:$0xff]
        %v1755 = vld [vmem:[%s284 + $0x6f8] sm:$0xff]
        %v1756 = vld [vmem:[%s284 + $0x700] sm:$0xff]
        %v1757 = vld [vmem:[%s284 + $0x708] sm:$0xff]
        %v1758 = vld [vmem:[%s284 + $0x710] sm:$0xff]
        %v1759 = vld [vmem:[%s284 + $0x718] sm:$0xff]
        %v1760 = vld [vmem:[%s284 + $0x720] sm:$0xff]
        %v1761 = vld [vmem:[%s284 + $0x728] sm:$0xff]
        %v1762 = vld [vmem:[%s284 + $0x730] sm:$0xff]
        %v1763 = vld [vmem:[%s284 + $0x738] sm:$0xff]
        %v1764 = vld [vmem:[%s284 + $0x740] sm:$0xff]
        %v1765 = vld [vmem:[%s284 + $0x748] sm:$0xff]
        %v1766 = vld [vmem:[%s284 + $0x750] sm:$0xff]
        %v1767 = vld [vmem:[%s284 + $0x758] sm:$0xff]
        %v1768 = vld [vmem:[%s284 + $0x760] sm:$0xff]
        %v1769 = vld [vmem:[%s284 + $0x768] sm:$0xff]
        %v1770 = vld [vmem:[%s284 + $0x770] sm:$0xff]
        %v1771 = vld [vmem:[%s284 + $0x778] sm:$0xff]
        %v1772 = vld [vmem:[%s284 + $0x780] sm:$0xff]
        %v1773 = vld [vmem:[%s284 + $0x788] sm:$0xff]
        %v1774 = vld [vmem:[%s284 + $0x790] sm:$0xff]
        %v1775 = vld [vmem:[%s284 + $0x798] sm:$0xff]
        %v1776 = vld [vmem:[%s284 + $0x7a0] sm:$0xff]
        %v1777 = vld [vmem:[%s284 + $0x7a8] sm:$0xff]
        %v1778 = vld [vmem:[%s284 + $0x7b0] sm:$0xff]
        %v1779 = vld [vmem:[%s284 + $0x7b8] sm:$0xff]
        %v1780 = vld [vmem:[%s284 + $0x7c0] sm:$0xff]
        %v1781 = vld [vmem:[%s284 + $0x7c8] sm:$0xff]
        %v1782 = vld [vmem:[%s284 + $0x7d0] sm:$0xff]
        %v1783 = vld [vmem:[%s284 + $0x7d8] sm:$0xff]
        %v1784 = vld [vmem:[%s284 + $0x7e0] sm:$0xff]
        %v1785 = vld [vmem:[%s284 + $0x7e8] sm:$0xff]
        %v1786 = vld [vmem:[%s284 + $0x7f0] sm:$0xff]
        %v1787 = vld [vmem:[%s284 + $0x7f8] sm:$0xff]
        %v1788 = vld [vmem:[%s294] sm:$0xf]
        %v1790 = vperm.slane %v1788, 0
        %v1791 = vperm.slane %v1788, 1
        %v1792 = vperm.slane %v1788, 2
        %v1793 = vperm.slane %v1788, 3
        %1798 = vmatpush.msra.mxu0 %v1592
        %1799 = vmatpush.msra.mxu0 %v1588
        %1800 = vmatpush.msra.mxu0 %v1584
        %1801 = vmatpush.msra.mxu0 %v1580
        %1802 = vmatpush.msra.mxu0 %v1576
        %1803 = vmatpush.msra.mxu0 %v1572
        %1804 = vmatpush.msra.mxu0 %v1568
        %1805 = vmatpush.msra.mxu0 %v1564
        %1806 = vmatpush.msra.mxu0 %v1560
        %1807 = vmatpush.msra.mxu0 %v1556
        %1808 = vmatpush.msra.mxu0 %v1552
        %1809 = vmatpush.msra.mxu0 %v1548
        %1810 = vmatpush.msra.mxu0 %v1544
        %1811 = vmatpush.msra.mxu0 %v1540
        %1812 = vmatpush.msra.mxu0 %v1536
        %1813 = vmatpush.msra.mxu0 %v1532
        %1814 = vmatmul.f32.gmra.mxu0 %v1432
        %v1815 = vpop.f32.mrf.mxu0
        %v1816 = vadd.f32 %v1790, %v1815
        %1817 = vmatmul.f32.gmra.mxu0 %v1436
        %v1818 = vpop.f32.mrf.mxu0
        %v1819 = vadd.f32 %v1790, %v1818
        %1820 = vmatmul.f32.gmra.mxu0 %v1440
        %v1821 = vpop.f32.mrf.mxu0
        %v1822 = vadd.f32 %v1790, %v1821
        %1823 = vmatmul.f32.gmra.mxu0 %v1444
        %v1824 = vpop.f32.mrf.mxu0
        %v1825 = vadd.f32 %v1790, %v1824
        %1826 = vmatmul.f32.gmra.mxu0 %v1448
        %v1827 = vpop.f32.mrf.mxu0
        %v1828 = vadd.f32 %v1790, %v1827
        %1829 = vmatmul.f32.gmra.mxu0 %v1452
        %v1830 = vpop.f32.mrf.mxu0
        %v1831 = vadd.f32 %v1790, %v1830
        %1832 = vmatmul.f32.gmra.mxu0 %v1456
        %v1833 = vpop.f32.mrf.mxu0
        %v1834 = vadd.f32 %v1790, %v1833
        %1835 = vmatmul.f32.gmra.mxu0 %v1460
        %v1836 = vpop.f32.mrf.mxu0
        %v1837 = vadd.f32 %v1790, %v1836
        %1838 = vmatmul.f32.gmra.mxu0 %v1464
        %v1839 = vpop.f32.mrf.mxu0
        %v1840 = vadd.f32 %v1790, %v1839
        %1841 = vmatmul.f32.gmra.mxu0 %v1468
        %v1842 = vpop.f32.mrf.mxu0
        %v1843 = vadd.f32 %v1790, %v1842
        %1844 = vmatmul.f32.gmra.mxu0 %v1472
        %v1845 = vpop.f32.mrf.mxu0
        %v1846 = vadd.f32 %v1790, %v1845
        %1847 = vmatmul.f32.gmra.mxu0 %v1476
        %v1848 = vpop.f32.mrf.mxu0
        %v1849 = vadd.f32 %v1790, %v1848
        %1850 = vmatmul.f32.gmra.mxu0 %v1480
        %v1851 = vpop.f32.mrf.mxu0
        %v1852 = vadd.f32 %v1790, %v1851
        %1853 = vmatmul.f32.gmra.mxu0 %v1484
        %v1854 = vpop.f32.mrf.mxu0
        %v1855 = vadd.f32 %v1790, %v1854
        %1856 = vmatmul.f32.gmra.mxu0 %v1488
        %v1857 = vpop.f32.mrf.mxu0
        %v1858 = vadd.f32 %v1790, %v1857
        %1859 = vmatmul.f32.gmra.mxu0 %v1492
        %v1860 = vpop.f32.mrf.mxu0
        %v1861 = vadd.f32 %v1790, %v1860
        %1862 = vmatmul.f32.gmra.mxu0 %v1496
        %v1863 = vpop.f32.mrf.mxu0
        %v1864 = vadd.f32 %v1790, %v1863
        %1865 = vmatmul.f32.gmra.mxu0 %v1500
        %v1866 = vpop.f32.mrf.mxu0
        %v1867 = vadd.f32 %v1790, %v1866
        %1868 = vmatmul.f32.gmra.mxu0 %v1504
        %v1869 = vpop.f32.mrf.mxu0
        %v1870 = vadd.f32 %v1790, %v1869
        %1871 = vmatmul.f32.gmra.mxu0 %v1508
        %v1872 = vpop.f32.mrf.mxu0
        %v1873 = vadd.f32 %v1790, %v1872
        %1874 = vmatmul.f32.gmra.mxu0 %v1512
        %v1875 = vpop.f32.mrf.mxu0
        %v1876 = vadd.f32 %v1790, %v1875
        %1877 = vmatmul.f32.gmra.mxu0 %v1516
        %v1878 = vpop.f32.mrf.mxu0
        %v1879 = vadd.f32 %v1790, %v1878
        %1880 = vmatmul.f32.gmra.mxu0 %v1520
        %v1881 = vpop.f32.mrf.mxu0
        %v1882 = vadd.f32 %v1790, %v1881
        %1883 = vmatmul.f32.gmra.mxu0 %v1524
        %v1884 = vpop.f32.mrf.mxu0
        %v1885 = vadd.f32 %v1790, %v1884
        %1886 = vmatmul.f32.gmra.mxu0 %v1528
        %v1887 = vpop.f32.mrf.mxu0
        %v1888 = vadd.f32 %v1790, %v1887
        %1889 = vdwg.mxu0
        %1890 = vmatpush.msra.mxu0 %v1656
        %1891 = vmatpush.msra.mxu0 %v1652
        %1892 = vmatpush.msra.mxu0 %v1648
        %1893 = vmatpush.msra.mxu0 %v1644
        %1894 = vmatpush.msra.mxu0 %v1640
        %1895 = vmatpush.msra.mxu0 %v1636
        %1896 = vmatpush.msra.mxu0 %v1632
        %1897 = vmatpush.msra.mxu0 %v1628
        %1898 = vmatpush.msra.mxu0 %v1624
        %1899 = vmatpush.msra.mxu0 %v1620
        %1900 = vmatpush.msra.mxu0 %v1616
        %1901 = vmatpush.msra.mxu0 %v1612
        %1902 = vmatpush.msra.mxu0 %v1608
        %1903 = vmatpush.msra.mxu0 %v1604
        %1904 = vmatpush.msra.mxu0 %v1600
        %1905 = vmatpush.msra.mxu0 %v1596
        %1906 = vmatmul.f32.gmra.mxu0 %v1433
        %v1907 = vpop.f32.mrf.mxu0
        %v1908 = vadd.f32 %v1816, %v1907
        %1909 = vmatmul.f32.gmra.mxu0 %v1437
        %v1910 = vpop.f32.mrf.mxu0
        %v1911 = vadd.f32 %v1819, %v1910
        %1912 = vmatmul.f32.gmra.mxu0 %v1441
        %v1913 = vpop.f32.mrf.mxu0
        %v1914 = vadd.f32 %v1822, %v1913
        %1915 = vmatmul.f32.gmra.mxu0 %v1445
        %v1916 = vpop.f32.mrf.mxu0
        %v1917 = vadd.f32 %v1825, %v1916
        %1918 = vmatmul.f32.gmra.mxu0 %v1449
        %v1919 = vpop.f32.mrf.mxu0
        %v1920 = vadd.f32 %v1828, %v1919
        %1921 = vmatmul.f32.gmra.mxu0 %v1453
        %v1922 = vpop.f32.mrf.mxu0
        %v1923 = vadd.f32 %v1831, %v1922
        %1924 = vmatmul.f32.gmra.mxu0 %v1457
        %v1925 = vpop.f32.mrf.mxu0
        %v1926 = vadd.f32 %v1834, %v1925
        %1927 = vmatmul.f32.gmra.mxu0 %v1461
        %v1928 = vpop.f32.mrf.mxu0
        %v1929 = vadd.f32 %v1837, %v1928
        %1930 = vmatmul.f32.gmra.mxu0 %v1465
        %v1931 = vpop.f32.mrf.mxu0
        %v1932 = vadd.f32 %v1840, %v1931
        %1933 = vmatmul.f32.gmra.mxu0 %v1469
        %v1934 = vpop.f32.mrf.mxu0
        %v1935 = vadd.f32 %v1843, %v1934
        %1936 = vmatmul.f32.gmra.mxu0 %v1473
        %v1937 = vpop.f32.mrf.mxu0
        %v1938 = vadd.f32 %v1846, %v1937
        %1939 = vmatmul.f32.gmra.mxu0 %v1477
        %v1940 = vpop.f32.mrf.mxu0
        %v1941 = vadd.f32 %v1849, %v1940
        %1942 = vmatmul.f32.gmra.mxu0 %v1481
        %v1943 = vpop.f32.mrf.mxu0
        %v1944 = vadd.f32 %v1852, %v1943
        %1945 = vmatmul.f32.gmra.mxu0 %v1485
        %v1946 = vpop.f32.mrf.mxu0
        %v1947 = vadd.f32 %v1855, %v1946
        %1948 = vmatmul.f32.gmra.mxu0 %v1489
        %v1949 = vpop.f32.mrf.mxu0
        %v1950 = vadd.f32 %v1858, %v1949
        %1951 = vmatmul.f32.gmra.mxu0 %v1493
        %v1952 = vpop.f32.mrf.mxu0
        %v1953 = vadd.f32 %v1861, %v1952
        %1954 = vmatmul.f32.gmra.mxu0 %v1497
        %v1955 = vpop.f32.mrf.mxu0
        %v1956 = vadd.f32 %v1864, %v1955
        %1957 = vmatmul.f32.gmra.mxu0 %v1501
        %v1958 = vpop.f32.mrf.mxu0
        %v1959 = vadd.f32 %v1867, %v1958
        %1960 = vmatmul.f32.gmra.mxu0 %v1505
        %v1961 = vpop.f32.mrf.mxu0
        %v1962 = vadd.f32 %v1870, %v1961
        %1963 = vmatmul.f32.gmra.mxu0 %v1509
        %v1964 = vpop.f32.mrf.mxu0
        %v1965 = vadd.f32 %v1873, %v1964
        %1966 = vmatmul.f32.gmra.mxu0 %v1513
        %v1967 = vpop.f32.mrf.mxu0
        %v1968 = vadd.f32 %v1876, %v1967
        %1969 = vmatmul.f32.gmra.mxu0 %v1517
        %v1970 = vpop.f32.mrf.mxu0
        %v1971 = vadd.f32 %v1879, %v1970
        %1972 = vmatmul.f32.gmra.mxu0 %v1521
        %v1973 = vpop.f32.mrf.mxu0
        %v1974 = vadd.f32 %v1882, %v1973
        %1975 = vmatmul.f32.gmra.mxu0 %v1525
        %v1976 = vpop.f32.mrf.mxu0
        %v1977 = vadd.f32 %v1885, %v1976
        %1978 = vmatmul.f32.gmra.mxu0 %v1529
        %v1979 = vpop.f32.mrf.mxu0
        %v1980 = vadd.f32 %v1888, %v1979
        %1981 = vdwg.mxu0
        %1982 = vmatpush.msra.mxu0 %v1720
        %1983 = vmatpush.msra.mxu0 %v1716
        %1984 = vmatpush.msra.mxu0 %v1712
        %1985 = vmatpush.msra.mxu0 %v1708
        %1986 = vmatpush.msra.mxu0 %v1704
        %1987 = vmatpush.msra.mxu0 %v1700
        %1988 = vmatpush.msra.mxu0 %v1696
        %1989 = vmatpush.msra.mxu0 %v1692
        %1990 = vmatpush.msra.mxu0 %v1688
        %1991 = vmatpush.msra.mxu0 %v1684
        %1992 = vmatpush.msra.mxu0 %v1680
        %1993 = vmatpush.msra.mxu0 %v1676
        %1994 = vmatpush.msra.mxu0 %v1672
        %1995 = vmatpush.msra.mxu0 %v1668
        %1996 = vmatpush.msra.mxu0 %v1664
        %1997 = vmatpush.msra.mxu0 %v1660
        %1998 = vmatmul.f32.gmra.mxu0 %v1434
        %v1999 = vpop.f32.mrf.mxu0
        %v2000 = vadd.f32 %v1908, %v1999
        %2001 = vmatmul.f32.gmra.mxu0 %v1438
        %v2002 = vpop.f32.mrf.mxu0
        %v2003 = vadd.f32 %v1911, %v2002
        %2004 = vmatmul.f32.gmra.mxu0 %v1442
        %v2005 = vpop.f32.mrf.mxu0
        %v2006 = vadd.f32 %v1914, %v2005
        %2007 = vmatmul.f32.gmra.mxu0 %v1446
        %v2008 = vpop.f32.mrf.mxu0
        %v2009 = vadd.f32 %v1917, %v2008
        %2010 = vmatmul.f32.gmra.mxu0 %v1450
        %v2011 = vpop.f32.mrf.mxu0
        %v2012 = vadd.f32 %v1920, %v2011
        %2013 = vmatmul.f32.gmra.mxu0 %v1454
        %v2014 = vpop.f32.mrf.mxu0
        %v2015 = vadd.f32 %v1923, %v2014
        %2016 = vmatmul.f32.gmra.mxu0 %v1458
        %v2017 = vpop.f32.mrf.mxu0
        %v2018 = vadd.f32 %v1926, %v2017
        %2019 = vmatmul.f32.gmra.mxu0 %v1462
        %v2020 = vpop.f32.mrf.mxu0
        %v2021 = vadd.f32 %v1929, %v2020
        %2022 = vmatmul.f32.gmra.mxu0 %v1466
        %v2023 = vpop.f32.mrf.mxu0
        %v2024 = vadd.f32 %v1932, %v2023
        %2025 = vmatmul.f32.gmra.mxu0 %v1470
        %v2026 = vpop.f32.mrf.mxu0
        %v2027 = vadd.f32 %v1935, %v2026
        %2028 = vmatmul.f32.gmra.mxu0 %v1474
        %v2029 = vpop.f32.mrf.mxu0
        %v2030 = vadd.f32 %v1938, %v2029
        %2031 = vmatmul.f32.gmra.mxu0 %v1478
        %v2032 = vpop.f32.mrf.mxu0
        %v2033 = vadd.f32 %v1941, %v2032
        %2034 = vmatmul.f32.gmra.mxu0 %v1482
        %v2035 = vpop.f32.mrf.mxu0
        %v2036 = vadd.f32 %v1944, %v2035
        %2037 = vmatmul.f32.gmra.mxu0 %v1486
        %v2038 = vpop.f32.mrf.mxu0
        %v2039 = vadd.f32 %v1947, %v2038
        %2040 = vmatmul.f32.gmra.mxu0 %v1490
        %v2041 = vpop.f32.mrf.mxu0
        %v2042 = vadd.f32 %v1950, %v2041
        %2043 = vmatmul.f32.gmra.mxu0 %v1494
        %v2044 = vpop.f32.mrf.mxu0
        %v2045 = vadd.f32 %v1953, %v2044
        %2046 = vmatmul.f32.gmra.mxu0 %v1498
        %v2047 = vpop.f32.mrf.mxu0
        %v2048 = vadd.f32 %v1956, %v2047
        %2049 = vmatmul.f32.gmra.mxu0 %v1502
        %v2050 = vpop.f32.mrf.mxu0
        %v2051 = vadd.f32 %v1959, %v2050
        %2052 = vmatmul.f32.gmra.mxu0 %v1506
        %v2053 = vpop.f32.mrf.mxu0
        %v2054 = vadd.f32 %v1962, %v2053
        %2055 = vmatmul.f32.gmra.mxu0 %v1510
        %v2056 = vpop.f32.mrf.mxu0
        %v2057 = vadd.f32 %v1965, %v2056
        %2058 = vmatmul.f32.gmra.mxu0 %v1514
        %v2059 = vpop.f32.mrf.mxu0
        %v2060 = vadd.f32 %v1968, %v2059
        %2061 = vmatmul.f32.gmra.mxu0 %v1518
        %v2062 = vpop.f32.mrf.mxu0
        %v2063 = vadd.f32 %v1971, %v2062
        %2064 = vmatmul.f32.gmra.mxu0 %v1522
        %v2065 = vpop.f32.mrf.mxu0
        %v2066 = vadd.f32 %v1974, %v2065
        %2067 = vmatmul.f32.gmra.mxu0 %v1526
        %v2068 = vpop.f32.mrf.mxu0
        %v2069 = vadd.f32 %v1977, %v2068
        %2070 = vmatmul.f32.gmra.mxu0 %v1530
        %v2071 = vpop.f32.mrf.mxu0
        %v2072 = vadd.f32 %v1980, %v2071
        %2073 = vdwg.mxu0
        %2074 = vmatpush.msra.mxu0 %v1784
        %2075 = vmatpush.msra.mxu0 %v1780
        %2076 = vmatpush.msra.mxu0 %v1776
        %2077 = vmatpush.msra.mxu0 %v1772
        %2078 = vmatpush.msra.mxu0 %v1768
        %2079 = vmatpush.msra.mxu0 %v1764
        %2080 = vmatpush.msra.mxu0 %v1760
        %2081 = vmatpush.msra.mxu0 %v1756
        %2082 = vmatpush.msra.mxu0 %v1752
        %2083 = vmatpush.msra.mxu0 %v1748
        %2084 = vmatpush.msra.mxu0 %v1744
        %2085 = vmatpush.msra.mxu0 %v1740
        %2086 = vmatpush.msra.mxu0 %v1736
        %2087 = vmatpush.msra.mxu0 %v1732
        %2088 = vmatpush.msra.mxu0 %v1728
        %2089 = vmatpush.msra.mxu0 %v1724
        %2090 = vmatmul.f32.gmra.mxu0 %v1435
        %v2091 = vpop.f32.mrf.mxu0
        %v2092 = vadd.f32 %v2000, %v2091
        %2093 = vmatmul.f32.gmra.mxu0 %v1439
        %v2094 = vpop.f32.mrf.mxu0
        %v2095 = vadd.f32 %v2003, %v2094
        %2096 = vmatmul.f32.gmra.mxu0 %v1443
        %v2097 = vpop.f32.mrf.mxu0
        %v2098 = vadd.f32 %v2006, %v2097
        %2099 = vmatmul.f32.gmra.mxu0 %v1447
        %v2100 = vpop.f32.mrf.mxu0
        %v2101 = vadd.f32 %v2009, %v2100
        %2102 = vmatmul.f32.gmra.mxu0 %v1451
        %v2103 = vpop.f32.mrf.mxu0
        %v2104 = vadd.f32 %v2012, %v2103
        %2105 = vmatmul.f32.gmra.mxu0 %v1455
        %v2106 = vpop.f32.mrf.mxu0
        %v2107 = vadd.f32 %v2015, %v2106
        %2108 = vmatmul.f32.gmra.mxu0 %v1459
        %v2109 = vpop.f32.mrf.mxu0
        %v2110 = vadd.f32 %v2018, %v2109
        %2111 = vmatmul.f32.gmra.mxu0 %v1463
        %v2112 = vpop.f32.mrf.mxu0
        %v2113 = vadd.f32 %v2021, %v2112
        %2114 = vmatmul.f32.gmra.mxu0 %v1467
        %v2115 = vpop.f32.mrf.mxu0
        %v2116 = vadd.f32 %v2024, %v2115
        %2117 = vmatmul.f32.gmra.mxu0 %v1471
        %v2118 = vpop.f32.mrf.mxu0
        %v2119 = vadd.f32 %v2027, %v2118
        %2120 = vmatmul.f32.gmra.mxu0 %v1475
        %v2121 = vpop.f32.mrf.mxu0
        %v2122 = vadd.f32 %v2030, %v2121
        %2123 = vmatmul.f32.gmra.mxu0 %v1479
        %v2124 = vpop.f32.mrf.mxu0
        %v2125 = vadd.f32 %v2033, %v2124
        %2126 = vmatmul.f32.gmra.mxu0 %v1483
        %v2127 = vpop.f32.mrf.mxu0
        %v2128 = vadd.f32 %v2036, %v2127
        %2129 = vmatmul.f32.gmra.mxu0 %v1487
        %v2130 = vpop.f32.mrf.mxu0
        %v2131 = vadd.f32 %v2039, %v2130
        %2132 = vmatmul.f32.gmra.mxu0 %v1491
        %v2133 = vpop.f32.mrf.mxu0
        %v2134 = vadd.f32 %v2042, %v2133
        %2135 = vmatmul.f32.gmra.mxu0 %v1495
        %v2136 = vpop.f32.mrf.mxu0
        %v2137 = vadd.f32 %v2045, %v2136
        %2138 = vmatmul.f32.gmra.mxu0 %v1499
        %v2139 = vpop.f32.mrf.mxu0
        %v2140 = vadd.f32 %v2048, %v2139
        %2141 = vmatmul.f32.gmra.mxu0 %v1503
        %v2142 = vpop.f32.mrf.mxu0
        %v2143 = vadd.f32 %v2051, %v2142
        %2144 = vmatmul.f32.gmra.mxu0 %v1507
        %v2145 = vpop.f32.mrf.mxu0
        %v2146 = vadd.f32 %v2054, %v2145
        %2147 = vmatmul.f32.gmra.mxu0 %v1511
        %v2148 = vpop.f32.mrf.mxu0
        %v2149 = vadd.f32 %v2057, %v2148
        %2150 = vmatmul.f32.gmra.mxu0 %v1515
        %v2151 = vpop.f32.mrf.mxu0
        %v2152 = vadd.f32 %v2060, %v2151
        %2153 = vmatmul.f32.gmra.mxu0 %v1519
        %v2154 = vpop.f32.mrf.mxu0
        %v2155 = vadd.f32 %v2063, %v2154
        %2156 = vmatmul.f32.gmra.mxu0 %v1523
        %v2157 = vpop.f32.mrf.mxu0
        %v2158 = vadd.f32 %v2066, %v2157
        %2159 = vmatmul.f32.gmra.mxu0 %v1527
        %v2160 = vpop.f32.mrf.mxu0
        %v2161 = vadd.f32 %v2069, %v2160
        %2162 = vmatmul.f32.gmra.mxu0 %v1531
        %v2163 = vpop.f32.mrf.mxu0
        %v2164 = vadd.f32 %v2072, %v2163
        %2165 = vdwg.mxu0
        %2166 = vmatpush.msra.mxu0 %v1593
        %2167 = vmatpush.msra.mxu0 %v1589
        %2168 = vmatpush.msra.mxu0 %v1585
        %2169 = vmatpush.msra.mxu0 %v1581
        %2170 = vmatpush.msra.mxu0 %v1577
        %2171 = vmatpush.msra.mxu0 %v1573
        %2172 = vmatpush.msra.mxu0 %v1569
        %2173 = vmatpush.msra.mxu0 %v1565
        %2174 = vmatpush.msra.mxu0 %v1561
        %2175 = vmatpush.msra.mxu0 %v1557
        %2176 = vmatpush.msra.mxu0 %v1553
        %2177 = vmatpush.msra.mxu0 %v1549
        %2178 = vmatpush.msra.mxu0 %v1545
        %2179 = vmatpush.msra.mxu0 %v1541
        %2180 = vmatpush.msra.mxu0 %v1537
        %2181 = vmatpush.msra.mxu0 %v1533
        %2182 = vmatmul.f32.gmra.mxu0 %v1432
        %v2183 = vpop.f32.mrf.mxu0
        %v2184 = vadd.f32 %v1791, %v2183
        %2185 = vmatmul.f32.gmra.mxu0 %v1436
        %v2186 = vpop.f32.mrf.mxu0
        %v2187 = vadd.f32 %v1791, %v2186
        %2188 = vmatmul.f32.gmra.mxu0 %v1440
        %v2189 = vpop.f32.mrf.mxu0
        %v2190 = vadd.f32 %v1791, %v2189
        %2191 = vmatmul.f32.gmra.mxu0 %v1444
        %v2192 = vpop.f32.mrf.mxu0
        %v2193 = vadd.f32 %v1791, %v2192
        %2194 = vmatmul.f32.gmra.mxu0 %v1448
        %v2195 = vpop.f32.mrf.mxu0
        %v2196 = vadd.f32 %v1791, %v2195
        %2197 = vmatmul.f32.gmra.mxu0 %v1452
        %v2198 = vpop.f32.mrf.mxu0
        %v2199 = vadd.f32 %v1791, %v2198
        %2200 = vmatmul.f32.gmra.mxu0 %v1456
        %v2201 = vpop.f32.mrf.mxu0
        %v2202 = vadd.f32 %v1791, %v2201
        %2203 = vmatmul.f32.gmra.mxu0 %v1460
        %v2204 = vpop.f32.mrf.mxu0
        %v2205 = vadd.f32 %v1791, %v2204
        %2206 = vmatmul.f32.gmra.mxu0 %v1464
        %v2207 = vpop.f32.mrf.mxu0
        %v2208 = vadd.f32 %v1791, %v2207
        %2209 = vmatmul.f32.gmra.mxu0 %v1468
        %v2210 = vpop.f32.mrf.mxu0
        %v2211 = vadd.f32 %v1791, %v2210
        %2212 = vmatmul.f32.gmra.mxu0 %v1472
        %v2213 = vpop.f32.mrf.mxu0
        %v2214 = vadd.f32 %v1791, %v2213
        %2215 = vmatmul.f32.gmra.mxu0 %v1476
        %v2216 = vpop.f32.mrf.mxu0
        %v2217 = vadd.f32 %v1791, %v2216
        %2218 = vmatmul.f32.gmra.mxu0 %v1480
        %v2219 = vpop.f32.mrf.mxu0
        %v2220 = vadd.f32 %v1791, %v2219
        %2221 = vmatmul.f32.gmra.mxu0 %v1484
        %v2222 = vpop.f32.mrf.mxu0
        %v2223 = vadd.f32 %v1791, %v2222
        %2224 = vmatmul.f32.gmra.mxu0 %v1488
        %v2225 = vpop.f32.mrf.mxu0
        %v2226 = vadd.f32 %v1791, %v2225
        %2227 = vmatmul.f32.gmra.mxu0 %v1492
        %v2228 = vpop.f32.mrf.mxu0
        %v2229 = vadd.f32 %v1791, %v2228
        %2230 = vmatmul.f32.gmra.mxu0 %v1496
        %v2231 = vpop.f32.mrf.mxu0
        %v2232 = vadd.f32 %v1791, %v2231
        %2233 = vmatmul.f32.gmra.mxu0 %v1500
        %v2234 = vpop.f32.mrf.mxu0
        %v2235 = vadd.f32 %v1791, %v2234
        %2236 = vmatmul.f32.gmra.mxu0 %v1504
        %v2237 = vpop.f32.mrf.mxu0
        %v2238 = vadd.f32 %v1791, %v2237
        %2239 = vmatmul.f32.gmra.mxu0 %v1508
        %v2240 = vpop.f32.mrf.mxu0
        %v2241 = vadd.f32 %v1791, %v2240
        %2242 = vmatmul.f32.gmra.mxu0 %v1512
        %v2243 = vpop.f32.mrf.mxu0
        %v2244 = vadd.f32 %v1791, %v2243
        %2245 = vmatmul.f32.gmra.mxu0 %v1516
        %v2246 = vpop.f32.mrf.mxu0
        %v2247 = vadd.f32 %v1791, %v2246
        %2248 = vmatmul.f32.gmra.mxu0 %v1520
        %v2249 = vpop.f32.mrf.mxu0
        %v2250 = vadd.f32 %v1791, %v2249
        %2251 = vmatmul.f32.gmra.mxu0 %v1524
        %v2252 = vpop.f32.mrf.mxu0
        %v2253 = vadd.f32 %v1791, %v2252
        %2254 = vmatmul.f32.gmra.mxu0 %v1528
        %v2255 = vpop.f32.mrf.mxu0
        %v2256 = vadd.f32 %v1791, %v2255
        %2257 = vdwg.mxu0
        %2258 = vmatpush.msra.mxu0 %v1657
        %2259 = vmatpush.msra.mxu0 %v1653
        %2260 = vmatpush.msra.mxu0 %v1649
        %2261 = vmatpush.msra.mxu0 %v1645
        %2262 = vmatpush.msra.mxu0 %v1641
        %2263 = vmatpush.msra.mxu0 %v1637
        %2264 = vmatpush.msra.mxu0 %v1633
        %2265 = vmatpush.msra.mxu0 %v1629
        %2266 = vmatpush.msra.mxu0 %v1625
        %2267 = vmatpush.msra.mxu0 %v1621
        %2268 = vmatpush.msra.mxu0 %v1617
        %2269 = vmatpush.msra.mxu0 %v1613
        %2270 = vmatpush.msra.mxu0 %v1609
        %2271 = vmatpush.msra.mxu0 %v1605
        %2272 = vmatpush.msra.mxu0 %v1601
        %2273 = vmatpush.msra.mxu0 %v1597
        %2274 = vmatmul.f32.gmra.mxu0 %v1433
        %v2275 = vpop.f32.mrf.mxu0
        %v2276 = vadd.f32 %v2184, %v2275
        %2277 = vmatmul.f32.gmra.mxu0 %v1437
        %v2278 = vpop.f32.mrf.mxu0
        %v2279 = vadd.f32 %v2187, %v2278
        %2280 = vmatmul.f32.gmra.mxu0 %v1441
        %v2281 = vpop.f32.mrf.mxu0
        %v2282 = vadd.f32 %v2190, %v2281
        %2283 = vmatmul.f32.gmra.mxu0 %v1445
        %v2284 = vpop.f32.mrf.mxu0
        %v2285 = vadd.f32 %v2193, %v2284
        %2286 = vmatmul.f32.gmra.mxu0 %v1449
        %v2287 = vpop.f32.mrf.mxu0
        %v2288 = vadd.f32 %v2196, %v2287
        %2289 = vmatmul.f32.gmra.mxu0 %v1453
        %v2290 = vpop.f32.mrf.mxu0
        %v2291 = vadd.f32 %v2199, %v2290
        %2292 = vmatmul.f32.gmra.mxu0 %v1457
        %v2293 = vpop.f32.mrf.mxu0
        %v2294 = vadd.f32 %v2202, %v2293
        %2295 = vmatmul.f32.gmra.mxu0 %v1461
        %v2296 = vpop.f32.mrf.mxu0
        %v2297 = vadd.f32 %v2205, %v2296
        %2298 = vmatmul.f32.gmra.mxu0 %v1465
        %v2299 = vpop.f32.mrf.mxu0
        %v2300 = vadd.f32 %v2208, %v2299
        %2301 = vmatmul.f32.gmra.mxu0 %v1469
        %v2302 = vpop.f32.mrf.mxu0
        %v2303 = vadd.f32 %v2211, %v2302
        %2304 = vmatmul.f32.gmra.mxu0 %v1473
        %v2305 = vpop.f32.mrf.mxu0
        %v2306 = vadd.f32 %v2214, %v2305
        %2307 = vmatmul.f32.gmra.mxu0 %v1477
        %v2308 = vpop.f32.mrf.mxu0
        %v2309 = vadd.f32 %v2217, %v2308
        %2310 = vmatmul.f32.gmra.mxu0 %v1481
        %v2311 = vpop.f32.mrf.mxu0
        %v2312 = vadd.f32 %v2220, %v2311
        %2313 = vmatmul.f32.gmra.mxu0 %v1485
        %v2314 = vpop.f32.mrf.mxu0
        %v2315 = vadd.f32 %v2223, %v2314
        %2316 = vmatmul.f32.gmra.mxu0 %v1489
        %v2317 = vpop.f32.mrf.mxu0
        %v2318 = vadd.f32 %v2226, %v2317
        %2319 = vmatmul.f32.gmra.mxu0 %v1493
        %v2320 = vpop.f32.mrf.mxu0
        %v2321 = vadd.f32 %v2229, %v2320
        %2322 = vmatmul.f32.gmra.mxu0 %v1497
        %v2323 = vpop.f32.mrf.mxu0
        %v2324 = vadd.f32 %v2232, %v2323
        %2325 = vmatmul.f32.gmra.mxu0 %v1501
        %v2326 = vpop.f32.mrf.mxu0
        %v2327 = vadd.f32 %v2235, %v2326
        %2328 = vmatmul.f32.gmra.mxu0 %v1505
        %v2329 = vpop.f32.mrf.mxu0
        %v2330 = vadd.f32 %v2238, %v2329
        %2331 = vmatmul.f32.gmra.mxu0 %v1509
        %v2332 = vpop.f32.mrf.mxu0
        %v2333 = vadd.f32 %v2241, %v2332
        %2334 = vmatmul.f32.gmra.mxu0 %v1513
        %v2335 = vpop.f32.mrf.mxu0
        %v2336 = vadd.f32 %v2244, %v2335
        %2337 = vmatmul.f32.gmra.mxu0 %v1517
        %v2338 = vpop.f32.mrf.mxu0
        %v2339 = vadd.f32 %v2247, %v2338
        %2340 = vmatmul.f32.gmra.mxu0 %v1521
        %v2341 = vpop.f32.mrf.mxu0
        %v2342 = vadd.f32 %v2250, %v2341
        %2343 = vmatmul.f32.gmra.mxu0 %v1525
        %v2344 = vpop.f32.mrf.mxu0
        %v2345 = vadd.f32 %v2253, %v2344
        %2346 = vmatmul.f32.gmra.mxu0 %v1529
        %v2347 = vpop.f32.mrf.mxu0
        %v2348 = vadd.f32 %v2256, %v2347
        %2349 = vdwg.mxu0
        %2350 = vmatpush.msra.mxu0 %v1721
        %2351 = vmatpush.msra.mxu0 %v1717
        %2352 = vmatpush.msra.mxu0 %v1713
        %2353 = vmatpush.msra.mxu0 %v1709
        %2354 = vmatpush.msra.mxu0 %v1705
        %2355 = vmatpush.msra.mxu0 %v1701
        %2356 = vmatpush.msra.mxu0 %v1697
        %2357 = vmatpush.msra.mxu0 %v1693
        %2358 = vmatpush.msra.mxu0 %v1689
        %2359 = vmatpush.msra.mxu0 %v1685
        %2360 = vmatpush.msra.mxu0 %v1681
        %2361 = vmatpush.msra.mxu0 %v1677
        %2362 = vmatpush.msra.mxu0 %v1673
        %2363 = vmatpush.msra.mxu0 %v1669
        %2364 = vmatpush.msra.mxu0 %v1665
        %2365 = vmatpush.msra.mxu0 %v1661
        %2366 = vmatmul.f32.gmra.mxu0 %v1434
        %v2367 = vpop.f32.mrf.mxu0
        %v2368 = vadd.f32 %v2276, %v2367
        %2369 = vmatmul.f32.gmra.mxu0 %v1438
        %v2370 = vpop.f32.mrf.mxu0
        %v2371 = vadd.f32 %v2279, %v2370
        %2372 = vmatmul.f32.gmra.mxu0 %v1442
        %v2373 = vpop.f32.mrf.mxu0
        %v2374 = vadd.f32 %v2282, %v2373
        %2375 = vmatmul.f32.gmra.mxu0 %v1446
        %v2376 = vpop.f32.mrf.mxu0
        %v2377 = vadd.f32 %v2285, %v2376
        %2378 = vmatmul.f32.gmra.mxu0 %v1450
        %v2379 = vpop.f32.mrf.mxu0
        %v2380 = vadd.f32 %v2288, %v2379
        %2381 = vmatmul.f32.gmra.mxu0 %v1454
        %v2382 = vpop.f32.mrf.mxu0
        %v2383 = vadd.f32 %v2291, %v2382
        %2384 = vmatmul.f32.gmra.mxu0 %v1458
        %v2385 = vpop.f32.mrf.mxu0
        %v2386 = vadd.f32 %v2294, %v2385
        %2387 = vmatmul.f32.gmra.mxu0 %v1462
        %v2388 = vpop.f32.mrf.mxu0
        %v2389 = vadd.f32 %v2297, %v2388
        %2390 = vmatmul.f32.gmra.mxu0 %v1466
        %v2391 = vpop.f32.mrf.mxu0
        %v2392 = vadd.f32 %v2300, %v2391
        %2393 = vmatmul.f32.gmra.mxu0 %v1470
        %v2394 = vpop.f32.mrf.mxu0
        %v2395 = vadd.f32 %v2303, %v2394
        %2396 = vmatmul.f32.gmra.mxu0 %v1474
        %v2397 = vpop.f32.mrf.mxu0
        %v2398 = vadd.f32 %v2306, %v2397
        %2399 = vmatmul.f32.gmra.mxu0 %v1478
        %v2400 = vpop.f32.mrf.mxu0
        %v2401 = vadd.f32 %v2309, %v2400
        %2402 = vmatmul.f32.gmra.mxu0 %v1482
        %v2403 = vpop.f32.mrf.mxu0
        %v2404 = vadd.f32 %v2312, %v2403
        %2405 = vmatmul.f32.gmra.mxu0 %v1486
        %v2406 = vpop.f32.mrf.mxu0
        %v2407 = vadd.f32 %v2315, %v2406
        %2408 = vmatmul.f32.gmra.mxu0 %v1490
        %v2409 = vpop.f32.mrf.mxu0
        %v2410 = vadd.f32 %v2318, %v2409
        %2411 = vmatmul.f32.gmra.mxu0 %v1494
        %v2412 = vpop.f32.mrf.mxu0
        %v2413 = vadd.f32 %v2321, %v2412
        %2414 = vmatmul.f32.gmra.mxu0 %v1498
        %v2415 = vpop.f32.mrf.mxu0
        %v2416 = vadd.f32 %v2324, %v2415
        %2417 = vmatmul.f32.gmra.mxu0 %v1502
        %v2418 = vpop.f32.mrf.mxu0
        %v2419 = vadd.f32 %v2327, %v2418
        %2420 = vmatmul.f32.gmra.mxu0 %v1506
        %v2421 = vpop.f32.mrf.mxu0
        %v2422 = vadd.f32 %v2330, %v2421
        %2423 = vmatmul.f32.gmra.mxu0 %v1510
        %v2424 = vpop.f32.mrf.mxu0
        %v2425 = vadd.f32 %v2333, %v2424
        %2426 = vmatmul.f32.gmra.mxu0 %v1514
        %v2427 = vpop.f32.mrf.mxu0
        %v2428 = vadd.f32 %v2336, %v2427
        %2429 = vmatmul.f32.gmra.mxu0 %v1518
        %v2430 = vpop.f32.mrf.mxu0
        %v2431 = vadd.f32 %v2339, %v2430
        %2432 = vmatmul.f32.gmra.mxu0 %v1522
        %v2433 = vpop.f32.mrf.mxu0
        %v2434 = vadd.f32 %v2342, %v2433
        %2435 = vmatmul.f32.gmra.mxu0 %v1526
        %v2436 = vpop.f32.mrf.mxu0
        %v2437 = vadd.f32 %v2345, %v2436
        %2438 = vmatmul.f32.gmra.mxu0 %v1530
        %v2439 = vpop.f32.mrf.mxu0
        %v2440 = vadd.f32 %v2348, %v2439
        %2441 = vdwg.mxu0
        %2442 = vmatpush.msra.mxu0 %v1785
        %2443 = vmatpush.msra.mxu0 %v1781
        %2444 = vmatpush.msra.mxu0 %v1777
        %2445 = vmatpush.msra.mxu0 %v1773
        %2446 = vmatpush.msra.mxu0 %v1769
        %2447 = vmatpush.msra.mxu0 %v1765
        %2448 = vmatpush.msra.mxu0 %v1761
        %2449 = vmatpush.msra.mxu0 %v1757
        %2450 = vmatpush.msra.mxu0 %v1753
        %2451 = vmatpush.msra.mxu0 %v1749
        %2452 = vmatpush.msra.mxu0 %v1745
        %2453 = vmatpush.msra.mxu0 %v1741
        %2454 = vmatpush.msra.mxu0 %v1737
        %2455 = vmatpush.msra.mxu0 %v1733
        %2456 = vmatpush.msra.mxu0 %v1729
        %2457 = vmatpush.msra.mxu0 %v1725
        %2458 = vmatmul.f32.gmra.mxu0 %v1435
        %v2459 = vpop.f32.mrf.mxu0
        %v2460 = vadd.f32 %v2368, %v2459
        %2461 = vmatmul.f32.gmra.mxu0 %v1439
        %v2462 = vpop.f32.mrf.mxu0
        %v2463 = vadd.f32 %v2371, %v2462
        %2464 = vmatmul.f32.gmra.mxu0 %v1443
        %v2465 = vpop.f32.mrf.mxu0
        %v2466 = vadd.f32 %v2374, %v2465
        %2467 = vmatmul.f32.gmra.mxu0 %v1447
        %v2468 = vpop.f32.mrf.mxu0
        %v2469 = vadd.f32 %v2377, %v2468
        %2470 = vmatmul.f32.gmra.mxu0 %v1451
        %v2471 = vpop.f32.mrf.mxu0
        %v2472 = vadd.f32 %v2380, %v2471
        %2473 = vmatmul.f32.gmra.mxu0 %v1455
        %v2474 = vpop.f32.mrf.mxu0
        %v2475 = vadd.f32 %v2383, %v2474
        %2476 = vmatmul.f32.gmra.mxu0 %v1459
        %v2477 = vpop.f32.mrf.mxu0
        %v2478 = vadd.f32 %v2386, %v2477
        %2479 = vmatmul.f32.gmra.mxu0 %v1463
        %v2480 = vpop.f32.mrf.mxu0
        %v2481 = vadd.f32 %v2389, %v2480
        %2482 = vmatmul.f32.gmra.mxu0 %v1467
        %v2483 = vpop.f32.mrf.mxu0
        %v2484 = vadd.f32 %v2392, %v2483
        %2485 = vmatmul.f32.gmra.mxu0 %v1471
        %v2486 = vpop.f32.mrf.mxu0
        %v2487 = vadd.f32 %v2395, %v2486
        %2488 = vmatmul.f32.gmra.mxu0 %v1475
        %v2489 = vpop.f32.mrf.mxu0
        %v2490 = vadd.f32 %v2398, %v2489
        %2491 = vmatmul.f32.gmra.mxu0 %v1479
        %v2492 = vpop.f32.mrf.mxu0
        %v2493 = vadd.f32 %v2401, %v2492
        %2494 = vmatmul.f32.gmra.mxu0 %v1483
        %v2495 = vpop.f32.mrf.mxu0
        %v2496 = vadd.f32 %v2404, %v2495
        %2497 = vmatmul.f32.gmra.mxu0 %v1487
        %v2498 = vpop.f32.mrf.mxu0
        %v2499 = vadd.f32 %v2407, %v2498
        %2500 = vmatmul.f32.gmra.mxu0 %v1491
        %v2501 = vpop.f32.mrf.mxu0
        %v2502 = vadd.f32 %v2410, %v2501
        %2503 = vmatmul.f32.gmra.mxu0 %v1495
        %v2504 = vpop.f32.mrf.mxu0
        %v2505 = vadd.f32 %v2413, %v2504
        %2506 = vmatmul.f32.gmra.mxu0 %v1499
        %v2507 = vpop.f32.mrf.mxu0
        %v2508 = vadd.f32 %v2416, %v2507
        %2509 = vmatmul.f32.gmra.mxu0 %v1503
        %v2510 = vpop.f32.mrf.mxu0
        %v2511 = vadd.f32 %v2419, %v2510
        %2512 = vmatmul.f32.gmra.mxu0 %v1507
        %v2513 = vpop.f32.mrf.mxu0
        %v2514 = vadd.f32 %v2422, %v2513
        %2515 = vmatmul.f32.gmra.mxu0 %v1511
        %v2516 = vpop.f32.mrf.mxu0
        %v2517 = vadd.f32 %v2425, %v2516
        %2518 = vmatmul.f32.gmra.mxu0 %v1515
        %v2519 = vpop.f32.mrf.mxu0
        %v2520 = vadd.f32 %v2428, %v2519
        %2521 = vmatmul.f32.gmra.mxu0 %v1519
        %v2522 = vpop.f32.mrf.mxu0
        %v2523 = vadd.f32 %v2431, %v2522
        %2524 = vmatmul.f32.gmra.mxu0 %v1523
        %v2525 = vpop.f32.mrf.mxu0
        %v2526 = vadd.f32 %v2434, %v2525
        %2527 = vmatmul.f32.gmra.mxu0 %v1527
        %v2528 = vpop.f32.mrf.mxu0
        %v2529 = vadd.f32 %v2437, %v2528
        %2530 = vmatmul.f32.gmra.mxu0 %v1531
        %v2531 = vpop.f32.mrf.mxu0
        %v2532 = vadd.f32 %v2440, %v2531
        %2533 = vdwg.mxu0
        %2534 = vmatpush.msra.mxu0 %v1594
        %2535 = vmatpush.msra.mxu0 %v1590
        %2536 = vmatpush.msra.mxu0 %v1586
        %2537 = vmatpush.msra.mxu0 %v1582
        %2538 = vmatpush.msra.mxu0 %v1578
        %2539 = vmatpush.msra.mxu0 %v1574
        %2540 = vmatpush.msra.mxu0 %v1570
        %2541 = vmatpush.msra.mxu0 %v1566
        %2542 = vmatpush.msra.mxu0 %v1562
        %2543 = vmatpush.msra.mxu0 %v1558
        %2544 = vmatpush.msra.mxu0 %v1554
        %2545 = vmatpush.msra.mxu0 %v1550
        %2546 = vmatpush.msra.mxu0 %v1546
        %2547 = vmatpush.msra.mxu0 %v1542
        %2548 = vmatpush.msra.mxu0 %v1538
        %2549 = vmatpush.msra.mxu0 %v1534
        %2550 = vmatmul.f32.gmra.mxu0 %v1432
        %v2551 = vpop.f32.mrf.mxu0
        %v2552 = vadd.f32 %v1792, %v2551
        %2553 = vmatmul.f32.gmra.mxu0 %v1436
        %v2554 = vpop.f32.mrf.mxu0
        %v2555 = vadd.f32 %v1792, %v2554
        %2556 = vmatmul.f32.gmra.mxu0 %v1440
        %v2557 = vpop.f32.mrf.mxu0
        %v2558 = vadd.f32 %v1792, %v2557
        %2559 = vmatmul.f32.gmra.mxu0 %v1444
        %v2560 = vpop.f32.mrf.mxu0
        %v2561 = vadd.f32 %v1792, %v2560
        %2562 = vmatmul.f32.gmra.mxu0 %v1448
        %v2563 = vpop.f32.mrf.mxu0
        %v2564 = vadd.f32 %v1792, %v2563
        %2565 = vmatmul.f32.gmra.mxu0 %v1452
        %v2566 = vpop.f32.mrf.mxu0
        %v2567 = vadd.f32 %v1792, %v2566
        %2568 = vmatmul.f32.gmra.mxu0 %v1456
        %v2569 = vpop.f32.mrf.mxu0
        %v2570 = vadd.f32 %v1792, %v2569
        %2571 = vmatmul.f32.gmra.mxu0 %v1460
        %v2572 = vpop.f32.mrf.mxu0
        %v2573 = vadd.f32 %v1792, %v2572
        %2574 = vmatmul.f32.gmra.mxu0 %v1464
        %v2575 = vpop.f32.mrf.mxu0
        %v2576 = vadd.f32 %v1792, %v2575
        %2577 = vmatmul.f32.gmra.mxu0 %v1468
        %v2578 = vpop.f32.mrf.mxu0
        %v2579 = vadd.f32 %v1792, %v2578
        %2580 = vmatmul.f32.gmra.mxu0 %v1472
        %v2581 = vpop.f32.mrf.mxu0
        %v2582 = vadd.f32 %v1792, %v2581
        %2583 = vmatmul.f32.gmra.mxu0 %v1476
        %v2584 = vpop.f32.mrf.mxu0
        %v2585 = vadd.f32 %v1792, %v2584
        %2586 = vmatmul.f32.gmra.mxu0 %v1480
        %v2587 = vpop.f32.mrf.mxu0
        %v2588 = vadd.f32 %v1792, %v2587
        %2589 = vmatmul.f32.gmra.mxu0 %v1484
        %v2590 = vpop.f32.mrf.mxu0
        %v2591 = vadd.f32 %v1792, %v2590
        %2592 = vmatmul.f32.gmra.mxu0 %v1488
        %v2593 = vpop.f32.mrf.mxu0
        %v2594 = vadd.f32 %v1792, %v2593
        %2595 = vmatmul.f32.gmra.mxu0 %v1492
        %v2596 = vpop.f32.mrf.mxu0
        %v2597 = vadd.f32 %v1792, %v2596
        %2598 = vmatmul.f32.gmra.mxu0 %v1496
        %v2599 = vpop.f32.mrf.mxu0
        %v2600 = vadd.f32 %v1792, %v2599
        %2601 = vmatmul.f32.gmra.mxu0 %v1500
        %v2602 = vpop.f32.mrf.mxu0
        %v2603 = vadd.f32 %v1792, %v2602
        %2604 = vmatmul.f32.gmra.mxu0 %v1504
        %v2605 = vpop.f32.mrf.mxu0
        %v2606 = vadd.f32 %v1792, %v2605
        %2607 = vmatmul.f32.gmra.mxu0 %v1508
        %v2608 = vpop.f32.mrf.mxu0
        %v2609 = vadd.f32 %v1792, %v2608
        %2610 = vmatmul.f32.gmra.mxu0 %v1512
        %v2611 = vpop.f32.mrf.mxu0
        %v2612 = vadd.f32 %v1792, %v2611
        %2613 = vmatmul.f32.gmra.mxu0 %v1516
        %v2614 = vpop.f32.mrf.mxu0
        %v2615 = vadd.f32 %v1792, %v2614
        %2616 = vmatmul.f32.gmra.mxu0 %v1520
        %v2617 = vpop.f32.mrf.mxu0
        %v2618 = vadd.f32 %v1792, %v2617
        %2619 = vmatmul.f32.gmra.mxu0 %v1524
        %v2620 = vpop.f32.mrf.mxu0
        %v2621 = vadd.f32 %v1792, %v2620
        %2622 = vmatmul.f32.gmra.mxu0 %v1528
        %v2623 = vpop.f32.mrf.mxu0
        %v2624 = vadd.f32 %v1792, %v2623
        %2625 = vdwg.mxu0
        %2626 = vmatpush.msra.mxu0 %v1658
        %2627 = vmatpush.msra.mxu0 %v1654
        %2628 = vmatpush.msra.mxu0 %v1650
        %2629 = vmatpush.msra.mxu0 %v1646
        %2630 = vmatpush.msra.mxu0 %v1642
        %2631 = vmatpush.msra.mxu0 %v1638
        %2632 = vmatpush.msra.mxu0 %v1634
        %2633 = vmatpush.msra.mxu0 %v1630
        %2634 = vmatpush.msra.mxu0 %v1626
        %2635 = vmatpush.msra.mxu0 %v1622
        %2636 = vmatpush.msra.mxu0 %v1618
        %2637 = vmatpush.msra.mxu0 %v1614
        %2638 = vmatpush.msra.mxu0 %v1610
        %2639 = vmatpush.msra.mxu0 %v1606
        %2640 = vmatpush.msra.mxu0 %v1602
        %2641 = vmatpush.msra.mxu0 %v1598
        %2642 = vmatmul.f32.gmra.mxu0 %v1433
        %v2643 = vpop.f32.mrf.mxu0
        %v2644 = vadd.f32 %v2552, %v2643
        %2645 = vmatmul.f32.gmra.mxu0 %v1437
        %v2646 = vpop.f32.mrf.mxu0
        %v2647 = vadd.f32 %v2555, %v2646
        %2648 = vmatmul.f32.gmra.mxu0 %v1441
        %v2649 = vpop.f32.mrf.mxu0
        %v2650 = vadd.f32 %v2558, %v2649
        %2651 = vmatmul.f32.gmra.mxu0 %v1445
        %v2652 = vpop.f32.mrf.mxu0
        %v2653 = vadd.f32 %v2561, %v2652
        %2654 = vmatmul.f32.gmra.mxu0 %v1449
        %v2655 = vpop.f32.mrf.mxu0
        %v2656 = vadd.f32 %v2564, %v2655
        %2657 = vmatmul.f32.gmra.mxu0 %v1453
        %v2658 = vpop.f32.mrf.mxu0
        %v2659 = vadd.f32 %v2567, %v2658
        %2660 = vmatmul.f32.gmra.mxu0 %v1457
        %v2661 = vpop.f32.mrf.mxu0
        %v2662 = vadd.f32 %v2570, %v2661
        %2663 = vmatmul.f32.gmra.mxu0 %v1461
        %v2664 = vpop.f32.mrf.mxu0
        %v2665 = vadd.f32 %v2573, %v2664
        %2666 = vmatmul.f32.gmra.mxu0 %v1465
        %v2667 = vpop.f32.mrf.mxu0
        %v2668 = vadd.f32 %v2576, %v2667
        %2669 = vmatmul.f32.gmra.mxu0 %v1469
        %v2670 = vpop.f32.mrf.mxu0
        %v2671 = vadd.f32 %v2579, %v2670
        %2672 = vmatmul.f32.gmra.mxu0 %v1473
        %v2673 = vpop.f32.mrf.mxu0
        %v2674 = vadd.f32 %v2582, %v2673
        %2675 = vmatmul.f32.gmra.mxu0 %v1477
        %v2676 = vpop.f32.mrf.mxu0
        %v2677 = vadd.f32 %v2585, %v2676
        %2678 = vmatmul.f32.gmra.mxu0 %v1481
        %v2679 = vpop.f32.mrf.mxu0
        %v2680 = vadd.f32 %v2588, %v2679
        %2681 = vmatmul.f32.gmra.mxu0 %v1485
        %v2682 = vpop.f32.mrf.mxu0
        %v2683 = vadd.f32 %v2591, %v2682
        %2684 = vmatmul.f32.gmra.mxu0 %v1489
        %v2685 = vpop.f32.mrf.mxu0
        %v2686 = vadd.f32 %v2594, %v2685
        %2687 = vmatmul.f32.gmra.mxu0 %v1493
        %v2688 = vpop.f32.mrf.mxu0
        %v2689 = vadd.f32 %v2597, %v2688
        %2690 = vmatmul.f32.gmra.mxu0 %v1497
        %v2691 = vpop.f32.mrf.mxu0
        %v2692 = vadd.f32 %v2600, %v2691
        %2693 = vmatmul.f32.gmra.mxu0 %v1501
        %v2694 = vpop.f32.mrf.mxu0
        %v2695 = vadd.f32 %v2603, %v2694
        %2696 = vmatmul.f32.gmra.mxu0 %v1505
        %v2697 = vpop.f32.mrf.mxu0
        %v2698 = vadd.f32 %v2606, %v2697
        %2699 = vmatmul.f32.gmra.mxu0 %v1509
        %v2700 = vpop.f32.mrf.mxu0
        %v2701 = vadd.f32 %v2609, %v2700
        %2702 = vmatmul.f32.gmra.mxu0 %v1513
        %v2703 = vpop.f32.mrf.mxu0
        %v2704 = vadd.f32 %v2612, %v2703
        %2705 = vmatmul.f32.gmra.mxu0 %v1517
        %v2706 = vpop.f32.mrf.mxu0
        %v2707 = vadd.f32 %v2615, %v2706
        %2708 = vmatmul.f32.gmra.mxu0 %v1521
        %v2709 = vpop.f32.mrf.mxu0
        %v2710 = vadd.f32 %v2618, %v2709
        %2711 = vmatmul.f32.gmra.mxu0 %v1525
        %v2712 = vpop.f32.mrf.mxu0
        %v2713 = vadd.f32 %v2621, %v2712
        %2714 = vmatmul.f32.gmra.mxu0 %v1529
        %v2715 = vpop.f32.mrf.mxu0
        %v2716 = vadd.f32 %v2624, %v2715
        %2717 = vdwg.mxu0
        %2718 = vmatpush.msra.mxu0 %v1722
        %2719 = vmatpush.msra.mxu0 %v1718
        %2720 = vmatpush.msra.mxu0 %v1714
        %2721 = vmatpush.msra.mxu0 %v1710
        %2722 = vmatpush.msra.mxu0 %v1706
        %2723 = vmatpush.msra.mxu0 %v1702
        %2724 = vmatpush.msra.mxu0 %v1698
        %2725 = vmatpush.msra.mxu0 %v1694
        %2726 = vmatpush.msra.mxu0 %v1690
        %2727 = vmatpush.msra.mxu0 %v1686
        %2728 = vmatpush.msra.mxu0 %v1682
        %2729 = vmatpush.msra.mxu0 %v1678
        %2730 = vmatpush.msra.mxu0 %v1674
        %2731 = vmatpush.msra.mxu0 %v1670
        %2732 = vmatpush.msra.mxu0 %v1666
        %2733 = vmatpush.msra.mxu0 %v1662
        %2734 = vmatmul.f32.gmra.mxu0 %v1434
        %v2735 = vpop.f32.mrf.mxu0
        %v2736 = vadd.f32 %v2644, %v2735
        %2737 = vmatmul.f32.gmra.mxu0 %v1438
        %v2738 = vpop.f32.mrf.mxu0
        %v2739 = vadd.f32 %v2647, %v2738
        %2740 = vmatmul.f32.gmra.mxu0 %v1442
        %v2741 = vpop.f32.mrf.mxu0
        %v2742 = vadd.f32 %v2650, %v2741
        %2743 = vmatmul.f32.gmra.mxu0 %v1446
        %v2744 = vpop.f32.mrf.mxu0
        %v2745 = vadd.f32 %v2653, %v2744
        %2746 = vmatmul.f32.gmra.mxu0 %v1450
        %v2747 = vpop.f32.mrf.mxu0
        %v2748 = vadd.f32 %v2656, %v2747
        %2749 = vmatmul.f32.gmra.mxu0 %v1454
        %v2750 = vpop.f32.mrf.mxu0
        %v2751 = vadd.f32 %v2659, %v2750
        %2752 = vmatmul.f32.gmra.mxu0 %v1458
        %v2753 = vpop.f32.mrf.mxu0
        %v2754 = vadd.f32 %v2662, %v2753
        %2755 = vmatmul.f32.gmra.mxu0 %v1462
        %v2756 = vpop.f32.mrf.mxu0
        %v2757 = vadd.f32 %v2665, %v2756
        %2758 = vmatmul.f32.gmra.mxu0 %v1466
        %v2759 = vpop.f32.mrf.mxu0
        %v2760 = vadd.f32 %v2668, %v2759
        %2761 = vmatmul.f32.gmra.mxu0 %v1470
        %v2762 = vpop.f32.mrf.mxu0
        %v2763 = vadd.f32 %v2671, %v2762
        %2764 = vmatmul.f32.gmra.mxu0 %v1474
        %v2765 = vpop.f32.mrf.mxu0
        %v2766 = vadd.f32 %v2674, %v2765
        %2767 = vmatmul.f32.gmra.mxu0 %v1478
        %v2768 = vpop.f32.mrf.mxu0
        %v2769 = vadd.f32 %v2677, %v2768
        %2770 = vmatmul.f32.gmra.mxu0 %v1482
        %v2771 = vpop.f32.mrf.mxu0
        %v2772 = vadd.f32 %v2680, %v2771
        %2773 = vmatmul.f32.gmra.mxu0 %v1486
        %v2774 = vpop.f32.mrf.mxu0
        %v2775 = vadd.f32 %v2683, %v2774
        %2776 = vmatmul.f32.gmra.mxu0 %v1490
        %v2777 = vpop.f32.mrf.mxu0
        %v2778 = vadd.f32 %v2686, %v2777
        %2779 = vmatmul.f32.gmra.mxu0 %v1494
        %v2780 = vpop.f32.mrf.mxu0
        %v2781 = vadd.f32 %v2689, %v2780
        %2782 = vmatmul.f32.gmra.mxu0 %v1498
        %v2783 = vpop.f32.mrf.mxu0
        %v2784 = vadd.f32 %v2692, %v2783
        %2785 = vmatmul.f32.gmra.mxu0 %v1502
        %v2786 = vpop.f32.mrf.mxu0
        %v2787 = vadd.f32 %v2695, %v2786
        %2788 = vmatmul.f32.gmra.mxu0 %v1506
        %v2789 = vpop.f32.mrf.mxu0
        %v2790 = vadd.f32 %v2698, %v2789
        %2791 = vmatmul.f32.gmra.mxu0 %v1510
        %v2792 = vpop.f32.mrf.mxu0
        %v2793 = vadd.f32 %v2701, %v2792
        %2794 = vmatmul.f32.gmra.mxu0 %v1514
        %v2795 = vpop.f32.mrf.mxu0
        %v2796 = vadd.f32 %v2704, %v2795
        %2797 = vmatmul.f32.gmra.mxu0 %v1518
        %v2798 = vpop.f32.mrf.mxu0
        %v2799 = vadd.f32 %v2707, %v2798
        %2800 = vmatmul.f32.gmra.mxu0 %v1522
        %v2801 = vpop.f32.mrf.mxu0
        %v2802 = vadd.f32 %v2710, %v2801
        %2803 = vmatmul.f32.gmra.mxu0 %v1526
        %v2804 = vpop.f32.mrf.mxu0
        %v2805 = vadd.f32 %v2713, %v2804
        %2806 = vmatmul.f32.gmra.mxu0 %v1530
        %v2807 = vpop.f32.mrf.mxu0
        %v2808 = vadd.f32 %v2716, %v2807
        %2809 = vdwg.mxu0
        %2810 = vmatpush.msra.mxu0 %v1786
        %2811 = vmatpush.msra.mxu0 %v1782
        %2812 = vmatpush.msra.mxu0 %v1778
        %2813 = vmatpush.msra.mxu0 %v1774
        %2814 = vmatpush.msra.mxu0 %v1770
        %2815 = vmatpush.msra.mxu0 %v1766
        %2816 = vmatpush.msra.mxu0 %v1762
        %2817 = vmatpush.msra.mxu0 %v1758
        %2818 = vmatpush.msra.mxu0 %v1754
        %2819 = vmatpush.msra.mxu0 %v1750
        %2820 = vmatpush.msra.mxu0 %v1746
        %2821 = vmatpush.msra.mxu0 %v1742
        %2822 = vmatpush.msra.mxu0 %v1738
        %2823 = vmatpush.msra.mxu0 %v1734
        %2824 = vmatpush.msra.mxu0 %v1730
        %2825 = vmatpush.msra.mxu0 %v1726
        %2826 = vmatmul.f32.gmra.mxu0 %v1435
        %v2827 = vpop.f32.mrf.mxu0
        %v2828 = vadd.f32 %v2736, %v2827
        %2829 = vmatmul.f32.gmra.mxu0 %v1439
        %v2830 = vpop.f32.mrf.mxu0
        %v2831 = vadd.f32 %v2739, %v2830
        %2832 = vmatmul.f32.gmra.mxu0 %v1443
        %v2833 = vpop.f32.mrf.mxu0
        %v2834 = vadd.f32 %v2742, %v2833
        %2835 = vmatmul.f32.gmra.mxu0 %v1447
        %v2836 = vpop.f32.mrf.mxu0
        %v2837 = vadd.f32 %v2745, %v2836
        %2838 = vmatmul.f32.gmra.mxu0 %v1451
        %v2839 = vpop.f32.mrf.mxu0
        %v2840 = vadd.f32 %v2748, %v2839
        %2841 = vmatmul.f32.gmra.mxu0 %v1455
        %v2842 = vpop.f32.mrf.mxu0
        %v2843 = vadd.f32 %v2751, %v2842
        %2844 = vmatmul.f32.gmra.mxu0 %v1459
        %v2845 = vpop.f32.mrf.mxu0
        %v2846 = vadd.f32 %v2754, %v2845
        %2847 = vmatmul.f32.gmra.mxu0 %v1463
        %v2848 = vpop.f32.mrf.mxu0
        %v2849 = vadd.f32 %v2757, %v2848
        %2850 = vmatmul.f32.gmra.mxu0 %v1467
        %v2851 = vpop.f32.mrf.mxu0
        %v2852 = vadd.f32 %v2760, %v2851
        %2853 = vmatmul.f32.gmra.mxu0 %v1471
        %v2854 = vpop.f32.mrf.mxu0
        %v2855 = vadd.f32 %v2763, %v2854
        %2856 = vmatmul.f32.gmra.mxu0 %v1475
        %v2857 = vpop.f32.mrf.mxu0
        %v2858 = vadd.f32 %v2766, %v2857
        %2859 = vmatmul.f32.gmra.mxu0 %v1479
        %v2860 = vpop.f32.mrf.mxu0
        %v2861 = vadd.f32 %v2769, %v2860
        %2862 = vmatmul.f32.gmra.mxu0 %v1483
        %v2863 = vpop.f32.mrf.mxu0
        %v2864 = vadd.f32 %v2772, %v2863
        %2865 = vmatmul.f32.gmra.mxu0 %v1487
        %v2866 = vpop.f32.mrf.mxu0
        %v2867 = vadd.f32 %v2775, %v2866
        %2868 = vmatmul.f32.gmra.mxu0 %v1491
        %v2869 = vpop.f32.mrf.mxu0
        %v2870 = vadd.f32 %v2778, %v2869
        %2871 = vmatmul.f32.gmra.mxu0 %v1495
        %v2872 = vpop.f32.mrf.mxu0
        %v2873 = vadd.f32 %v2781, %v2872
        %2874 = vmatmul.f32.gmra.mxu0 %v1499
        %v2875 = vpop.f32.mrf.mxu0
        %v2876 = vadd.f32 %v2784, %v2875
        %2877 = vmatmul.f32.gmra.mxu0 %v1503
        %v2878 = vpop.f32.mrf.mxu0
        %v2879 = vadd.f32 %v2787, %v2878
        %2880 = vmatmul.f32.gmra.mxu0 %v1507
        %v2881 = vpop.f32.mrf.mxu0
        %v2882 = vadd.f32 %v2790, %v2881
        %2883 = vmatmul.f32.gmra.mxu0 %v1511
        %v2884 = vpop.f32.mrf.mxu0
        %v2885 = vadd.f32 %v2793, %v2884
        %2886 = vmatmul.f32.gmra.mxu0 %v1515
        %v2887 = vpop.f32.mrf.mxu0
        %v2888 = vadd.f32 %v2796, %v2887
        %2889 = vmatmul.f32.gmra.mxu0 %v1519
        %v2890 = vpop.f32.mrf.mxu0
        %v2891 = vadd.f32 %v2799, %v2890
        %2892 = vmatmul.f32.gmra.mxu0 %v1523
        %v2893 = vpop.f32.mrf.mxu0
        %v2894 = vadd.f32 %v2802, %v2893
        %2895 = vmatmul.f32.gmra.mxu0 %v1527
        %v2896 = vpop.f32.mrf.mxu0
        %v2897 = vadd.f32 %v2805, %v2896
        %2898 = vmatmul.f32.gmra.mxu0 %v1531
        %v2899 = vpop.f32.mrf.mxu0
        %v2900 = vadd.f32 %v2808, %v2899
        %2901 = vdwg.mxu0
        %2902 = vmatpush.msra.mxu0 %v1595
        %2903 = vmatpush.msra.mxu0 %v1591
        %2904 = vmatpush.msra.mxu0 %v1587
        %2905 = vmatpush.msra.mxu0 %v1583
        %2906 = vmatpush.msra.mxu0 %v1579
        %2907 = vmatpush.msra.mxu0 %v1575
        %2908 = vmatpush.msra.mxu0 %v1571
        %2909 = vmatpush.msra.mxu0 %v1567
        %2910 = vmatpush.msra.mxu0 %v1563
        %2911 = vmatpush.msra.mxu0 %v1559
        %2912 = vmatpush.msra.mxu0 %v1555
        %2913 = vmatpush.msra.mxu0 %v1551
        %2914 = vmatpush.msra.mxu0 %v1547
        %2915 = vmatpush.msra.mxu0 %v1543
        %2916 = vmatpush.msra.mxu0 %v1539
        %2917 = vmatpush.msra.mxu0 %v1535
        %2918 = vmatmul.f32.gmra.mxu0 %v1432
        %v2919 = vpop.f32.mrf.mxu0
        %v2920 = vadd.f32 %v1793, %v2919
        %2921 = vmatmul.f32.gmra.mxu0 %v1436
        %v2922 = vpop.f32.mrf.mxu0
        %v2923 = vadd.f32 %v1793, %v2922
        %2924 = vmatmul.f32.gmra.mxu0 %v1440
        %v2925 = vpop.f32.mrf.mxu0
        %v2926 = vadd.f32 %v1793, %v2925
        %2927 = vmatmul.f32.gmra.mxu0 %v1444
        %v2928 = vpop.f32.mrf.mxu0
        %v2929 = vadd.f32 %v1793, %v2928
        %2930 = vmatmul.f32.gmra.mxu0 %v1448
        %v2931 = vpop.f32.mrf.mxu0
        %v2932 = vadd.f32 %v1793, %v2931
        %2933 = vmatmul.f32.gmra.mxu0 %v1452
        %v2934 = vpop.f32.mrf.mxu0
        %v2935 = vadd.f32 %v1793, %v2934
        %2936 = vmatmul.f32.gmra.mxu0 %v1456
        %v2937 = vpop.f32.mrf.mxu0
        %v2938 = vadd.f32 %v1793, %v2937
        %2939 = vmatmul.f32.gmra.mxu0 %v1460
        %v2940 = vpop.f32.mrf.mxu0
        %v2941 = vadd.f32 %v1793, %v2940
        %2942 = vmatmul.f32.gmra.mxu0 %v1464
        %v2943 = vpop.f32.mrf.mxu0
        %v2944 = vadd.f32 %v1793, %v2943
        %2945 = vmatmul.f32.gmra.mxu0 %v1468
        %v2946 = vpop.f32.mrf.mxu0
        %v2947 = vadd.f32 %v1793, %v2946
        %2948 = vmatmul.f32.gmra.mxu0 %v1472
        %v2949 = vpop.f32.mrf.mxu0
        %v2950 = vadd.f32 %v1793, %v2949
        %2951 = vmatmul.f32.gmra.mxu0 %v1476
        %v2952 = vpop.f32.mrf.mxu0
        %v2953 = vadd.f32 %v1793, %v2952
        %2954 = vmatmul.f32.gmra.mxu0 %v1480
        %v2955 = vpop.f32.mrf.mxu0
        %v2956 = vadd.f32 %v1793, %v2955
        %2957 = vmatmul.f32.gmra.mxu0 %v1484
        %v2958 = vpop.f32.mrf.mxu0
        %v2959 = vadd.f32 %v1793, %v2958
        %2960 = vmatmul.f32.gmra.mxu0 %v1488
        %v2961 = vpop.f32.mrf.mxu0
        %v2962 = vadd.f32 %v1793, %v2961
        %2963 = vmatmul.f32.gmra.mxu0 %v1492
        %v2964 = vpop.f32.mrf.mxu0
        %v2965 = vadd.f32 %v1793, %v2964
        %2966 = vmatmul.f32.gmra.mxu0 %v1496
        %v2967 = vpop.f32.mrf.mxu0
        %v2968 = vadd.f32 %v1793, %v2967
        %2969 = vmatmul.f32.gmra.mxu0 %v1500
        %v2970 = vpop.f32.mrf.mxu0
        %v2971 = vadd.f32 %v1793, %v2970
        %2972 = vmatmul.f32.gmra.mxu0 %v1504
        %v2973 = vpop.f32.mrf.mxu0
        %v2974 = vadd.f32 %v1793, %v2973
        %2975 = vmatmul.f32.gmra.mxu0 %v1508
        %v2976 = vpop.f32.mrf.mxu0
        %v2977 = vadd.f32 %v1793, %v2976
        %2978 = vmatmul.f32.gmra.mxu0 %v1512
        %v2979 = vpop.f32.mrf.mxu0
        %v2980 = vadd.f32 %v1793, %v2979
        %2981 = vmatmul.f32.gmra.mxu0 %v1516
        %v2982 = vpop.f32.mrf.mxu0
        %v2983 = vadd.f32 %v1793, %v2982
        %2984 = vmatmul.f32.gmra.mxu0 %v1520
        %v2985 = vpop.f32.mrf.mxu0
        %v2986 = vadd.f32 %v1793, %v2985
        %2987 = vmatmul.f32.gmra.mxu0 %v1524
        %v2988 = vpop.f32.mrf.mxu0
        %v2989 = vadd.f32 %v1793, %v2988
        %2990 = vmatmul.f32.gmra.mxu0 %v1528
        %v2991 = vpop.f32.mrf.mxu0
        %v2992 = vadd.f32 %v1793, %v2991
        %2993 = vdwg.mxu0
        %2994 = vmatpush.msra.mxu0 %v1659
        %2995 = vmatpush.msra.mxu0 %v1655
        %2996 = vmatpush.msra.mxu0 %v1651
        %2997 = vmatpush.msra.mxu0 %v1647
        %2998 = vmatpush.msra.mxu0 %v1643
        %2999 = vmatpush.msra.mxu0 %v1639
        %3000 = vmatpush.msra.mxu0 %v1635
        %3001 = vmatpush.msra.mxu0 %v1631
        %3002 = vmatpush.msra.mxu0 %v1627
        %3003 = vmatpush.msra.mxu0 %v1623
        %3004 = vmatpush.msra.mxu0 %v1619
        %3005 = vmatpush.msra.mxu0 %v1615
        %3006 = vmatpush.msra.mxu0 %v1611
        %3007 = vmatpush.msra.mxu0 %v1607
        %3008 = vmatpush.msra.mxu0 %v1603
        %3009 = vmatpush.msra.mxu0 %v1599
        %3010 = vmatmul.f32.gmra.mxu0 %v1433
        %v3011 = vpop.f32.mrf.mxu0
        %v3012 = vadd.f32 %v2920, %v3011
        %3013 = vmatmul.f32.gmra.mxu0 %v1437
        %v3014 = vpop.f32.mrf.mxu0
        %v3015 = vadd.f32 %v2923, %v3014
        %3016 = vmatmul.f32.gmra.mxu0 %v1441
        %v3017 = vpop.f32.mrf.mxu0
        %v3018 = vadd.f32 %v2926, %v3017
        %3019 = vmatmul.f32.gmra.mxu0 %v1445
        %v3020 = vpop.f32.mrf.mxu0
        %v3021 = vadd.f32 %v2929, %v3020
        %3022 = vmatmul.f32.gmra.mxu0 %v1449
        %v3023 = vpop.f32.mrf.mxu0
        %v3024 = vadd.f32 %v2932, %v3023
        %3025 = vmatmul.f32.gmra.mxu0 %v1453
        %v3026 = vpop.f32.mrf.mxu0
        %v3027 = vadd.f32 %v2935, %v3026
        %3028 = vmatmul.f32.gmra.mxu0 %v1457
        %v3029 = vpop.f32.mrf.mxu0
        %v3030 = vadd.f32 %v2938, %v3029
        %3031 = vmatmul.f32.gmra.mxu0 %v1461
        %v3032 = vpop.f32.mrf.mxu0
        %v3033 = vadd.f32 %v2941, %v3032
        %3034 = vmatmul.f32.gmra.mxu0 %v1465
        %v3035 = vpop.f32.mrf.mxu0
        %v3036 = vadd.f32 %v2944, %v3035
        %3037 = vmatmul.f32.gmra.mxu0 %v1469
        %v3038 = vpop.f32.mrf.mxu0
        %v3039 = vadd.f32 %v2947, %v3038
        %3040 = vmatmul.f32.gmra.mxu0 %v1473
        %v3041 = vpop.f32.mrf.mxu0
        %v3042 = vadd.f32 %v2950, %v3041
        %3043 = vmatmul.f32.gmra.mxu0 %v1477
        %v3044 = vpop.f32.mrf.mxu0
        %v3045 = vadd.f32 %v2953, %v3044
        %3046 = vmatmul.f32.gmra.mxu0 %v1481
        %v3047 = vpop.f32.mrf.mxu0
        %v3048 = vadd.f32 %v2956, %v3047
        %3049 = vmatmul.f32.gmra.mxu0 %v1485
        %v3050 = vpop.f32.mrf.mxu0
        %v3051 = vadd.f32 %v2959, %v3050
        %3052 = vmatmul.f32.gmra.mxu0 %v1489
        %v3053 = vpop.f32.mrf.mxu0
        %v3054 = vadd.f32 %v2962, %v3053
        %3055 = vmatmul.f32.gmra.mxu0 %v1493
        %v3056 = vpop.f32.mrf.mxu0
        %v3057 = vadd.f32 %v2965, %v3056
        %3058 = vmatmul.f32.gmra.mxu0 %v1497
        %v3059 = vpop.f32.mrf.mxu0
        %v3060 = vadd.f32 %v2968, %v3059
        %3061 = vmatmul.f32.gmra.mxu0 %v1501
        %v3062 = vpop.f32.mrf.mxu0
        %v3063 = vadd.f32 %v2971, %v3062
        %3064 = vmatmul.f32.gmra.mxu0 %v1505
        %v3065 = vpop.f32.mrf.mxu0
        %v3066 = vadd.f32 %v2974, %v3065
        %3067 = vmatmul.f32.gmra.mxu0 %v1509
        %v3068 = vpop.f32.mrf.mxu0
        %v3069 = vadd.f32 %v2977, %v3068
        %3070 = vmatmul.f32.gmra.mxu0 %v1513
        %v3071 = vpop.f32.mrf.mxu0
        %v3072 = vadd.f32 %v2980, %v3071
        %3073 = vmatmul.f32.gmra.mxu0 %v1517
        %v3074 = vpop.f32.mrf.mxu0
        %v3075 = vadd.f32 %v2983, %v3074
        %3076 = vmatmul.f32.gmra.mxu0 %v1521
        %v3077 = vpop.f32.mrf.mxu0
        %v3078 = vadd.f32 %v2986, %v3077
        %3079 = vmatmul.f32.gmra.mxu0 %v1525
        %v3080 = vpop.f32.mrf.mxu0
        %v3081 = vadd.f32 %v2989, %v3080
        %3082 = vmatmul.f32.gmra.mxu0 %v1529
        %v3083 = vpop.f32.mrf.mxu0
        %v3084 = vadd.f32 %v2992, %v3083
        %3085 = vdwg.mxu0
        %3086 = vmatpush.msra.mxu0 %v1723
        %3087 = vmatpush.msra.mxu0 %v1719
        %3088 = vmatpush.msra.mxu0 %v1715
        %3089 = vmatpush.msra.mxu0 %v1711
        %3090 = vmatpush.msra.mxu0 %v1707
        %3091 = vmatpush.msra.mxu0 %v1703
        %3092 = vmatpush.msra.mxu0 %v1699
        %3093 = vmatpush.msra.mxu0 %v1695
        %3094 = vmatpush.msra.mxu0 %v1691
        %3095 = vmatpush.msra.mxu0 %v1687
        %3096 = vmatpush.msra.mxu0 %v1683
        %3097 = vmatpush.msra.mxu0 %v1679
        %3098 = vmatpush.msra.mxu0 %v1675
        %3099 = vmatpush.msra.mxu0 %v1671
        %3100 = vmatpush.msra.mxu0 %v1667
        %3101 = vmatpush.msra.mxu0 %v1663
        %3102 = vmatmul.f32.gmra.mxu0 %v1434
        %v3103 = vpop.f32.mrf.mxu0
        %v3104 = vadd.f32 %v3012, %v3103
        %3105 = vmatmul.f32.gmra.mxu0 %v1438
        %v3106 = vpop.f32.mrf.mxu0
        %v3107 = vadd.f32 %v3015, %v3106
        %3108 = vmatmul.f32.gmra.mxu0 %v1442
        %v3109 = vpop.f32.mrf.mxu0
        %v3110 = vadd.f32 %v3018, %v3109
        %3111 = vmatmul.f32.gmra.mxu0 %v1446
        %v3112 = vpop.f32.mrf.mxu0
        %v3113 = vadd.f32 %v3021, %v3112
        %3114 = vmatmul.f32.gmra.mxu0 %v1450
        %v3115 = vpop.f32.mrf.mxu0
        %v3116 = vadd.f32 %v3024, %v3115
        %3117 = vmatmul.f32.gmra.mxu0 %v1454
        %v3118 = vpop.f32.mrf.mxu0
        %v3119 = vadd.f32 %v3027, %v3118
        %3120 = vmatmul.f32.gmra.mxu0 %v1458
        %v3121 = vpop.f32.mrf.mxu0
        %v3122 = vadd.f32 %v3030, %v3121
        %3123 = vmatmul.f32.gmra.mxu0 %v1462
        %v3124 = vpop.f32.mrf.mxu0
        %v3125 = vadd.f32 %v3033, %v3124
        %3126 = vmatmul.f32.gmra.mxu0 %v1466
        %v3127 = vpop.f32.mrf.mxu0
        %v3128 = vadd.f32 %v3036, %v3127
        %3129 = vmatmul.f32.gmra.mxu0 %v1470
        %v3130 = vpop.f32.mrf.mxu0
        %v3131 = vadd.f32 %v3039, %v3130
        %3132 = vmatmul.f32.gmra.mxu0 %v1474
        %v3133 = vpop.f32.mrf.mxu0
        %v3134 = vadd.f32 %v3042, %v3133
        %3135 = vmatmul.f32.gmra.mxu0 %v1478
        %v3136 = vpop.f32.mrf.mxu0
        %v3137 = vadd.f32 %v3045, %v3136
        %3138 = vmatmul.f32.gmra.mxu0 %v1482
        %v3139 = vpop.f32.mrf.mxu0
        %v3140 = vadd.f32 %v3048, %v3139
        %3141 = vmatmul.f32.gmra.mxu0 %v1486
        %v3142 = vpop.f32.mrf.mxu0
        %v3143 = vadd.f32 %v3051, %v3142
        %3144 = vmatmul.f32.gmra.mxu0 %v1490
        %v3145 = vpop.f32.mrf.mxu0
        %v3146 = vadd.f32 %v3054, %v3145
        %3147 = vmatmul.f32.gmra.mxu0 %v1494
        %v3148 = vpop.f32.mrf.mxu0
        %v3149 = vadd.f32 %v3057, %v3148
        %3150 = vmatmul.f32.gmra.mxu0 %v1498
        %v3151 = vpop.f32.mrf.mxu0
        %v3152 = vadd.f32 %v3060, %v3151
        %3153 = vmatmul.f32.gmra.mxu0 %v1502
        %v3154 = vpop.f32.mrf.mxu0
        %v3155 = vadd.f32 %v3063, %v3154
        %3156 = vmatmul.f32.gmra.mxu0 %v1506
        %v3157 = vpop.f32.mrf.mxu0
        %v3158 = vadd.f32 %v3066, %v3157
        %3159 = vmatmul.f32.gmra.mxu0 %v1510
        %v3160 = vpop.f32.mrf.mxu0
        %v3161 = vadd.f32 %v3069, %v3160
        %3162 = vmatmul.f32.gmra.mxu0 %v1514
        %v3163 = vpop.f32.mrf.mxu0
        %v3164 = vadd.f32 %v3072, %v3163
        %3165 = vmatmul.f32.gmra.mxu0 %v1518
        %v3166 = vpop.f32.mrf.mxu0
        %v3167 = vadd.f32 %v3075, %v3166
        %3168 = vmatmul.f32.gmra.mxu0 %v1522
        %v3169 = vpop.f32.mrf.mxu0
        %v3170 = vadd.f32 %v3078, %v3169
        %3171 = vmatmul.f32.gmra.mxu0 %v1526
        %v3172 = vpop.f32.mrf.mxu0
        %v3173 = vadd.f32 %v3081, %v3172
        %3174 = vmatmul.f32.gmra.mxu0 %v1530
        %v3175 = vpop.f32.mrf.mxu0
        %v3176 = vadd.f32 %v3084, %v3175
        %3177 = vdwg.mxu0
        %3178 = vmatpush.msra.mxu0 %v1787
        %3179 = vmatpush.msra.mxu0 %v1783
        %3180 = vmatpush.msra.mxu0 %v1779
        %3181 = vmatpush.msra.mxu0 %v1775
        %3182 = vmatpush.msra.mxu0 %v1771
        %3183 = vmatpush.msra.mxu0 %v1767
        %3184 = vmatpush.msra.mxu0 %v1763
        %3185 = vmatpush.msra.mxu0 %v1759
        %3186 = vmatpush.msra.mxu0 %v1755
        %3187 = vmatpush.msra.mxu0 %v1751
        %3188 = vmatpush.msra.mxu0 %v1747
        %3189 = vmatpush.msra.mxu0 %v1743
        %3190 = vmatpush.msra.mxu0 %v1739
        %3191 = vmatpush.msra.mxu0 %v1735
        %3192 = vmatpush.msra.mxu0 %v1731
        %3193 = vmatpush.msra.mxu0 %v1727
        %3194 = vmatmul.f32.gmra.mxu0 %v1435
        %v3195 = vpop.f32.mrf.mxu0
        %v3196 = vadd.f32 %v3104, %v3195
        %3197 = vmatmul.f32.gmra.mxu0 %v1439
        %v3198 = vpop.f32.mrf.mxu0
        %v3199 = vadd.f32 %v3107, %v3198
        %3200 = vmatmul.f32.gmra.mxu0 %v1443
        %v3201 = vpop.f32.mrf.mxu0
        %v3202 = vadd.f32 %v3110, %v3201
        %3203 = vmatmul.f32.gmra.mxu0 %v1447
        %v3204 = vpop.f32.mrf.mxu0
        %v3205 = vadd.f32 %v3113, %v3204
        %3206 = vmatmul.f32.gmra.mxu0 %v1451
        %v3207 = vpop.f32.mrf.mxu0
        %v3208 = vadd.f32 %v3116, %v3207
        %3209 = vmatmul.f32.gmra.mxu0 %v1455
        %v3210 = vpop.f32.mrf.mxu0
        %v3211 = vadd.f32 %v3119, %v3210
        %3212 = vmatmul.f32.gmra.mxu0 %v1459
        %v3213 = vpop.f32.mrf.mxu0
        %v3214 = vadd.f32 %v3122, %v3213
        %3215 = vmatmul.f32.gmra.mxu0 %v1463
        %v3216 = vpop.f32.mrf.mxu0
        %v3217 = vadd.f32 %v3125, %v3216
        %3218 = vmatmul.f32.gmra.mxu0 %v1467
        %v3219 = vpop.f32.mrf.mxu0
        %v3220 = vadd.f32 %v3128, %v3219
        %3221 = vmatmul.f32.gmra.mxu0 %v1471
        %v3222 = vpop.f32.mrf.mxu0
        %v3223 = vadd.f32 %v3131, %v3222
        %3224 = vmatmul.f32.gmra.mxu0 %v1475
        %v3225 = vpop.f32.mrf.mxu0
        %v3226 = vadd.f32 %v3134, %v3225
        %3227 = vmatmul.f32.gmra.mxu0 %v1479
        %v3228 = vpop.f32.mrf.mxu0
        %v3229 = vadd.f32 %v3137, %v3228
        %3230 = vmatmul.f32.gmra.mxu0 %v1483
        %v3231 = vpop.f32.mrf.mxu0
        %v3232 = vadd.f32 %v3140, %v3231
        %3233 = vmatmul.f32.gmra.mxu0 %v1487
        %v3234 = vpop.f32.mrf.mxu0
        %v3235 = vadd.f32 %v3143, %v3234
        %3236 = vmatmul.f32.gmra.mxu0 %v1491
        %v3237 = vpop.f32.mrf.mxu0
        %v3238 = vadd.f32 %v3146, %v3237
        %3239 = vmatmul.f32.gmra.mxu0 %v1495
        %v3240 = vpop.f32.mrf.mxu0
        %v3241 = vadd.f32 %v3149, %v3240
        %3242 = vmatmul.f32.gmra.mxu0 %v1499
        %v3243 = vpop.f32.mrf.mxu0
        %v3244 = vadd.f32 %v3152, %v3243
        %3245 = vmatmul.f32.gmra.mxu0 %v1503
        %v3246 = vpop.f32.mrf.mxu0
        %v3247 = vadd.f32 %v3155, %v3246
        %3248 = vmatmul.f32.gmra.mxu0 %v1507
        %v3249 = vpop.f32.mrf.mxu0
        %v3250 = vadd.f32 %v3158, %v3249
        %3251 = vmatmul.f32.gmra.mxu0 %v1511
        %v3252 = vpop.f32.mrf.mxu0
        %v3253 = vadd.f32 %v3161, %v3252
        %3254 = vmatmul.f32.gmra.mxu0 %v1515
        %v3255 = vpop.f32.mrf.mxu0
        %v3256 = vadd.f32 %v3164, %v3255
        %3257 = vmatmul.f32.gmra.mxu0 %v1519
        %v3258 = vpop.f32.mrf.mxu0
        %v3259 = vadd.f32 %v3167, %v3258
        %3260 = vmatmul.f32.gmra.mxu0 %v1523
        %v3261 = vpop.f32.mrf.mxu0
        %v3262 = vadd.f32 %v3170, %v3261
        %3263 = vmatmul.f32.gmra.mxu0 %v1527
        %v3264 = vpop.f32.mrf.mxu0
        %v3265 = vadd.f32 %v3173, %v3264
        %3266 = vmatmul.f32.gmra.mxu0 %v1531
        %v3267 = vpop.f32.mrf.mxu0
        %v3268 = vadd.f32 %v3176, %v3267
        %3269 = vdwg.mxu0
        %3270 = vst [vmem:[%s326] sm:$0xff] %v2092
        %3271 = vst [vmem:[%s326 + $0x8] sm:$0xff] %v2460
        %3272 = vst [vmem:[%s326 + $0x10] sm:$0xff] %v2828
        %3273 = vst [vmem:[%s326 + $0x18] sm:$0xff] %v3196
        %3274 = vst [vmem:[%s326 + $0x20] sm:$0xff] %v2095
        %3275 = vst [vmem:[%s326 + $0x28] sm:$0xff] %v2463
        %3276 = vst [vmem:[%s326 + $0x30] sm:$0xff] %v2831
        %3277 = vst [vmem:[%s326 + $0x38] sm:$0xff] %v3199
        %3278 = vst [vmem:[%s326 + $0x40] sm:$0xff] %v2098
        %3279 = vst [vmem:[%s326 + $0x48] sm:$0xff] %v2466
        %3280 = vst [vmem:[%s326 + $0x50] sm:$0xff] %v2834
        %3281 = vst [vmem:[%s326 + $0x58] sm:$0xff] %v3202
        %3282 = vst [vmem:[%s326 + $0x60] sm:$0xff] %v2101
        %3283 = vst [vmem:[%s326 + $0x68] sm:$0xff] %v2469
        %3284 = vst [vmem:[%s326 + $0x70] sm:$0xff] %v2837
        %3285 = vst [vmem:[%s326 + $0x78] sm:$0xff] %v3205
        %3286 = vst [vmem:[%s326 + $0x80] sm:$0xff] %v2104
        %3287 = vst [vmem:[%s326 + $0x88] sm:$0xff] %v2472
        %3288 = vst [vmem:[%s326 + $0x90] sm:$0xff] %v2840
        %3289 = vst [vmem:[%s326 + $0x98] sm:$0xff] %v3208
        %3290 = vst [vmem:[%s326 + $0xa0] sm:$0xff] %v2107
        %3291 = vst [vmem:[%s326 + $0xa8] sm:$0xff] %v2475
        %3292 = vst [vmem:[%s326 + $0xb0] sm:$0xff] %v2843
        %3293 = vst [vmem:[%s326 + $0xb8] sm:$0xff] %v3211
        %3294 = vst [vmem:[%s326 + $0xc0] sm:$0xff] %v2110
        %3295 = vst [vmem:[%s326 + $0xc8] sm:$0xff] %v2478
        %3296 = vst [vmem:[%s326 + $0xd0] sm:$0xff] %v2846
        %3297 = vst [vmem:[%s326 + $0xd8] sm:$0xff] %v3214
        %3298 = vst [vmem:[%s326 + $0xe0] sm:$0xff] %v2113
        %3299 = vst [vmem:[%s326 + $0xe8] sm:$0xff] %v2481
        %3300 = vst [vmem:[%s326 + $0xf0] sm:$0xff] %v2849
        %3301 = vst [vmem:[%s326 + $0xf8] sm:$0xff] %v3217
        %3302 = vst [vmem:[%s326 + $0x100] sm:$0xff] %v2116
        %3303 = vst [vmem:[%s326 + $0x108] sm:$0xff] %v2484
        %3304 = vst [vmem:[%s326 + $0x110] sm:$0xff] %v2852
        %3305 = vst [vmem:[%s326 + $0x118] sm:$0xff] %v3220
        %3306 = vst [vmem:[%s326 + $0x120] sm:$0xff] %v2119
        %3307 = vst [vmem:[%s326 + $0x128] sm:$0xff] %v2487
        %3308 = vst [vmem:[%s326 + $0x130] sm:$0xff] %v2855
        %3309 = vst [vmem:[%s326 + $0x138] sm:$0xff] %v3223
        %3310 = vst [vmem:[%s326 + $0x140] sm:$0xff] %v2122
        %3311 = vst [vmem:[%s326 + $0x148] sm:$0xff] %v2490
        %3312 = vst [vmem:[%s326 + $0x150] sm:$0xff] %v2858
        %3313 = vst [vmem:[%s326 + $0x158] sm:$0xff] %v3226
        %3314 = vst [vmem:[%s326 + $0x160] sm:$0xff] %v2125
        %3315 = vst [vmem:[%s326 + $0x168] sm:$0xff] %v2493
        %3316 = vst [vmem:[%s326 + $0x170] sm:$0xff] %v2861
        %3317 = vst [vmem:[%s326 + $0x178] sm:$0xff] %v3229
        %3318 = vst [vmem:[%s326 + $0x180] sm:$0xff] %v2128
        %3319 = vst [vmem:[%s326 + $0x188] sm:$0xff] %v2496
        %3320 = vst [vmem:[%s326 + $0x190] sm:$0xff] %v2864
        %3321 = vst [vmem:[%s326 + $0x198] sm:$0xff] %v3232
        %3322 = vst [vmem:[%s326 + $0x1a0] sm:$0xff] %v2131
        %3323 = vst [vmem:[%s326 + $0x1a8] sm:$0xff] %v2499
        %3324 = vst [vmem:[%s326 + $0x1b0] sm:$0xff] %v2867
        %3325 = vst [vmem:[%s326 + $0x1b8] sm:$0xff] %v3235
        %3326 = vst [vmem:[%s326 + $0x1c0] sm:$0xff] %v2134
        %3327 = vst [vmem:[%s326 + $0x1c8] sm:$0xff] %v2502
        %3328 = vst [vmem:[%s326 + $0x1d0] sm:$0xff] %v2870
        %3329 = vst [vmem:[%s326 + $0x1d8] sm:$0xff] %v3238
        %3330 = vst [vmem:[%s326 + $0x1e0] sm:$0xff] %v2137
        %3331 = vst [vmem:[%s326 + $0x1e8] sm:$0xff] %v2505
        %3332 = vst [vmem:[%s326 + $0x1f0] sm:$0xff] %v2873
        %3333 = vst [vmem:[%s326 + $0x1f8] sm:$0xff] %v3241
        %3334 = vst [vmem:[%s326 + $0x200] sm:$0xff] %v2140
        %3335 = vst [vmem:[%s326 + $0x208] sm:$0xff] %v2508
        %3336 = vst [vmem:[%s326 + $0x210] sm:$0xff] %v2876
        %3337 = vst [vmem:[%s326 + $0x218] sm:$0xff] %v3244
        %3338 = vst [vmem:[%s326 + $0x220] sm:$0xff] %v2143
        %3339 = vst [vmem:[%s326 + $0x228] sm:$0xff] %v2511
        %3340 = vst [vmem:[%s326 + $0x230] sm:$0xff] %v2879
        %3341 = vst [vmem:[%s326 + $0x238] sm:$0xff] %v3247
        %3342 = vst [vmem:[%s326 + $0x240] sm:$0xff] %v2146
        %3343 = vst [vmem:[%s326 + $0x248] sm:$0xff] %v2514
        %3344 = vst [vmem:[%s326 + $0x250] sm:$0xff] %v2882
        %3345 = vst [vmem:[%s326 + $0x258] sm:$0xff] %v3250
        %3346 = vst [vmem:[%s326 + $0x260] sm:$0xff] %v2149
        %3347 = vst [vmem:[%s326 + $0x268] sm:$0xff] %v2517
        %3348 = vst [vmem:[%s326 + $0x270] sm:$0xff] %v2885
        %3349 = vst [vmem:[%s326 + $0x278] sm:$0xff] %v3253
        %3350 = vst [vmem:[%s326 + $0x280] sm:$0xff] %v2152
        %3351 = vst [vmem:[%s326 + $0x288] sm:$0xff] %v2520
        %3352 = vst [vmem:[%s326 + $0x290] sm:$0xff] %v2888
        %3353 = vst [vmem:[%s326 + $0x298] sm:$0xff] %v3256
        %3354 = vst [vmem:[%s326 + $0x2a0] sm:$0xff] %v2155
        %3355 = vst [vmem:[%s326 + $0x2a8] sm:$0xff] %v2523
        %3356 = vst [vmem:[%s326 + $0x2b0] sm:$0xff] %v2891
        %3357 = vst [vmem:[%s326 + $0x2b8] sm:$0xff] %v3259
        %3358 = vst [vmem:[%s326 + $0x2c0] sm:$0xff] %v2158
        %3359 = vst [vmem:[%s326 + $0x2c8] sm:$0xff] %v2526
        %3360 = vst [vmem:[%s326 + $0x2d0] sm:$0xff] %v2894
        %3361 = vst [vmem:[%s326 + $0x2d8] sm:$0xff] %v3262
        %3362 = vst [vmem:[%s326 + $0x2e0] sm:$0xff] %v2161
        %3363 = vst [vmem:[%s326 + $0x2e8] sm:$0xff] %v2529
        %3364 = vst [vmem:[%s326 + $0x2f0] sm:$0xff] %v2897
        %3365 = vst [vmem:[%s326 + $0x2f8] sm:$0xff] %v3265
        %3366 = vst [vmem:[%s326 + $0x300] sm:$0xff] %v2164
        %3367 = vst [vmem:[%s326 + $0x308] sm:$0xff] %v2532
        %3368 = vst [vmem:[%s326 + $0x310] sm:$0xff] %v2900
        %3369 = vst [vmem:[%s326 + $0x318] sm:$0xff] %v3268
        %s3370 = sand.u32 %s147, 1
        %s3371 = scalar_lea.sflag [#allocation4], %s3370
        %s3372 = sand.u32 %s147, 1
        %s3373 = smul.addr %s3372, 800
        %s3374 = scalar_lea.vmem [#allocation11], %s3373
        // Predicated region
        $region61: #{tpu_custom_call.1} parent=39 // pred_check
          %p3375 = pneg %p157
        $region62: #{tpu_custom_call.1} parent=39 // pred_check_branch
          %3377 = sbr.rel (%p3375) target = $region64
        $region63: #{tpu_custom_call.1} parent=39 // pred_region
          %s3378 = smul.u32 4, %s24
          %3380 = vsyncadd %s3371, 0
          %s3381 = smul.addr %s3378, 8
          %s3382 = scalar_lea.hbm %s5, %s3381
          %s3383 = sshll.u32 %s3374, 4
          %s3384 = int_to_ptr.vmem [resolvable:$true] %s3383
          %s3385 = sshll.u32 %s3382, 4
          %s3386 = int_to_ptr.hbm [resolvable:$true] %s3385
          %3391 = dma.vmem_to_hbm [thread:$0]  %s3384, 12800, %s3386, %s3371, 512, 2048, 32
        $region64: #{tpu_custom_call.1} parent=39 // pred_fallthru
          _
      $region40: #{tpu_custom_call.1} parent=5 // pred_fallthru
        _
      %p3392 = scmp.le.s32.totalorder 2, %s19
      // Predicated region
      $region65: #{tpu_custom_call.1} parent=5 // pred_check
        %p3393 = pneg %p3392
      $region66: #{tpu_custom_call.1} parent=5 // pred_check_branch
        %3395 = sbr.rel (%p3393) target = $region68
      $region67: #{tpu_custom_call.1} parent=5 // pred_region
        %s3396 = ssub.s32 %s19, 2
        // Predicated region
        $region69: #{tpu_custom_call.1} parent=67 // pred_check
          %p3397 = pneg %p163
        $region70: #{tpu_custom_call.1} parent=67 // pred_check_branch
          %3399 = sbr.rel (%p3397) target = $region72
        $region71: #{tpu_custom_call.1} parent=67 // pred_region
          %s3400 = sand.u32 %s148, 1
          %s3401 = scalar_lea.sflag [#allocation4], %s3400
          %s3402 = sand.u32 %s148, 1
          %s3403 = smul.addr %s3402, 800
          %s3404 = scalar_lea.vmem [#allocation11], %s3403
          %3406 = dma.done %s3401, 12800
        $region72: #{tpu_custom_call.1} parent=67 // pred_fallthru
          _
      $region68: #{tpu_custom_call.1} parent=5 // pred_fallthru
        _
    $region6: #{tpu_custom_call.1} parent=1 // loop_footer
      %s23 = sadd.s32 1, %s19
    $region7: #{tpu_custom_call.1} parent=1 // loop_footer_branch
      %18 = sbr.rel target = $region3
    $region8: #{tpu_custom_call.1} parent=1 // loop_exit
      _
    %3407 = vsyncpa [#allocation3], 1
    %s3408 = scalar_lea.sflag [#allocation3], 1
    %3409 = vsyncpa %s3408, 1
    %3410 = vsyncpa [#allocation6], 1
    %3411 = vsyncpa [#allocation9], 1
    %s3412 = scalar_lea.sflag [#allocation9], 1
    %3413 = vsyncpa %s3412, 1
    %3414 = vsyncpa [#allocation4], 1
    %s3415 = scalar_lea.sflag [#allocation4], 1
    %3416 = vsyncpa %s3415, 1

</llo_original>
